<compile_context>
chip_gen: v5e
topology: v5e:2x2
jax: 0.10.0
libtpu: 0.0.40
codegen_flags: <defaults>
</compile_context>

<pallas_src>
import functools

import jax
import jax.numpy as jnp
from jax.experimental import pallas as pl
from jax.experimental.pallas import tpu as pltpu


def _encdec_kernel(trans_ref, w_x_ref, b_x_ref, w_hh_ref, w_fc_ref, b_fc_ref,
                   w_out_ref, b_out_ref, idctx_ref, noise_ref, mask_ref,
                   adc_ref, packed_ref, loss_ref,
                   xp_ref, hid_ref, *, real_b):
    """Fused input projection -> time-major LSTM -> hoisted head -> losses."""
    S_plus_1, B = mask_ref.shape                 # time-major mask (S+1, B_pad)
    S = S_plus_1 - 1
    H, H4 = w_hh_ref.shape
    E = w_out_ref.shape[1]
    cdt = w_hh_ref.dtype                         # matmul compute dtype (bf16 or f32)

    # ---- 1) transition-embed + LSTM input projection, hoisted (one big matmul) ----
    xp = (jnp.dot(trans_ref[...].astype(cdt), w_x_ref[...],
                  preferred_element_type=jnp.float32)
          + b_x_ref[...])                                     # (S*B, 4H), f32
    # Time-major & contiguous: this reshape is layout-free.
    xp_ref[...] = xp.reshape(S, B, H4)

    # ---- 2) LSTM recurrence; gate columns pre-permuted to [i, f, o, g] -------------
    h = jnp.zeros((B, H), jnp.float32)
    c = jnp.zeros((B, H), jnp.float32)
    hid_ref[0, :, :] = h                         # prepended zero hidden state
    # Small fixed S: static unroll. Each step touches dense (8, 512)/(8, 128) tiles.
    for t in range(S):
        gates = xp_ref[t, :, :] + jnp.dot(h.astype(cdt), w_hh_ref[...],
                                          preferred_element_type=jnp.float32)
        sig = jax.nn.sigmoid(gates[:, 0:3 * H])               # one EUP slab
        g_g = jnp.tanh(gates[:, 3 * H:4 * H])
        i_g = sig[:, 0:H]
        f_g = sig[:, H:2 * H]
        o_g = sig[:, 2 * H:3 * H]
        c = f_g * c + i_g * g_g
        h = o_g * jnp.tanh(c)
        hid_ref[t + 1, :, :] = h

    # ---- 3) hoisted head: ONE fc matmul + ONE out matmul over all S+1 states -------
    hid2d = hid_ref[...].reshape((S + 1) * B, H)               # free reshape
    fc = jnp.maximum(
        jnp.dot(hid2d.astype(cdt), w_fc_ref[...], preferred_element_type=jnp.float32)
        + b_fc_ref[...], 0.0)
    adc2d = (jnp.dot(fc.astype(cdt), w_out_ref[...], preferred_element_type=jnp.float32)
             + b_out_ref[...])                                 # ((S+1)*B, E)
    adc_ref[...] = adc2d                                       # natural-layout store

    # decoder_contexts: hidden_lengths == T -> last time slab (dense static slice).
    dctx = adc2d[S * B:(S + 1) * B, :]

    # contexts (use_ids=True path): z ~ F(id) + 0.1 * noise
    id_ctx = idctx_ref[...]
    ctx = id_ctx + 0.1 * noise_ref[...]

    # Pack ctx | dctx into one lane-dense (B, 128) block (split in the wrapper).
    pad_lanes = packed_ref.shape[1] - 2 * E
    packed_ref[...] = jnp.concatenate(
        [ctx, dctx, jnp.zeros((B, pad_lanes), jnp.float32)], axis=1)

    # decoder_loss = sum_{t,b} mask * ||g(tau_:t) - z_id||^2 / sum(mask)  (time-major)
    adc3d = adc2d.reshape(S + 1, B, E)
    sq = jnp.sum((adc3d - id_ctx[None, :, :]) ** 2, axis=-1)   # (S+1, B)
    num = jnp.sum(jnp.sum(sq * mask_ref[...], axis=1, keepdims=True),
                  axis=0, keepdims=True)                       # (1, 1)
    den = jnp.sum(jnp.sum(mask_ref[...], axis=1, keepdims=True),
                  axis=0, keepdims=True)
    dloss = num / den

    # information_bottleneck = mean over REAL batch rows of max(||z_id||^2, 10)
    rows = jax.lax.broadcasted_iota(jnp.int32, (B, 1), 0)
    bmask = (rows < real_b).astype(jnp.float32)                # padded rows -> 0
    sq_id = jnp.sum(id_ctx * id_ctx, axis=-1, keepdims=True)   # (B, 1)
    ib = (jnp.sum(jnp.maximum(sq_id, 10.0) * bmask, axis=0, keepdims=True)
          / float(real_b))

    # pack both scalars into one lane-dense row: lane 0 = decoder_loss, lane 1 = ib
    lane = jax.lax.broadcasted_iota(jnp.int32, (1, 128), 1)
    loss_ref[...] = jnp.where(lane == 0, dloss, jnp.where(lane == 1, ib, 0.0))


def _permute_gates(w, H):
    """Permute LSTM gate columns from PyTorch [i, f, g, o] to [i, f, o, g]."""
    return jnp.concatenate([w[:, :2 * H], w[:, 3 * H:4 * H], w[:, 2 * H:3 * H]], axis=1)


@functools.partial(jax.jit, static_argnames=("use_bf16_matmul",))
def encoder_decoder_forward(transitions, id_contexts, noise, mask, params,
                            use_bf16_matmul=True):
    """Runs the EncoderDecoder forward pass (use_ids=True)."""
    B, S, D_in = transitions.shape
    E = id_contexts.shape[-1]
    H = params["w_hh"].shape[0]
    assert 2 * E <= 128, "ctx|dctx packing assumes 2*E <= 128 lanes"
    B_pad = ((B + 7) // 8) * 8                    # pad batch to the f32 sublane tile

    # --- parameter prep: gate permutation + fold LinearEmbedder into input proj ---
    w_ih = _permute_gates(params["w_ih"], H)
    w_hh = _permute_gates(params["w_hh"], H)
    b_lstm = _permute_gates(params["b_lstm"], H)
    w_x = params["w_te"] @ w_ih                   # (D_in, 4H)
    b_x = params["b_te"] @ w_ih + b_lstm          # (1, 4H)

    mm_dtype = jnp.bfloat16 if use_bf16_matmul else jnp.float32
    w_x_c = w_x.astype(mm_dtype)
    w_hh_c = w_hh.astype(mm_dtype)
    w_fc_c = params["w_fc"].astype(mm_dtype)
    w_out_c = params["w_out"].astype(mm_dtype)

    # --- batch padding (masked out of all loss terms) ---
    def pad_b(x):
        if B_pad == B:
            return x
        return jnp.concatenate(
            [x, jnp.zeros((B_pad - B,) + x.shape[1:], x.dtype)], axis=0)

    # Time-major data layouts for the kernel.
    trans_tm = jnp.swapaxes(pad_b(transitions), 0, 1).reshape(S * B_pad, D_in)
    mask_tm = pad_b(mask).T                       # (S+1, B_pad)
    id_p = pad_b(id_contexts)
    noise_p = pad_b(noise)

    vmem = pl.BlockSpec(memory_space=pltpu.MemorySpace.VMEM)
    args = (trans_tm, w_x_c, b_x, w_hh_c, w_fc_c, params["b_fc"],
            w_out_c, params["b_out"], id_p, noise_p, mask_tm)

    # Single block: total VMEM footprint is well under 1 MiB, so no grid is needed.
    # If B scales: add a "parallel" batch grid axis (uses both v7x TCs), block the
    # time-major arrays over batch, and size blocks against the scoped VMEM limit
    # (16 MiB v5e / 32 MiB v6e,v7x defaults; raise vmem_limit_bytes if needed).
    adc2d, packed, loss_row = pl.pallas_call(
        functools.partial(_encdec_kernel, real_b=B),
        out_shape=(
            jax.ShapeDtypeStruct(((S + 1) * B_pad, E), jnp.float32),  # adc, time-major
            jax.ShapeDtypeStruct((B_pad, 128), jnp.float32),          # ctx | dctx | 0
            jax.ShapeDtypeStruct((1, 128), jnp.float32),              # [dloss, ib, 0..]
        ),
        in_specs=[vmem] * len(args),
        out_specs=(vmem, vmem, vmem),
        scratch_shapes=[pltpu.VMEM((S, B_pad, 4 * H), jnp.float32),      # x_proj (t-major)
                        pltpu.VMEM((S + 1, B_pad, H), jnp.float32)],     # hidden (t-major)
    )(*args)

    # Wrapper-side layout plumbing (cheap XLA ops, off the kernel critical path).
    adc = jnp.swapaxes(adc2d.reshape(S + 1, B_pad, E), 0, 1)[:B]      # (B, S+1, E)
    ctx = packed[:B, :E]
    dctx = packed[:B, E:2 * E]
    losses = {"decoder_loss": loss_row[0, 0],
              "information_bottleneck": loss_row[0, 1]}
    return ctx, adc, dctx, losses


def _reference_forward(transitions, id_contexts, noise, mask, params):
    """Pure-JAX reference mirroring the PyTorch module (f32, PyTorch gate order)."""
    B, S, _ = transitions.shape
    H = params["w_hh"].shape[0]
    x_emb = transitions @ params["w_te"] + params["b_te"]     # (B, S, D_tr)

    def step(carry, x_t):
        h, c = carry
        gates = x_t @ params["w_ih"] + h @ params["w_hh"] + params["b_lstm"]
        i_g = jax.nn.sigmoid(gates[:, 0:H])
        f_g = jax.nn.sigmoid(gates[:, H:2 * H])
        g_g = jnp.tanh(gates[:, 2 * H:3 * H])
        o_g = jax.nn.sigmoid(gates[:, 3 * H:4 * H])
        c = f_g * c + i_g * g_g
        h = o_g * jnp.tanh(c)
        return (h, c), h

    h0 = jnp.zeros((B, H), jnp.float32)
    c0 = jnp.zeros((B, H), jnp.float32)
    (_, _), hs = jax.lax.scan(step, (h0, c0), jnp.swapaxes(x_emb, 0, 1))
    hidden = jnp.concatenate([h0[:, None, :], jnp.swapaxes(hs, 0, 1)], axis=1)
    fc = jnp.maximum(hidden @ params["w_fc"] + params["b_fc"], 0.0)
    adc = fc @ params["w_out"] + params["b_out"]              # (B, S+1, E)
    dctx = adc[:, S, :]
    contexts = id_contexts + 0.1 * noise
    dloss = (jnp.sum(jnp.sum((adc - id_contexts[:, None, :]) ** 2, -1) * mask)
             / jnp.sum(mask))
    ib = jnp.mean(jnp.maximum(jnp.sum(id_contexts ** 2, -1), 10.0))
    return contexts, adc, dctx, {"decoder_loss": dloss, "information_bottleneck": ib}


if __name__ == "__main__":
    # Small shapes consistent with the module: LSTM hidden = 128 (fixed),
    # fc = 128 (fixed); batch=4, seq=8, transition feature dim=16,
    # transition_embedder.embed_dim=32, embed_dim=32, id vocab=10.
    B, S, D_IN, D_TR, H, E, VOCAB = 4, 8, 16, 32, 128, 32, 10

    key = jax.random.PRNGKey(0)
    ks = jax.random.split(key, 14)
    params = {
        "w_te":   0.1 * jax.random.normal(ks[0], (D_IN, D_TR), jnp.float32),
        "b_te":   0.1 * jax.random.normal(ks[1], (1, D_TR), jnp.float32),
        "w_ih":   0.1 * jax.random.normal(ks[2], (D_TR, 4 * H), jnp.float32),
        "w_hh":   0.1 * jax.random.normal(ks[3], (H, 4 * H), jnp.float32),
        "b_lstm": 0.1 * jax.random.normal(ks[4], (1, 4 * H), jnp.float32),
        "w_fc":   0.1 * jax.random.normal(ks[5], (H, H), jnp.float32),
        "b_fc":   0.1 * jax.random.normal(ks[6], (1, H), jnp.float32),
        "w_out":  0.1 * jax.random.normal(ks[7], (H, E), jnp.float32),
        "b_out":  0.1 * jax.random.normal(ks[8], (1, E), jnp.float32),
    }
    id_table = 0.5 * jax.random.normal(ks[9], (VOCAB, E), jnp.float32)

    transitions = jax.random.normal(ks[10], (B, S, D_IN), jnp.float32)
    env_ids = jax.random.randint(ks[11], (B,), 0, VOCAB)
    noise = jax.random.normal(ks[12], (B, E), jnp.float32)      # stands in for randn_like
    mask = jnp.ones((B, S + 1), jnp.float32)                    # equal-length trajectories

    # Glue: id embedding lookup (FixedVocabEmbedder) outside the kernel.
    id_contexts = id_table[env_ids]                              # (B, E)

    contexts, adc, dctx, losses = encoder_decoder_forward(
        transitions, id_contexts, noise, mask, params)
    jax.block_until_ready((contexts, adc, dctx, losses))

    # Sanity check against a pure-JAX f32 reference of the same math.
    # (Kernel uses bf16 MXU inputs with f32 accumulation -> slightly looser tolerance.)
    r_ctx, r_adc, r_dctx, r_losses = _reference_forward(
        transitions, id_contexts, noise, mask, params)
    assert jnp.allclose(contexts, r_ctx, atol=1e-5, rtol=1e-5)
    assert jnp.allclose(adc, r_adc, atol=2e-2, rtol=2e-2)
    assert jnp.allclose(dctx, r_dctx, atol=2e-2, rtol=2e-2)
    assert jnp.allclose(losses["decoder_loss"], r_losses["decoder_loss"],
                        atol=1e-2, rtol=5e-2)
    assert jnp.allclose(losses["information_bottleneck"],
                        r_losses["information_bottleneck"], atol=1e-4, rtol=1e-4)

    print("KERNEL_OK")
</pallas_src>

<mosaic_0001>
module attributes {stable_mosaic.version = 11 : i64} {
  func.func @_encdec_kernel(%arg0: memref<64x16xf32, #tpu.memory_space<vmem>>, %arg1: memref<16x512xbf16, #tpu.memory_space<vmem>>, %arg2: memref<1x512xf32, #tpu.memory_space<vmem>>, %arg3: memref<128x512xbf16, #tpu.memory_space<vmem>>, %arg4: memref<128x128xbf16, #tpu.memory_space<vmem>>, %arg5: memref<1x128xf32, #tpu.memory_space<vmem>>, %arg6: memref<128x32xbf16, #tpu.memory_space<vmem>>, %arg7: memref<1x32xf32, #tpu.memory_space<vmem>>, %arg8: memref<8x32xf32, #tpu.memory_space<vmem>>, %arg9: memref<8x32xf32, #tpu.memory_space<vmem>>, %arg10: memref<9x8xf32, #tpu.memory_space<vmem>>, %arg11: memref<72x32xf32, #tpu.memory_space<vmem>>, %arg12: memref<8x128xf32, #tpu.memory_space<vmem>>, %arg13: memref<1x128xf32, #tpu.memory_space<vmem>>, %arg14: memref<8x8x512xf32, #tpu.memory_space<vmem>>, %arg15: memref<9x8x128xf32, #tpu.memory_space<vmem>>) attributes {dimension_semantics = [], scalar_prefetch = 0 : i64, scratch_operands = 2 : i64, tpu.core_type = #tpu.core_type<tc>} {
    %c0 = arith.constant 0 : index
    %c0_0 = arith.constant 0 : index
    %0 = vector.load %arg0[%c0, %c0_0] : memref<64x16xf32, #tpu.memory_space<vmem>>, vector<64x16xf32>
    %1 = arith.truncf %0 : vector<64x16xf32> to vector<64x16xbf16>
    %c0_1 = arith.constant 0 : index
    %c0_2 = arith.constant 0 : index
    %2 = vector.load %arg1[%c0_1, %c0_2] : memref<16x512xbf16, #tpu.memory_space<vmem>>, vector<16x512xbf16>
    %cst = arith.constant dense<0.000000e+00> : vector<64x512xf32>
    %3 = tpu.matmul %1, %2, %cst {dimension_numbers = #tpu.dot_dimension_numbers<[1], [0], [0], [1], [0, 0, 1, 1], [], []>} : vector<64x16xbf16>, vector<16x512xbf16>, vector<64x512xf32> -> vector<64x512xf32>
    %c0_3 = arith.constant 0 : index
    %c0_4 = arith.constant 0 : index
    %4 = vector.load %arg2[%c0_3, %c0_4] : memref<1x512xf32, #tpu.memory_space<vmem>>, vector<1x512xf32>
    %5 = vector.broadcast %4 : vector<1x512xf32> to vector<64x512xf32>
    %6 = arith.addf %3, %5 : vector<64x512xf32>
    %7 = vector.shape_cast %6 : vector<64x512xf32> to vector<8x8x512xf32>
    %c0_5 = arith.constant 0 : index
    %c0_6 = arith.constant 0 : index
    %c0_7 = arith.constant 0 : index
    %8 = vector.load %arg14[%c0_5, %c0_6, %c0_7] : memref<8x8x512xf32, #tpu.memory_space<vmem>>, vector<8x8x512xf32>
    tpu.vector_store %arg14[%c0_5, %c0_6, %c0_7], %7 {strides = array<i32>} : memref<8x8x512xf32, #tpu.memory_space<vmem>>, vector<8x8x512xf32>,
    %cst_8 = arith.constant 0.000000e+00 : f32
    %9 = vector.broadcast %cst_8 : f32 to vector<8x128xf32>
    %cst_9 = arith.constant 0.000000e+00 : f32
    %10 = vector.broadcast %cst_9 : f32 to vector<8x128xf32>
    %c0_10 = arith.constant 0 : index
    %c0_11 = arith.constant 0 : index
    %c0_12 = arith.constant 0 : index
    %11 = vector.load %arg15[%c0_10, %c0_11, %c0_12] : memref<9x8x128xf32, #tpu.memory_space<vmem>>, vector<1x8x128xf32>
    %12 = vector.shape_cast %11 : vector<1x8x128xf32> to vector<8x128xf32>
    %13 = vector.shape_cast %9 : vector<8x128xf32> to vector<1x8x128xf32>
    tpu.vector_store %arg15[%c0_10, %c0_11, %c0_12], %13 {strides = array<i32>} : memref<9x8x128xf32, #tpu.memory_space<vmem>>, vector<1x8x128xf32>,
    %c0_13 = arith.constant 0 : index
    %c0_14 = arith.constant 0 : index
    %c0_15 = arith.constant 0 : index
    %14 = vector.load %arg14[%c0_13, %c0_14, %c0_15] : memref<8x8x512xf32, #tpu.memory_space<vmem>>, vector<1x8x512xf32>
    %15 = vector.shape_cast %14 : vector<1x8x512xf32> to vector<8x512xf32>
    %16 = arith.truncf %9 : vector<8x128xf32> to vector<8x128xbf16>
    %c0_16 = arith.constant 0 : index
    %c0_17 = arith.constant 0 : index
    %17 = vector.load %arg3[%c0_16, %c0_17] : memref<128x512xbf16, #tpu.memory_space<vmem>>, vector<128x512xbf16>
    %cst_18 = arith.constant dense<0.000000e+00> : vector<8x512xf32>
    %18 = tpu.matmul %16, %17, %cst_18 {dimension_numbers = #tpu.dot_dimension_numbers<[1], [0], [0], [1], [0, 0, 1, 1], [], []>} : vector<8x128xbf16>, vector<128x512xbf16>, vector<8x512xf32> -> vector<8x512xf32>
    %19 = arith.addf %15, %18 : vector<8x512xf32>
    %20 = vector.extract_strided_slice %19 {offsets = [0, 0], sizes = [8, 384], strides = [1, 1]} : vector<8x512xf32> to vector<8x384xf32>
    %21 = arith.negf %20 : vector<8x384xf32>
    %22 = math.exp %21 : vector<8x384xf32>
    %cst_19 = arith.constant 1.000000e+00 : f32
    %23 = vector.broadcast %cst_19 : f32 to vector<8x384xf32>
    %24 = arith.addf %23, %22 : vector<8x384xf32>
    %25 = arith.divf %23, %24 : vector<8x384xf32>
    %26 = vector.extract_strided_slice %19 {offsets = [0, 384], sizes = [8, 128], strides = [1, 1]} : vector<8x512xf32> to vector<8x128xf32>
    %27 = math.tanh %26 : vector<8x128xf32>
    %28 = vector.extract_strided_slice %25 {offsets = [0, 0], sizes = [8, 128], strides = [1, 1]} : vector<8x384xf32> to vector<8x128xf32>
    %29 = vector.extract_strided_slice %25 {offsets = [0, 128], sizes = [8, 128], strides = [1, 1]} : vector<8x384xf32> to vector<8x128xf32>
    %30 = vector.extract_strided_slice %25 {offsets = [0, 256], sizes = [8, 128], strides = [1, 1]} : vector<8x384xf32> to vector<8x128xf32>
    %31 = arith.mulf %29, %10 : vector<8x128xf32>
    %32 = arith.mulf %28, %27 : vector<8x128xf32>
    %33 = arith.addf %31, %32 : vector<8x128xf32>
    %34 = math.tanh %33 : vector<8x128xf32>
    %35 = arith.mulf %30, %34 : vector<8x128xf32>
    %c1 = arith.constant 1 : index
    %c0_20 = arith.constant 0 : index
    %c0_21 = arith.constant 0 : index
    %36 = vector.load %arg15[%c1, %c0_20, %c0_21] : memref<9x8x128xf32, #tpu.memory_space<vmem>>, vector<1x8x128xf32>
    %37 = vector.shape_cast %36 : vector<1x8x128xf32> to vector<8x128xf32>
    %38 = vector.shape_cast %35 : vector<8x128xf32> to vector<1x8x128xf32>
    tpu.vector_store %arg15[%c1, %c0_20, %c0_21], %38 {strides = array<i32>} : memref<9x8x128xf32, #tpu.memory_space<vmem>>, vector<1x8x128xf32>,
    %c1_22 = arith.constant 1 : index
    %c0_23 = arith.constant 0 : index
    %c0_24 = arith.constant 0 : index
    %39 = vector.load %arg14[%c1_22, %c0_23, %c0_24] : memref<8x8x512xf32, #tpu.memory_space<vmem>>, vector<1x8x512xf32>
    %40 = vector.shape_cast %39 : vector<1x8x512xf32> to vector<8x512xf32>
    %41 = arith.truncf %35 : vector<8x128xf32> to vector<8x128xbf16>
    %c0_25 = arith.constant 0 : index
    %c0_26 = arith.constant 0 : index
    %42 = vector.load %arg3[%c0_25, %c0_26] : memref<128x512xbf16, #tpu.memory_space<vmem>>, vector<128x512xbf16>
    %cst_27 = arith.constant dense<0.000000e+00> : vector<8x512xf32>
    %43 = tpu.matmul %41, %42, %cst_27 {dimension_numbers = #tpu.dot_dimension_numbers<[1], [0], [0], [1], [0, 0, 1, 1], [], []>} : vector<8x128xbf16>, vector<128x512xbf16>, vector<8x512xf32> -> vector<8x512xf32>
    %44 = arith.addf %40, %43 : vector<8x512xf32>
    %45 = vector.extract_strided_slice %44 {offsets = [0, 0], sizes = [8, 384], strides = [1, 1]} : vector<8x512xf32> to vector<8x384xf32>
    %46 = arith.negf %45 : vector<8x384xf32>
    %47 = math.exp %46 : vector<8x384xf32>
    %cst_28 = arith.constant 1.000000e+00 : f32
    %48 = vector.broadcast %cst_28 : f32 to vector<8x384xf32>
    %49 = arith.addf %48, %47 : vector<8x384xf32>
    %50 = arith.divf %48, %49 : vector<8x384xf32>
    %51 = vector.extract_strided_slice %44 {offsets = [0, 384], sizes = [8, 128], strides = [1, 1]} : vector<8x512xf32> to vector<8x128xf32>
    %52 = math.tanh %51 : vector<8x128xf32>
    %53 = vector.extract_strided_slice %50 {offsets = [0, 0], sizes = [8, 128], strides = [1, 1]} : vector<8x384xf32> to vector<8x128xf32>
    %54 = vector.extract_strided_slice %50 {offsets = [0, 128], sizes = [8, 128], strides = [1, 1]} : vector<8x384xf32> to vector<8x128xf32>
    %55 = vector.extract_strided_slice %50 {offsets = [0, 256], sizes = [8, 128], strides = [1, 1]} : vector<8x384xf32> to vector<8x128xf32>
    %56 = arith.mulf %54, %33 : vector<8x128xf32>
    %57 = arith.mulf %53, %52 : vector<8x128xf32>
    %58 = arith.addf %56, %57 : vector<8x128xf32>
    %59 = math.tanh %58 : vector<8x128xf32>
    %60 = arith.mulf %55, %59 : vector<8x128xf32>
    %c2 = arith.constant 2 : index
    %c0_29 = arith.constant 0 : index
    %c0_30 = arith.constant 0 : index
    %61 = vector.load %arg15[%c2, %c0_29, %c0_30] : memref<9x8x128xf32, #tpu.memory_space<vmem>>, vector<1x8x128xf32>
    %62 = vector.shape_cast %61 : vector<1x8x128xf32> to vector<8x128xf32>
    %63 = vector.shape_cast %60 : vector<8x128xf32> to vector<1x8x128xf32>
    tpu.vector_store %arg15[%c2, %c0_29, %c0_30], %63 {strides = array<i32>} : memref<9x8x128xf32, #tpu.memory_space<vmem>>, vector<1x8x128xf32>,
    %c2_31 = arith.constant 2 : index
    %c0_32 = arith.constant 0 : index
    %c0_33 = arith.constant 0 : index
    %64 = vector.load %arg14[%c2_31, %c0_32, %c0_33] : memref<8x8x512xf32, #tpu.memory_space<vmem>>, vector<1x8x512xf32>
    %65 = vector.shape_cast %64 : vector<1x8x512xf32> to vector<8x512xf32>
    %66 = arith.truncf %60 : vector<8x128xf32> to vector<8x128xbf16>
    %c0_34 = arith.constant 0 : index
    %c0_35 = arith.constant 0 : index
    %67 = vector.load %arg3[%c0_34, %c0_35] : memref<128x512xbf16, #tpu.memory_space<vmem>>, vector<128x512xbf16>
    %cst_36 = arith.constant dense<0.000000e+00> : vector<8x512xf32>
    %68 = tpu.matmul %66, %67, %cst_36 {dimension_numbers = #tpu.dot_dimension_numbers<[1], [0], [0], [1], [0, 0, 1, 1], [], []>} : vector<8x128xbf16>, vector<128x512xbf16>, vector<8x512xf32> -> vector<8x512xf32>
    %69 = arith.addf %65, %68 : vector<8x512xf32>
    %70 = vector.extract_strided_slice %69 {offsets = [0, 0], sizes = [8, 384], strides = [1, 1]} : vector<8x512xf32> to vector<8x384xf32>
    %71 = arith.negf %70 : vector<8x384xf32>
    %72 = math.exp %71 : vector<8x384xf32>
    %cst_37 = arith.constant 1.000000e+00 : f32
    %73 = vector.broadcast %cst_37 : f32 to vector<8x384xf32>
    %74 = arith.addf %73, %72 : vector<8x384xf32>
    %75 = arith.divf %73, %74 : vector<8x384xf32>
    %76 = vector.extract_strided_slice %69 {offsets = [0, 384], sizes = [8, 128], strides = [1, 1]} : vector<8x512xf32> to vector<8x128xf32>
    %77 = math.tanh %76 : vector<8x128xf32>
    %78 = vector.extract_strided_slice %75 {offsets = [0, 0], sizes = [8, 128], strides = [1, 1]} : vector<8x384xf32> to vector<8x128xf32>
    %79 = vector.extract_strided_slice %75 {offsets = [0, 128], sizes = [8, 128], strides = [1, 1]} : vector<8x384xf32> to vector<8x128xf32>
    %80 = vector.extract_strided_slice %75 {offsets = [0, 256], sizes = [8, 128], strides = [1, 1]} : vector<8x384xf32> to vector<8x128xf32>
    %81 = arith.mulf %79, %58 : vector<8x128xf32>
    %82 = arith.mulf %78, %77 : vector<8x128xf32>
    %83 = arith.addf %81, %82 : vector<8x128xf32>
    %84 = math.tanh %83 : vector<8x128xf32>
    %85 = arith.mulf %80, %84 : vector<8x128xf32>
    %c3 = arith.constant 3 : index
    %c0_38 = arith.constant 0 : index
    %c0_39 = arith.constant 0 : index
    %86 = vector.load %arg15[%c3, %c0_38, %c0_39] : memref<9x8x128xf32, #tpu.memory_space<vmem>>, vector<1x8x128xf32>
    %87 = vector.shape_cast %86 : vector<1x8x128xf32> to vector<8x128xf32>
    %88 = vector.shape_cast %85 : vector<8x128xf32> to vector<1x8x128xf32>
    tpu.vector_store %arg15[%c3, %c0_38, %c0_39], %88 {strides = array<i32>} : memref<9x8x128xf32, #tpu.memory_space<vmem>>, vector<1x8x128xf32>,
    %c3_40 = arith.constant 3 : index
    %c0_41 = arith.constant 0 : index
    %c0_42 = arith.constant 0 : index
    %89 = vector.load %arg14[%c3_40, %c0_41, %c0_42] : memref<8x8x512xf32, #tpu.memory_space<vmem>>, vector<1x8x512xf32>
    %90 = vector.shape_cast %89 : vector<1x8x512xf32> to vector<8x512xf32>
    %91 = arith.truncf %85 : vector<8x128xf32> to vector<8x128xbf16>
    %c0_43 = arith.constant 0 : index
    %c0_44 = arith.constant 0 : index
    %92 = vector.load %arg3[%c0_43, %c0_44] : memref<128x512xbf16, #tpu.memory_space<vmem>>, vector<128x512xbf16>
    %cst_45 = arith.constant dense<0.000000e+00> : vector<8x512xf32>
    %93 = tpu.matmul %91, %92, %cst_45 {dimension_numbers = #tpu.dot_dimension_numbers<[1], [0], [0], [1], [0, 0, 1, 1], [], []>} : vector<8x128xbf16>, vector<128x512xbf16>, vector<8x512xf32> -> vector<8x512xf32>
    %94 = arith.addf %90, %93 : vector<8x512xf32>
    %95 = vector.extract_strided_slice %94 {offsets = [0, 0], sizes = [8, 384], strides = [1, 1]} : vector<8x512xf32> to vector<8x384xf32>
    %96 = arith.negf %95 : vector<8x384xf32>
    %97 = math.exp %96 : vector<8x384xf32>
    %cst_46 = arith.constant 1.000000e+00 : f32
    %98 = vector.broadcast %cst_46 : f32 to vector<8x384xf32>
    %99 = arith.addf %98, %97 : vector<8x384xf32>
    %100 = arith.divf %98, %99 : vector<8x384xf32>
    %101 = vector.extract_strided_slice %94 {offsets = [0, 384], sizes = [8, 128], strides = [1, 1]} : vector<8x512xf32> to vector<8x128xf32>
    %102 = math.tanh %101 : vector<8x128xf32>
    %103 = vector.extract_strided_slice %100 {offsets = [0, 0], sizes = [8, 128], strides = [1, 1]} : vector<8x384xf32> to vector<8x128xf32>
    %104 = vector.extract_strided_slice %100 {offsets = [0, 128], sizes = [8, 128], strides = [1, 1]} : vector<8x384xf32> to vector<8x128xf32>
    %105 = vector.extract_strided_slice %100 {offsets = [0, 256], sizes = [8, 128], strides = [1, 1]} : vector<8x384xf32> to vector<8x128xf32>
    %106 = arith.mulf %104, %83 : vector<8x128xf32>
    %107 = arith.mulf %103, %102 : vector<8x128xf32>
    %108 = arith.addf %106, %107 : vector<8x128xf32>
    %109 = math.tanh %108 : vector<8x128xf32>
    %110 = arith.mulf %105, %109 : vector<8x128xf32>
    %c4 = arith.constant 4 : index
    %c0_47 = arith.constant 0 : index
    %c0_48 = arith.constant 0 : index
    %111 = vector.load %arg15[%c4, %c0_47, %c0_48] : memref<9x8x128xf32, #tpu.memory_space<vmem>>, vector<1x8x128xf32>
    %112 = vector.shape_cast %111 : vector<1x8x128xf32> to vector<8x128xf32>
    %113 = vector.shape_cast %110 : vector<8x128xf32> to vector<1x8x128xf32>
    tpu.vector_store %arg15[%c4, %c0_47, %c0_48], %113 {strides = array<i32>} : memref<9x8x128xf32, #tpu.memory_space<vmem>>, vector<1x8x128xf32>,
    %c4_49 = arith.constant 4 : index
    %c0_50 = arith.constant 0 : index
    %c0_51 = arith.constant 0 : index
    %114 = vector.load %arg14[%c4_49, %c0_50, %c0_51] : memref<8x8x512xf32, #tpu.memory_space<vmem>>, vector<1x8x512xf32>
    %115 = vector.shape_cast %114 : vector<1x8x512xf32> to vector<8x512xf32>
    %116 = arith.truncf %110 : vector<8x128xf32> to vector<8x128xbf16>
    %c0_52 = arith.constant 0 : index
    %c0_53 = arith.constant 0 : index
    %117 = vector.load %arg3[%c0_52, %c0_53] : memref<128x512xbf16, #tpu.memory_space<vmem>>, vector<128x512xbf16>
    %cst_54 = arith.constant dense<0.000000e+00> : vector<8x512xf32>
    %118 = tpu.matmul %116, %117, %cst_54 {dimension_numbers = #tpu.dot_dimension_numbers<[1], [0], [0], [1], [0, 0, 1, 1], [], []>} : vector<8x128xbf16>, vector<128x512xbf16>, vector<8x512xf32> -> vector<8x512xf32>
    %119 = arith.addf %115, %118 : vector<8x512xf32>
    %120 = vector.extract_strided_slice %119 {offsets = [0, 0], sizes = [8, 384], strides = [1, 1]} : vector<8x512xf32> to vector<8x384xf32>
    %121 = arith.negf %120 : vector<8x384xf32>
    %122 = math.exp %121 : vector<8x384xf32>
    %cst_55 = arith.constant 1.000000e+00 : f32
    %123 = vector.broadcast %cst_55 : f32 to vector<8x384xf32>
    %124 = arith.addf %123, %122 : vector<8x384xf32>
    %125 = arith.divf %123, %124 : vector<8x384xf32>
    %126 = vector.extract_strided_slice %119 {offsets = [0, 384], sizes = [8, 128], strides = [1, 1]} : vector<8x512xf32> to vector<8x128xf32>
    %127 = math.tanh %126 : vector<8x128xf32>
    %128 = vector.extract_strided_slice %125 {offsets = [0, 0], sizes = [8, 128], strides = [1, 1]} : vector<8x384xf32> to vector<8x128xf32>
    %129 = vector.extract_strided_slice %125 {offsets = [0, 128], sizes = [8, 128], strides = [1, 1]} : vector<8x384xf32> to vector<8x128xf32>
    %130 = vector.extract_strided_slice %125 {offsets = [0, 256], sizes = [8, 128], strides = [1, 1]} : vector<8x384xf32> to vector<8x128xf32>
    %131 = arith.mulf %129, %108 : vector<8x128xf32>
    %132 = arith.mulf %128, %127 : vector<8x128xf32>
    %133 = arith.addf %131, %132 : vector<8x128xf32>
    %134 = math.tanh %133 : vector<8x128xf32>
    %135 = arith.mulf %130, %134 : vector<8x128xf32>
    %c5 = arith.constant 5 : index
    %c0_56 = arith.constant 0 : index
    %c0_57 = arith.constant 0 : index
    %136 = vector.load %arg15[%c5, %c0_56, %c0_57] : memref<9x8x128xf32, #tpu.memory_space<vmem>>, vector<1x8x128xf32>
    %137 = vector.shape_cast %136 : vector<1x8x128xf32> to vector<8x128xf32>
    %138 = vector.shape_cast %135 : vector<8x128xf32> to vector<1x8x128xf32>
    tpu.vector_store %arg15[%c5, %c0_56, %c0_57], %138 {strides = array<i32>} : memref<9x8x128xf32, #tpu.memory_space<vmem>>, vector<1x8x128xf32>,
    %c5_58 = arith.constant 5 : index
    %c0_59 = arith.constant 0 : index
    %c0_60 = arith.constant 0 : index
    %139 = vector.load %arg14[%c5_58, %c0_59, %c0_60] : memref<8x8x512xf32, #tpu.memory_space<vmem>>, vector<1x8x512xf32>
    %140 = vector.shape_cast %139 : vector<1x8x512xf32> to vector<8x512xf32>
    %141 = arith.truncf %135 : vector<8x128xf32> to vector<8x128xbf16>
    %c0_61 = arith.constant 0 : index
    %c0_62 = arith.constant 0 : index
    %142 = vector.load %arg3[%c0_61, %c0_62] : memref<128x512xbf16, #tpu.memory_space<vmem>>, vector<128x512xbf16>
    %cst_63 = arith.constant dense<0.000000e+00> : vector<8x512xf32>
    %143 = tpu.matmul %141, %142, %cst_63 {dimension_numbers = #tpu.dot_dimension_numbers<[1], [0], [0], [1], [0, 0, 1, 1], [], []>} : vector<8x128xbf16>, vector<128x512xbf16>, vector<8x512xf32> -> vector<8x512xf32>
    %144 = arith.addf %140, %143 : vector<8x512xf32>
    %145 = vector.extract_strided_slice %144 {offsets = [0, 0], sizes = [8, 384], strides = [1, 1]} : vector<8x512xf32> to vector<8x384xf32>
    %146 = arith.negf %145 : vector<8x384xf32>
    %147 = math.exp %146 : vector<8x384xf32>
    %cst_64 = arith.constant 1.000000e+00 : f32
    %148 = vector.broadcast %cst_64 : f32 to vector<8x384xf32>
    %149 = arith.addf %148, %147 : vector<8x384xf32>
    %150 = arith.divf %148, %149 : vector<8x384xf32>
    %151 = vector.extract_strided_slice %144 {offsets = [0, 384], sizes = [8, 128], strides = [1, 1]} : vector<8x512xf32> to vector<8x128xf32>
    %152 = math.tanh %151 : vector<8x128xf32>
    %153 = vector.extract_strided_slice %150 {offsets = [0, 0], sizes = [8, 128], strides = [1, 1]} : vector<8x384xf32> to vector<8x128xf32>
    %154 = vector.extract_strided_slice %150 {offsets = [0, 128], sizes = [8, 128], strides = [1, 1]} : vector<8x384xf32> to vector<8x128xf32>
    %155 = vector.extract_strided_slice %150 {offsets = [0, 256], sizes = [8, 128], strides = [1, 1]} : vector<8x384xf32> to vector<8x128xf32>
    %156 = arith.mulf %154, %133 : vector<8x128xf32>
    %157 = arith.mulf %153, %152 : vector<8x128xf32>
    %158 = arith.addf %156, %157 : vector<8x128xf32>
    %159 = math.tanh %158 : vector<8x128xf32>
    %160 = arith.mulf %155, %159 : vector<8x128xf32>
    %c6 = arith.constant 6 : index
    %c0_65 = arith.constant 0 : index
    %c0_66 = arith.constant 0 : index
    %161 = vector.load %arg15[%c6, %c0_65, %c0_66] : memref<9x8x128xf32, #tpu.memory_space<vmem>>, vector<1x8x128xf32>
    %162 = vector.shape_cast %161 : vector<1x8x128xf32> to vector<8x128xf32>
    %163 = vector.shape_cast %160 : vector<8x128xf32> to vector<1x8x128xf32>
    tpu.vector_store %arg15[%c6, %c0_65, %c0_66], %163 {strides = array<i32>} : memref<9x8x128xf32, #tpu.memory_space<vmem>>, vector<1x8x128xf32>,
    %c6_67 = arith.constant 6 : index
    %c0_68 = arith.constant 0 : index
    %c0_69 = arith.constant 0 : index
    %164 = vector.load %arg14[%c6_67, %c0_68, %c0_69] : memref<8x8x512xf32, #tpu.memory_space<vmem>>, vector<1x8x512xf32>
    %165 = vector.shape_cast %164 : vector<1x8x512xf32> to vector<8x512xf32>
    %166 = arith.truncf %160 : vector<8x128xf32> to vector<8x128xbf16>
    %c0_70 = arith.constant 0 : index
    %c0_71 = arith.constant 0 : index
    %167 = vector.load %arg3[%c0_70, %c0_71] : memref<128x512xbf16, #tpu.memory_space<vmem>>, vector<128x512xbf16>
    %cst_72 = arith.constant dense<0.000000e+00> : vector<8x512xf32>
    %168 = tpu.matmul %166, %167, %cst_72 {dimension_numbers = #tpu.dot_dimension_numbers<[1], [0], [0], [1], [0, 0, 1, 1], [], []>} : vector<8x128xbf16>, vector<128x512xbf16>, vector<8x512xf32> -> vector<8x512xf32>
    %169 = arith.addf %165, %168 : vector<8x512xf32>
    %170 = vector.extract_strided_slice %169 {offsets = [0, 0], sizes = [8, 384], strides = [1, 1]} : vector<8x512xf32> to vector<8x384xf32>
    %171 = arith.negf %170 : vector<8x384xf32>
    %172 = math.exp %171 : vector<8x384xf32>
    %cst_73 = arith.constant 1.000000e+00 : f32
    %173 = vector.broadcast %cst_73 : f32 to vector<8x384xf32>
    %174 = arith.addf %173, %172 : vector<8x384xf32>
    %175 = arith.divf %173, %174 : vector<8x384xf32>
    %176 = vector.extract_strided_slice %169 {offsets = [0, 384], sizes = [8, 128], strides = [1, 1]} : vector<8x512xf32> to vector<8x128xf32>
    %177 = math.tanh %176 : vector<8x128xf32>
    %178 = vector.extract_strided_slice %175 {offsets = [0, 0], sizes = [8, 128], strides = [1, 1]} : vector<8x384xf32> to vector<8x128xf32>
    %179 = vector.extract_strided_slice %175 {offsets = [0, 128], sizes = [8, 128], strides = [1, 1]} : vector<8x384xf32> to vector<8x128xf32>
    %180 = vector.extract_strided_slice %175 {offsets = [0, 256], sizes = [8, 128], strides = [1, 1]} : vector<8x384xf32> to vector<8x128xf32>
    %181 = arith.mulf %179, %158 : vector<8x128xf32>
    %182 = arith.mulf %178, %177 : vector<8x128xf32>
    %183 = arith.addf %181, %182 : vector<8x128xf32>
    %184 = math.tanh %183 : vector<8x128xf32>
    %185 = arith.mulf %180, %184 : vector<8x128xf32>
    %c7 = arith.constant 7 : index
    %c0_74 = arith.constant 0 : index
    %c0_75 = arith.constant 0 : index
    %186 = vector.load %arg15[%c7, %c0_74, %c0_75] : memref<9x8x128xf32, #tpu.memory_space<vmem>>, vector<1x8x128xf32>
    %187 = vector.shape_cast %186 : vector<1x8x128xf32> to vector<8x128xf32>
    %188 = vector.shape_cast %185 : vector<8x128xf32> to vector<1x8x128xf32>
    tpu.vector_store %arg15[%c7, %c0_74, %c0_75], %188 {strides = array<i32>} : memref<9x8x128xf32, #tpu.memory_space<vmem>>, vector<1x8x128xf32>,
    %c7_76 = arith.constant 7 : index
    %c0_77 = arith.constant 0 : index
    %c0_78 = arith.constant 0 : index
    %189 = vector.load %arg14[%c7_76, %c0_77, %c0_78] : memref<8x8x512xf32, #tpu.memory_space<vmem>>, vector<1x8x512xf32>
    %190 = vector.shape_cast %189 : vector<1x8x512xf32> to vector<8x512xf32>
    %191 = arith.truncf %185 : vector<8x128xf32> to vector<8x128xbf16>
    %c0_79 = arith.constant 0 : index
    %c0_80 = arith.constant 0 : index
    %192 = vector.load %arg3[%c0_79, %c0_80] : memref<128x512xbf16, #tpu.memory_space<vmem>>, vector<128x512xbf16>
    %cst_81 = arith.constant dense<0.000000e+00> : vector<8x512xf32>
    %193 = tpu.matmul %191, %192, %cst_81 {dimension_numbers = #tpu.dot_dimension_numbers<[1], [0], [0], [1], [0, 0, 1, 1], [], []>} : vector<8x128xbf16>, vector<128x512xbf16>, vector<8x512xf32> -> vector<8x512xf32>
    %194 = arith.addf %190, %193 : vector<8x512xf32>
    %195 = vector.extract_strided_slice %194 {offsets = [0, 0], sizes = [8, 384], strides = [1, 1]} : vector<8x512xf32> to vector<8x384xf32>
    %196 = arith.negf %195 : vector<8x384xf32>
    %197 = math.exp %196 : vector<8x384xf32>
    %cst_82 = arith.constant 1.000000e+00 : f32
    %198 = vector.broadcast %cst_82 : f32 to vector<8x384xf32>
    %199 = arith.addf %198, %197 : vector<8x384xf32>
    %200 = arith.divf %198, %199 : vector<8x384xf32>
    %201 = vector.extract_strided_slice %194 {offsets = [0, 384], sizes = [8, 128], strides = [1, 1]} : vector<8x512xf32> to vector<8x128xf32>
    %202 = math.tanh %201 : vector<8x128xf32>
    %203 = vector.extract_strided_slice %200 {offsets = [0, 0], sizes = [8, 128], strides = [1, 1]} : vector<8x384xf32> to vector<8x128xf32>
    %204 = vector.extract_strided_slice %200 {offsets = [0, 128], sizes = [8, 128], strides = [1, 1]} : vector<8x384xf32> to vector<8x128xf32>
    %205 = vector.extract_strided_slice %200 {offsets = [0, 256], sizes = [8, 128], strides = [1, 1]} : vector<8x384xf32> to vector<8x128xf32>
    %206 = arith.mulf %204, %183 : vector<8x128xf32>
    %207 = arith.mulf %203, %202 : vector<8x128xf32>
    %208 = arith.addf %206, %207 : vector<8x128xf32>
    %209 = math.tanh %208 : vector<8x128xf32>
    %210 = arith.mulf %205, %209 : vector<8x128xf32>
    %c8 = arith.constant 8 : index
    %c0_83 = arith.constant 0 : index
    %c0_84 = arith.constant 0 : index
    %211 = vector.load %arg15[%c8, %c0_83, %c0_84] : memref<9x8x128xf32, #tpu.memory_space<vmem>>, vector<1x8x128xf32>
    %212 = vector.shape_cast %211 : vector<1x8x128xf32> to vector<8x128xf32>
    %213 = vector.shape_cast %210 : vector<8x128xf32> to vector<1x8x128xf32>
    tpu.vector_store %arg15[%c8, %c0_83, %c0_84], %213 {strides = array<i32>} : memref<9x8x128xf32, #tpu.memory_space<vmem>>, vector<1x8x128xf32>,
    %c0_85 = arith.constant 0 : index
    %c0_86 = arith.constant 0 : index
    %c0_87 = arith.constant 0 : index
    %214 = vector.load %arg15[%c0_85, %c0_86, %c0_87] : memref<9x8x128xf32, #tpu.memory_space<vmem>>, vector<9x8x128xf32>
    %215 = vector.shape_cast %214 : vector<9x8x128xf32> to vector<72x128xf32>
    %216 = arith.truncf %215 : vector<72x128xf32> to vector<72x128xbf16>
    %c0_88 = arith.constant 0 : index
    %c0_89 = arith.constant 0 : index
    %217 = vector.load %arg4[%c0_88, %c0_89] : memref<128x128xbf16, #tpu.memory_space<vmem>>, vector<128x128xbf16>
    %cst_90 = arith.constant dense<0.000000e+00> : vector<72x128xf32>
    %218 = tpu.matmul %216, %217, %cst_90 {dimension_numbers = #tpu.dot_dimension_numbers<[1], [0], [0], [1], [0, 0, 1, 1], [], []>} : vector<72x128xbf16>, vector<128x128xbf16>, vector<72x128xf32> -> vector<72x128xf32>
    %c0_91 = arith.constant 0 : index
    %c0_92 = arith.constant 0 : index
    %219 = vector.load %arg5[%c0_91, %c0_92] : memref<1x128xf32, #tpu.memory_space<vmem>>, vector<1x128xf32>
    %220 = vector.broadcast %219 : vector<1x128xf32> to vector<72x128xf32>
    %221 = arith.addf %218, %220 : vector<72x128xf32>
    %cst_93 = arith.constant 0.000000e+00 : f32
    %222 = vector.broadcast %cst_93 : f32 to vector<72x128xf32>
    %223 = arith.maximumf %221, %222 : vector<72x128xf32>
    %224 = arith.truncf %223 : vector<72x128xf32> to vector<72x128xbf16>
    %c0_94 = arith.constant 0 : index
    %c0_95 = arith.constant 0 : index
    %225 = vector.load %arg6[%c0_94, %c0_95] : memref<128x32xbf16, #tpu.memory_space<vmem>>, vector<128x32xbf16>
    %cst_96 = arith.constant dense<0.000000e+00> : vector<72x32xf32>
    %226 = tpu.matmul %224, %225, %cst_96 {dimension_numbers = #tpu.dot_dimension_numbers<[1], [0], [0], [1], [0, 0, 1, 1], [], []>} : vector<72x128xbf16>, vector<128x32xbf16>, vector<72x32xf32> -> vector<72x32xf32>
    %c0_97 = arith.constant 0 : index
    %c0_98 = arith.constant 0 : index
    %227 = vector.load %arg7[%c0_97, %c0_98] : memref<1x32xf32, #tpu.memory_space<vmem>>, vector<1x32xf32>
    %228 = vector.broadcast %227 : vector<1x32xf32> to vector<72x32xf32>
    %229 = arith.addf %226, %228 : vector<72x32xf32>
    %c0_99 = arith.constant 0 : index
    %c0_100 = arith.constant 0 : index
    %230 = vector.load %arg11[%c0_99, %c0_100] : memref<72x32xf32, #tpu.memory_space<vmem>>, vector<72x32xf32>
    tpu.vector_store %arg11[%c0_99, %c0_100], %229 {strides = array<i32>} : memref<72x32xf32, #tpu.memory_space<vmem>>, vector<72x32xf32>,
    %231 = vector.extract_strided_slice %229 {offsets = [64, 0], sizes = [8, 32], strides = [1, 1]} : vector<72x32xf32> to vector<8x32xf32>
    %c0_101 = arith.constant 0 : index
    %c0_102 = arith.constant 0 : index
    %232 = vector.load %arg8[%c0_101, %c0_102] : memref<8x32xf32, #tpu.memory_space<vmem>>, vector<8x32xf32>
    %c0_103 = arith.constant 0 : index
    %c0_104 = arith.constant 0 : index
    %233 = vector.load %arg9[%c0_103, %c0_104] : memref<8x32xf32, #tpu.memory_space<vmem>>, vector<8x32xf32>
    %cst_105 = arith.constant 1.000000e-01 : f32
    %234 = vector.broadcast %cst_105 : f32 to vector<8x32xf32>
    %235 = arith.mulf %234, %233 : vector<8x32xf32>
    %236 = arith.addf %232, %235 : vector<8x32xf32>
    %cst_106 = arith.constant 0.000000e+00 : f32
    %237 = vector.broadcast %cst_106 : f32 to vector<8x64xf32>
    %238 = tpu.concatenate %236, %231, %237 in 1 : vector<8x32xf32>, vector<8x32xf32>, vector<8x64xf32> -> vector<8x128xf32>
    %c0_107 = arith.constant 0 : index
    %c0_108 = arith.constant 0 : index
    %239 = vector.load %arg12[%c0_107, %c0_108] : memref<8x128xf32, #tpu.memory_space<vmem>>, vector<8x128xf32>
    tpu.vector_store %arg12[%c0_107, %c0_108], %238 {strides = array<i32>} : memref<8x128xf32, #tpu.memory_space<vmem>>, vector<8x128xf32>,
    %240 = vector.shape_cast %229 : vector<72x32xf32> to vector<9x8x32xf32>
    %241 = vector.shape_cast %232 : vector<8x32xf32> to vector<1x8x32xf32>
    %242 = vector.broadcast %241 : vector<1x8x32xf32> to vector<9x8x32xf32>
    %243 = arith.subf %240, %242 : vector<9x8x32xf32>
    %244 = arith.mulf %243, %243 : vector<9x8x32xf32>
    %cst_109 = arith.constant dense<0.000000e+00> : vector<9x8xf32>
    %245 = vector.multi_reduction <add>, %244, %cst_109 [2] : vector<9x8x32xf32> to vector<9x8xf32>
    %c0_110 = arith.constant 0 : index
    %c0_111 = arith.constant 0 : index
    %246 = vector.load %arg10[%c0_110, %c0_111] : memref<9x8xf32, #tpu.memory_space<vmem>>, vector<9x8xf32>
    %247 = arith.mulf %245, %246 : vector<9x8xf32>
    %cst_112 = arith.constant dense<0.000000e+00> : vector<9xf32>
    %248 = vector.multi_reduction <add>, %247, %cst_112 [1] : vector<9x8xf32> to vector<9xf32>
    %249 = vector.shape_cast %248 : vector<9xf32> to vector<9x1xf32>
    %cst_113 = arith.constant dense<0.000000e+00> : vector<1xf32>
    %250 = vector.multi_reduction <add>, %249, %cst_113 [0] : vector<9x1xf32> to vector<1xf32>
    %251 = vector.shape_cast %250 : vector<1xf32> to vector<1x1xf32>
    %c0_114 = arith.constant 0 : index
    %c0_115 = arith.constant 0 : index
    %252 = vector.load %arg10[%c0_114, %c0_115] : memref<9x8xf32, #tpu.memory_space<vmem>>, vector<9x8xf32>
    %cst_116 = arith.constant dense<0.000000e+00> : vector<9xf32>
    %253 = vector.multi_reduction <add>, %252, %cst_116 [1] : vector<9x8xf32> to vector<9xf32>
    %254 = vector.shape_cast %253 : vector<9xf32> to vector<9x1xf32>
    %cst_117 = arith.constant dense<0.000000e+00> : vector<1xf32>
    %255 = vector.multi_reduction <add>, %254, %cst_117 [0] : vector<9x1xf32> to vector<1xf32>
    %256 = vector.shape_cast %255 : vector<1xf32> to vector<1x1xf32>
    %257 = arith.divf %251, %256 : vector<1x1xf32>
    %258 = tpu.iota {dimensions = array<i32: 0>} : vector<8x1xi32>
    %c4_i32 = arith.constant 4 : i32
    %259 = vector.broadcast %c4_i32 : i32 to vector<8x1xi32>
    %260 = arith.cmpi slt, %258, %259 : vector<8x1xi32>
    %261 = arith.extui %260 : vector<8x1xi1> to vector<8x1xi32>
    %262 = arith.sitofp %261 : vector<8x1xi32> to vector<8x1xf32>
    %263 = arith.mulf %232, %232 : vector<8x32xf32>
    %cst_118 = arith.constant dense<0.000000e+00> : vector<8xf32>
    %264 = vector.multi_reduction <add>, %263, %cst_118 [1] : vector<8x32xf32> to vector<8xf32>
    %265 = vector.shape_cast %264 : vector<8xf32> to vector<8x1xf32>
    %cst_119 = arith.constant 1.000000e+01 : f32
    %266 = vector.broadcast %cst_119 : f32 to vector<8x1xf32>
    %267 = arith.maximumf %265, %266 : vector<8x1xf32>
    %268 = arith.mulf %267, %262 : vector<8x1xf32>
    %cst_120 = arith.constant dense<0.000000e+00> : vector<1xf32>
    %269 = vector.multi_reduction <add>, %268, %cst_120 [0] : vector<8x1xf32> to vector<1xf32>
    %270 = vector.shape_cast %269 : vector<1xf32> to vector<1x1xf32>
    %cst_121 = arith.constant 4.000000e+00 : f32
    %271 = vector.broadcast %cst_121 : f32 to vector<1x1xf32>
    %272 = arith.divf %270, %271 : vector<1x1xf32>
    %273 = tpu.iota {dimensions = array<i32: 1>} : vector<1x128xi32>
    %c0_i32 = arith.constant 0 : i32
    %274 = vector.broadcast %c0_i32 : i32 to vector<1x128xi32>
    %275 = arith.cmpi eq, %273, %274 : vector<1x128xi32>
    %c1_i32 = arith.constant 1 : i32
    %276 = vector.broadcast %c1_i32 : i32 to vector<1x128xi32>
    %277 = arith.cmpi eq, %273, %276 : vector<1x128xi32>
    %cst_122 = arith.constant 0.000000e+00 : f32
    %278 = vector.shape_cast %272 : vector<1x1xf32> to vector<1x1xf32>
    %279 = vector.broadcast %278 : vector<1x1xf32> to vector<1x128xf32>
    %280 = vector.broadcast %cst_122 : f32 to vector<1x128xf32>
    %281 = arith.select %277, %279, %280 : vector<1x128xi1>, vector<1x128xf32>
    %282 = vector.shape_cast %257 : vector<1x1xf32> to vector<1x1xf32>
    %283 = vector.broadcast %282 : vector<1x1xf32> to vector<1x128xf32>
    %284 = arith.select %275, %283, %281 : vector<1x128xi1>, vector<1x128xf32>
    %c0_123 = arith.constant 0 : index
    %c0_124 = arith.constant 0 : index
    %285 = vector.load %arg13[%c0_123, %c0_124] : memref<1x128xf32, #tpu.memory_space<vmem>>, vector<1x128xf32>
    tpu.vector_store %arg13[%c0_123, %c0_124], %284 {strides = array<i32>} : memref<1x128xf32, #tpu.memory_space<vmem>>, vector<1x128xf32>,
    return
  }
}

</mosaic_0001>

<llo_original>
// kernel: encoder_decoder_forward.1
$region0: #{encoder_decoder_forward.1}
  #allocation0 [shape = 'u32[]', space=smem, size = 0x4, offset = 0x4, fixed_abs, tag = 'smem constant byte address 0x4 - core index']
  #allocation1 [shape = 'u32[72,128]{1,0:T(1,128)}', space=vmem, size = 0x9000, scoped, tag = 'internal scratch']
  #allocation2 [shape = 'f32[8,8,512]{2,1,0:T(8,128)}', space=vmem, size = 0x20000, scoped, tag = 'scratch operand']
  #allocation3 [shape = 'f32[9,8,128]{2,1,0:T(8,128)}', space=vmem, size = 0x9000, scoped, tag = 'scratch operand']
  %s0 = inlined_call_operand.vmem [shape: f32[64,16], index: 0, kind: input, shape index: {}]
  %s1 = inlined_call_operand.vmem [shape: bf16[16,512], index: 1, kind: input, shape index: {}]
  %s2 = inlined_call_operand.vmem [shape: f32[1,512], index: 2, kind: input, shape index: {}]
  %s3 = inlined_call_operand.vmem [shape: bf16[128,512], index: 3, kind: input, shape index: {}]
  %s4 = inlined_call_operand.vmem [shape: bf16[128,128], index: 4, kind: input, shape index: {}]
  %s5 = inlined_call_operand.vmem [shape: f32[1,128], index: 5, kind: input, shape index: {}]
  %s6 = inlined_call_operand.vmem [shape: bf16[128,32], index: 6, kind: input, shape index: {}]
  %s7 = inlined_call_operand.vmem [shape: f32[1,32], index: 7, kind: input, shape index: {}]
  %s8 = inlined_call_operand.vmem [shape: f32[8,32], index: 8, kind: input, shape index: {}]
  %s9 = inlined_call_operand.vmem [shape: f32[8,32], index: 9, kind: input, shape index: {}]
  %s10 = inlined_call_operand.vmem [shape: f32[9,8], index: 10, kind: input, shape index: {}]
  %s11 = inlined_call_operand.vmem [shape: f32[72,32], index: 11, kind: output, shape index: {0}]
  %s12 = inlined_call_operand.vmem [shape: f32[8,128], index: 12, kind: output, shape index: {1}]
  %s13 = inlined_call_operand.vmem [shape: f32[1,128], index: 13, kind: output, shape index: {2}]
  %14 = xla_tuple %s11, %s12, %s13
  %s15 = sld [smem:[#allocation0]]
  $region70: #{encoder_decoder_forward.1} parent=0
    _
  %s17 = ssub.s32 1, %s15
  %s18 = scalar_select 0, %s17, %s15
  // Predicated region
  $region2: #{encoder_decoder_forward.1} parent=0 // pred_check
    _
  $region3: #{encoder_decoder_forward.1} parent=0 // pred_check_branch
    %20 = sbr.rel (0) target = $region5
  $region4: #{encoder_decoder_forward.1} parent=0 // pred_region
    _
  $region5: #{encoder_decoder_forward.1} parent=0 // pred_fallthru
    _
  // Predicated region
  $region6: #{encoder_decoder_forward.1} parent=0 // pred_check
    _
  $region7: #{encoder_decoder_forward.1} parent=0 // pred_check_branch
    %22 = sbr.rel (0) target = $region9
  $region8: #{encoder_decoder_forward.1} parent=0 // pred_region
    _
  $region9: #{encoder_decoder_forward.1} parent=0 // pred_fallthru
    _
  // Predicated region
  $region10: #{encoder_decoder_forward.1} parent=0 // pred_check
    _
  $region11: #{encoder_decoder_forward.1} parent=0 // pred_check_branch
    %24 = sbr.rel (0) target = $region13
  $region12: #{encoder_decoder_forward.1} parent=0 // pred_region
    _
  $region13: #{encoder_decoder_forward.1} parent=0 // pred_fallthru
    _
  // Predicated region
  $region14: #{encoder_decoder_forward.1} parent=0 // pred_check
    _
  $region15: #{encoder_decoder_forward.1} parent=0 // pred_check_branch
    %26 = sbr.rel (0) target = $region17
  $region16: #{encoder_decoder_forward.1} parent=0 // pred_region
    _
  $region17: #{encoder_decoder_forward.1} parent=0 // pred_fallthru
    _
  // Predicated region
  $region18: #{encoder_decoder_forward.1} parent=0 // pred_check
    _
  $region19: #{encoder_decoder_forward.1} parent=0 // pred_check_branch
    %28 = sbr.rel (0) target = $region21
  $region20: #{encoder_decoder_forward.1} parent=0 // pred_region
    _
  $region21: #{encoder_decoder_forward.1} parent=0 // pred_fallthru
    _
  // Predicated region
  $region22: #{encoder_decoder_forward.1} parent=0 // pred_check
    _
  $region23: #{encoder_decoder_forward.1} parent=0 // pred_check_branch
    %30 = sbr.rel (0) target = $region25
  $region24: #{encoder_decoder_forward.1} parent=0 // pred_region
    _
  $region25: #{encoder_decoder_forward.1} parent=0 // pred_fallthru
    _
  // Predicated region
  $region26: #{encoder_decoder_forward.1} parent=0 // pred_check
    _
  $region27: #{encoder_decoder_forward.1} parent=0 // pred_check_branch
    %32 = sbr.rel (0) target = $region29
  $region28: #{encoder_decoder_forward.1} parent=0 // pred_region
    _
  $region29: #{encoder_decoder_forward.1} parent=0 // pred_fallthru
    _
  // Predicated region
  $region30: #{encoder_decoder_forward.1} parent=0 // pred_check
    _
  $region31: #{encoder_decoder_forward.1} parent=0 // pred_check_branch
    %34 = sbr.rel (0) target = $region33
  $region32: #{encoder_decoder_forward.1} parent=0 // pred_region
    _
  $region33: #{encoder_decoder_forward.1} parent=0 // pred_fallthru
    _
  // Predicated region
  $region34: #{encoder_decoder_forward.1} parent=0 // pred_check
    _
  $region35: #{encoder_decoder_forward.1} parent=0 // pred_check_branch
    %36 = sbr.rel (0) target = $region37
  $region36: #{encoder_decoder_forward.1} parent=0 // pred_region
    _
  $region37: #{encoder_decoder_forward.1} parent=0 // pred_fallthru
    _
  // Predicated region
  $region38: #{encoder_decoder_forward.1} parent=0 // pred_check
    _
  $region39: #{encoder_decoder_forward.1} parent=0 // pred_check_branch
    %38 = sbr.rel (0) target = $region41
  $region40: #{encoder_decoder_forward.1} parent=0 // pred_region
    _
  $region41: #{encoder_decoder_forward.1} parent=0 // pred_fallthru
    _
  // Predicated region
  $region42: #{encoder_decoder_forward.1} parent=0 // pred_check
    _
  $region43: #{encoder_decoder_forward.1} parent=0 // pred_check_branch
    %40 = sbr.rel (0) target = $region45
  $region44: #{encoder_decoder_forward.1} parent=0 // pred_region
    _
  $region45: #{encoder_decoder_forward.1} parent=0 // pred_fallthru
    _
  %v42 = vld [vmem:[%s0] sm:$0xff]
  %v43 = vld [vmem:[%s0 + $0x8] sm:$0xff]
  %v44 = vld [vmem:[%s0 + $0x10] sm:$0xff]
  %v45 = vld [vmem:[%s0 + $0x18] sm:$0xff]
  %v46 = vld [vmem:[%s0 + $0x20] sm:$0xff]
  %v47 = vld [vmem:[%s0 + $0x28] sm:$0xff]
  %v48 = vld [vmem:[%s0 + $0x30] sm:$0xff]
  %v49 = vld [vmem:[%s0 + $0x38] sm:$0xff]
  %v50 = vpack.c.bf16 %v43, %v42
  %v51 = vpack.c.bf16 %v45, %v44
  %v52 = vpack.c.bf16 %v47, %v46
  %v53 = vpack.c.bf16 %v49, %v48
  %v54 = vld [vmem:[%s1] sm:$0xff]
  %v55 = vld [vmem:[%s1 + $0x8] sm:$0xff]
  %v56 = vld [vmem:[%s1 + $0x10] sm:$0xff]
  %v57 = vld [vmem:[%s1 + $0x18] sm:$0xff]
  %v58 = vld [vmem:[%s2] sm:$0xf]
  %v60 = vperm.slane %v58, 0
  %v61 = vperm.slane %v58, 1
  %v62 = vperm.slane %v58, 2
  %v63 = vperm.slane %v58, 3
  %v72 = vunpack.c.l.b16 %v54
  %v73 = vunpack.c.h.b16 %v54
  %v74 = vunpack.c.l.b16 %v55
  %v75 = vunpack.c.h.b16 %v55
  %v76 = vunpack.c.l.b16 %v56
  %v77 = vunpack.c.h.b16 %v56
  %v78 = vunpack.c.l.b16 %v57
  %v79 = vunpack.c.h.b16 %v57
  %v80 = vpack.c.b16 %v76, %v72
  %v81 = vpack.c.b16 %v77, %v73
  %v82 = vpack.c.b16 %v78, %v74
  %v83 = vpack.c.b16 %v79, %v75
  %vm88 = vcmask 130048
  %v90 = vsel %vm88, %v50, 0
  %v93 = vsel %vm88, %v51, 0
  %v96 = vsel %vm88, %v52, 0
  %v99 = vsel %vm88, %v53, 0
  %101 = vmatpush.bf16.msra.mxu0 0
  %102 = vmatpush.bf16.msra.mxu0 0
  %103 = vmatpush.bf16.msra.mxu0 0
  %104 = vmatpush.bf16.msra.mxu0 0
  %105 = vmatpush.bf16.msra.mxu0 0
  %106 = vmatpush.bf16.msra.mxu0 0
  %107 = vmatpush.bf16.msra.mxu0 0
  %108 = vmatpush.bf16.msra.mxu0 %v80
  %109 = vmatmul.bf16.gmra.mxu0 %v90
  %v110 = vpop.f32.mrf.mxu0
  %v111 = vadd.f32 %v60, %v110
  %v112 = vpop.f32.mrf.mxu0
  %v113 = vadd.f32 %v60, %v112
  %114 = vmatmul.bf16.gmra.mxu0 %v93
  %v115 = vpop.f32.mrf.mxu0
  %v116 = vadd.f32 %v60, %v115
  %v117 = vpop.f32.mrf.mxu0
  %v118 = vadd.f32 %v60, %v117
  %119 = vmatmul.bf16.gmra.mxu0 %v96
  %v120 = vpop.f32.mrf.mxu0
  %v121 = vadd.f32 %v60, %v120
  %v122 = vpop.f32.mrf.mxu0
  %v123 = vadd.f32 %v60, %v122
  %124 = vmatmul.bf16.gmra.mxu0 %v99
  %v125 = vpop.f32.mrf.mxu0
  %v126 = vadd.f32 %v60, %v125
  %v127 = vpop.f32.mrf.mxu0
  %v128 = vadd.f32 %v60, %v127
  %129 = vdwg.mxu0
  %130 = vmatpush.bf16.msra.mxu0 0
  %131 = vmatpush.bf16.msra.mxu0 0
  %132 = vmatpush.bf16.msra.mxu0 0
  %133 = vmatpush.bf16.msra.mxu0 0
  %134 = vmatpush.bf16.msra.mxu0 0
  %135 = vmatpush.bf16.msra.mxu0 0
  %136 = vmatpush.bf16.msra.mxu0 0
  %137 = vmatpush.bf16.msra.mxu0 %v81
  %138 = vmatmul.bf16.gmra.mxu0 %v90
  %v139 = vpop.f32.mrf.mxu0
  %v140 = vadd.f32 %v61, %v139
  %v141 = vpop.f32.mrf.mxu0
  %v142 = vadd.f32 %v61, %v141
  %143 = vmatmul.bf16.gmra.mxu0 %v93
  %v144 = vpop.f32.mrf.mxu0
  %v145 = vadd.f32 %v61, %v144
  %v146 = vpop.f32.mrf.mxu0
  %v147 = vadd.f32 %v61, %v146
  %148 = vmatmul.bf16.gmra.mxu0 %v96
  %v149 = vpop.f32.mrf.mxu0
  %v150 = vadd.f32 %v61, %v149
  %v151 = vpop.f32.mrf.mxu0
  %v152 = vadd.f32 %v61, %v151
  %153 = vmatmul.bf16.gmra.mxu0 %v99
  %v154 = vpop.f32.mrf.mxu0
  %v155 = vadd.f32 %v61, %v154
  %v156 = vpop.f32.mrf.mxu0
  %v157 = vadd.f32 %v61, %v156
  %158 = vdwg.mxu0
  %159 = vmatpush.bf16.msra.mxu0 0
  %160 = vmatpush.bf16.msra.mxu0 0
  %161 = vmatpush.bf16.msra.mxu0 0
  %162 = vmatpush.bf16.msra.mxu0 0
  %163 = vmatpush.bf16.msra.mxu0 0
  %164 = vmatpush.bf16.msra.mxu0 0
  %165 = vmatpush.bf16.msra.mxu0 0
  %166 = vmatpush.bf16.msra.mxu0 %v82
  %167 = vmatmul.bf16.gmra.mxu0 %v90
  %v168 = vpop.f32.mrf.mxu0
  %v169 = vadd.f32 %v62, %v168
  %v170 = vpop.f32.mrf.mxu0
  %v171 = vadd.f32 %v62, %v170
  %172 = vmatmul.bf16.gmra.mxu0 %v93
  %v173 = vpop.f32.mrf.mxu0
  %v174 = vadd.f32 %v62, %v173
  %v175 = vpop.f32.mrf.mxu0
  %v176 = vadd.f32 %v62, %v175
  %177 = vmatmul.bf16.gmra.mxu0 %v96
  %v178 = vpop.f32.mrf.mxu0
  %v179 = vadd.f32 %v62, %v178
  %v180 = vpop.f32.mrf.mxu0
  %v181 = vadd.f32 %v62, %v180
  %182 = vmatmul.bf16.gmra.mxu0 %v99
  %v183 = vpop.f32.mrf.mxu0
  %v184 = vadd.f32 %v62, %v183
  %v185 = vpop.f32.mrf.mxu0
  %v186 = vadd.f32 %v62, %v185
  %187 = vdwg.mxu0
  %188 = vmatpush.bf16.msra.mxu0 0
  %189 = vmatpush.bf16.msra.mxu0 0
  %190 = vmatpush.bf16.msra.mxu0 0
  %191 = vmatpush.bf16.msra.mxu0 0
  %192 = vmatpush.bf16.msra.mxu0 0
  %193 = vmatpush.bf16.msra.mxu0 0
  %194 = vmatpush.bf16.msra.mxu0 0
  %195 = vmatpush.bf16.msra.mxu0 %v83
  %196 = vmatmul.bf16.gmra.mxu0 %v90
  %v197 = vpop.f32.mrf.mxu0
  %v198 = vadd.f32 %v63, %v197
  %v199 = vpop.f32.mrf.mxu0
  %v200 = vadd.f32 %v63, %v199
  %201 = vmatmul.bf16.gmra.mxu0 %v93
  %v202 = vpop.f32.mrf.mxu0
  %v203 = vadd.f32 %v63, %v202
  %v204 = vpop.f32.mrf.mxu0
  %v205 = vadd.f32 %v63, %v204
  %206 = vmatmul.bf16.gmra.mxu0 %v96
  %v207 = vpop.f32.mrf.mxu0
  %v208 = vadd.f32 %v63, %v207
  %v209 = vpop.f32.mrf.mxu0
  %v210 = vadd.f32 %v63, %v209
  %211 = vmatmul.bf16.gmra.mxu0 %v99
  %v212 = vpop.f32.mrf.mxu0
  %v213 = vadd.f32 %v63, %v212
  %v214 = vpop.f32.mrf.mxu0
  %v215 = vadd.f32 %v63, %v214
  %216 = vdwg.mxu0
  %217 = vst [vmem:[#allocation2] sm:$0xff] %v111
  %218 = vst [vmem:[#allocation2 + $0x8] sm:$0xff] %v140
  %219 = vst [vmem:[#allocation2 + $0x10] sm:$0xff] %v169
  %220 = vst [vmem:[#allocation2 + $0x18] sm:$0xff] %v198
  %221 = vst [vmem:[#allocation2 + $0x20] sm:$0xff] %v113
  %222 = vst [vmem:[#allocation2 + $0x28] sm:$0xff] %v142
  %223 = vst [vmem:[#allocation2 + $0x30] sm:$0xff] %v171
  %224 = vst [vmem:[#allocation2 + $0x38] sm:$0xff] %v200
  %225 = vst [vmem:[#allocation2 + $0x40] sm:$0xff] %v116
  %226 = vst [vmem:[#allocation2 + $0x48] sm:$0xff] %v145
  %227 = vst [vmem:[#allocation2 + $0x50] sm:$0xff] %v174
  %228 = vst [vmem:[#allocation2 + $0x58] sm:$0xff] %v203
  %229 = vst [vmem:[#allocation2 + $0x60] sm:$0xff] %v118
  %230 = vst [vmem:[#allocation2 + $0x68] sm:$0xff] %v147
  %231 = vst [vmem:[#allocation2 + $0x70] sm:$0xff] %v176
  %232 = vst [vmem:[#allocation2 + $0x78] sm:$0xff] %v205
  %233 = vst [vmem:[#allocation2 + $0x80] sm:$0xff] %v121
  %234 = vst [vmem:[#allocation2 + $0x88] sm:$0xff] %v150
  %235 = vst [vmem:[#allocation2 + $0x90] sm:$0xff] %v179
  %236 = vst [vmem:[#allocation2 + $0x98] sm:$0xff] %v208
  %237 = vst [vmem:[#allocation2 + $0xa0] sm:$0xff] %v123
  %238 = vst [vmem:[#allocation2 + $0xa8] sm:$0xff] %v152
  %239 = vst [vmem:[#allocation2 + $0xb0] sm:$0xff] %v181
  %240 = vst [vmem:[#allocation2 + $0xb8] sm:$0xff] %v210
  %241 = vst [vmem:[#allocation2 + $0xc0] sm:$0xff] %v126
  %242 = vst [vmem:[#allocation2 + $0xc8] sm:$0xff] %v155
  %243 = vst [vmem:[#allocation2 + $0xd0] sm:$0xff] %v184
  %244 = vst [vmem:[#allocation2 + $0xd8] sm:$0xff] %v213
  %245 = vst [vmem:[#allocation2 + $0xe0] sm:$0xff] %v128
  %246 = vst [vmem:[#allocation2 + $0xe8] sm:$0xff] %v157
  %247 = vst [vmem:[#allocation2 + $0xf0] sm:$0xff] %v186
  %248 = vst [vmem:[#allocation2 + $0xf8] sm:$0xff] %v215
  %249 = vst [vmem:[#allocation3] sm:$0xff] 0.0
  %v250 = vld [vmem:[#allocation2] sm:$0xff]
  %v251 = vld [vmem:[#allocation2 + $0x8] sm:$0xff]
  %v252 = vld [vmem:[#allocation2 + $0x10] sm:$0xff]
  %v253 = vld [vmem:[#allocation2 + $0x18] sm:$0xff]
  %v254 = vld [vmem:[%s3] sm:$0xff]
  %v255 = vld [vmem:[%s3 + $0x8] sm:$0xff]
  %v256 = vld [vmem:[%s3 + $0x10] sm:$0xff]
  %v257 = vld [vmem:[%s3 + $0x18] sm:$0xff]
  %v258 = vld [vmem:[%s3 + $0x20] sm:$0xff]
  %v259 = vld [vmem:[%s3 + $0x28] sm:$0xff]
  %v260 = vld [vmem:[%s3 + $0x30] sm:$0xff]
  %v261 = vld [vmem:[%s3 + $0x38] sm:$0xff]
  %v262 = vld [vmem:[%s3 + $0x40] sm:$0xff]
  %v263 = vld [vmem:[%s3 + $0x48] sm:$0xff]
  %v264 = vld [vmem:[%s3 + $0x50] sm:$0xff]
  %v265 = vld [vmem:[%s3 + $0x58] sm:$0xff]
  %v266 = vld [vmem:[%s3 + $0x60] sm:$0xff]
  %v267 = vld [vmem:[%s3 + $0x68] sm:$0xff]
  %v268 = vld [vmem:[%s3 + $0x70] sm:$0xff]
  %v269 = vld [vmem:[%s3 + $0x78] sm:$0xff]
  %v270 = vld [vmem:[%s3 + $0x80] sm:$0xff]
  %v271 = vld [vmem:[%s3 + $0x88] sm:$0xff]
  %v272 = vld [vmem:[%s3 + $0x90] sm:$0xff]
  %v273 = vld [vmem:[%s3 + $0x98] sm:$0xff]
  %v274 = vld [vmem:[%s3 + $0xa0] sm:$0xff]
  %v275 = vld [vmem:[%s3 + $0xa8] sm:$0xff]
  %v276 = vld [vmem:[%s3 + $0xb0] sm:$0xff]
  %v277 = vld [vmem:[%s3 + $0xb8] sm:$0xff]
  %v278 = vld [vmem:[%s3 + $0xc0] sm:$0xff]
  %v279 = vld [vmem:[%s3 + $0xc8] sm:$0xff]
  %v280 = vld [vmem:[%s3 + $0xd0] sm:$0xff]
  %v281 = vld [vmem:[%s3 + $0xd8] sm:$0xff]
  %v282 = vld [vmem:[%s3 + $0xe0] sm:$0xff]
  %v283 = vld [vmem:[%s3 + $0xe8] sm:$0xff]
  %v284 = vld [vmem:[%s3 + $0xf0] sm:$0xff]
  %v285 = vld [vmem:[%s3 + $0xf8] sm:$0xff]
  %v318 = vunpack.c.l.b16 %v254
  %v319 = vunpack.c.h.b16 %v254
  %v320 = vunpack.c.l.b16 %v255
  %v321 = vunpack.c.h.b16 %v255
  %v322 = vunpack.c.l.b16 %v256
  %v323 = vunpack.c.h.b16 %v256
  %v324 = vunpack.c.l.b16 %v257
  %v325 = vunpack.c.h.b16 %v257
  %v326 = vunpack.c.l.b16 %v258
  %v327 = vunpack.c.h.b16 %v258
  %v328 = vunpack.c.l.b16 %v259
  %v329 = vunpack.c.h.b16 %v259
  %v330 = vunpack.c.l.b16 %v260
  %v331 = vunpack.c.h.b16 %v260
  %v332 = vunpack.c.l.b16 %v261
  %v333 = vunpack.c.h.b16 %v261
  %v334 = vunpack.c.l.b16 %v262
  %v335 = vunpack.c.h.b16 %v262
  %v336 = vunpack.c.l.b16 %v263
  %v337 = vunpack.c.h.b16 %v263
  %v338 = vunpack.c.l.b16 %v264
  %v339 = vunpack.c.h.b16 %v264
  %v340 = vunpack.c.l.b16 %v265
  %v341 = vunpack.c.h.b16 %v265
  %v342 = vunpack.c.l.b16 %v266
  %v343 = vunpack.c.h.b16 %v266
  %v344 = vunpack.c.l.b16 %v267
  %v345 = vunpack.c.h.b16 %v267
  %v346 = vunpack.c.l.b16 %v268
  %v347 = vunpack.c.h.b16 %v268
  %v348 = vunpack.c.l.b16 %v269
  %v349 = vunpack.c.h.b16 %v269
  %v350 = vunpack.c.l.b16 %v270
  %v351 = vunpack.c.h.b16 %v270
  %v352 = vunpack.c.l.b16 %v271
  %v353 = vunpack.c.h.b16 %v271
  %v354 = vunpack.c.l.b16 %v272
  %v355 = vunpack.c.h.b16 %v272
  %v356 = vunpack.c.l.b16 %v273
  %v357 = vunpack.c.h.b16 %v273
  %v358 = vunpack.c.l.b16 %v274
  %v359 = vunpack.c.h.b16 %v274
  %v360 = vunpack.c.l.b16 %v275
  %v361 = vunpack.c.h.b16 %v275
  %v362 = vunpack.c.l.b16 %v276
  %v363 = vunpack.c.h.b16 %v276
  %v364 = vunpack.c.l.b16 %v277
  %v365 = vunpack.c.h.b16 %v277
  %v366 = vunpack.c.l.b16 %v278
  %v367 = vunpack.c.h.b16 %v278
  %v368 = vunpack.c.l.b16 %v279
  %v369 = vunpack.c.h.b16 %v279
  %v370 = vunpack.c.l.b16 %v280
  %v371 = vunpack.c.h.b16 %v280
  %v372 = vunpack.c.l.b16 %v281
  %v373 = vunpack.c.h.b16 %v281
  %v374 = vunpack.c.l.b16 %v282
  %v375 = vunpack.c.h.b16 %v282
  %v376 = vunpack.c.l.b16 %v283
  %v377 = vunpack.c.h.b16 %v283
  %v378 = vunpack.c.l.b16 %v284
  %v379 = vunpack.c.h.b16 %v284
  %v380 = vunpack.c.l.b16 %v285
  %v381 = vunpack.c.h.b16 %v285
  %v382 = vpack.c.b16 %v322, %v318
  %v383 = vpack.c.b16 %v323, %v319
  %v384 = vpack.c.b16 %v324, %v320
  %v385 = vpack.c.b16 %v325, %v321
  %v386 = vpack.c.b16 %v330, %v326
  %v387 = vpack.c.b16 %v331, %v327
  %v388 = vpack.c.b16 %v332, %v328
  %v389 = vpack.c.b16 %v333, %v329
  %v390 = vpack.c.b16 %v338, %v334
  %v391 = vpack.c.b16 %v339, %v335
  %v392 = vpack.c.b16 %v340, %v336
  %v393 = vpack.c.b16 %v341, %v337
  %v394 = vpack.c.b16 %v346, %v342
  %v395 = vpack.c.b16 %v347, %v343
  %v396 = vpack.c.b16 %v348, %v344
  %v397 = vpack.c.b16 %v349, %v345
  %v398 = vpack.c.b16 %v354, %v350
  %v399 = vpack.c.b16 %v355, %v351
  %v400 = vpack.c.b16 %v356, %v352
  %v401 = vpack.c.b16 %v357, %v353
  %v402 = vpack.c.b16 %v362, %v358
  %v403 = vpack.c.b16 %v363, %v359
  %v404 = vpack.c.b16 %v364, %v360
  %v405 = vpack.c.b16 %v365, %v361
  %v406 = vpack.c.b16 %v370, %v366
  %v407 = vpack.c.b16 %v371, %v367
  %v408 = vpack.c.b16 %v372, %v368
  %v409 = vpack.c.b16 %v373, %v369
  %v410 = vpack.c.b16 %v378, %v374
  %v411 = vpack.c.b16 %v379, %v375
  %v412 = vpack.c.b16 %v380, %v376
  %v413 = vpack.c.b16 %v381, %v377
  %446 = vmatpush.bf16.msra.mxu0 %v410
  %447 = vmatpush.bf16.msra.mxu0 %v406
  %448 = vmatpush.bf16.msra.mxu0 %v402
  %449 = vmatpush.bf16.msra.mxu0 %v398
  %450 = vmatpush.bf16.msra.mxu0 %v394
  %451 = vmatpush.bf16.msra.mxu0 %v390
  %452 = vmatpush.bf16.msra.mxu0 %v386
  %453 = vmatpush.bf16.msra.mxu0 %v382
  %454 = vmatmul.bf16.gmra.mxu0 0
  %v455 = vpop.f32.mrf.mxu0
  %v456 = vadd.f32 0.0, %v455
  %v457 = vpop.f32.mrf.mxu0
  %458 = vdwg.mxu0
  %459 = vmatpush.bf16.msra.mxu0 %v411
  %460 = vmatpush.bf16.msra.mxu0 %v407
  %461 = vmatpush.bf16.msra.mxu0 %v403
  %462 = vmatpush.bf16.msra.mxu0 %v399
  %463 = vmatpush.bf16.msra.mxu0 %v395
  %464 = vmatpush.bf16.msra.mxu0 %v391
  %465 = vmatpush.bf16.msra.mxu0 %v387
  %466 = vmatpush.bf16.msra.mxu0 %v383
  %467 = vmatmul.bf16.gmra.mxu0 0
  %v468 = vpop.f32.mrf.mxu0
  %v469 = vadd.f32 0.0, %v468
  %v470 = vpop.f32.mrf.mxu0
  %471 = vdwg.mxu0
  %472 = vmatpush.bf16.msra.mxu0 %v412
  %473 = vmatpush.bf16.msra.mxu0 %v408
  %474 = vmatpush.bf16.msra.mxu0 %v404
  %475 = vmatpush.bf16.msra.mxu0 %v400
  %476 = vmatpush.bf16.msra.mxu0 %v396
  %477 = vmatpush.bf16.msra.mxu0 %v392
  %478 = vmatpush.bf16.msra.mxu0 %v388
  %479 = vmatpush.bf16.msra.mxu0 %v384
  %480 = vmatmul.bf16.gmra.mxu0 0
  %v481 = vpop.f32.mrf.mxu0
  %v482 = vadd.f32 0.0, %v481
  %v483 = vpop.f32.mrf.mxu0
  %484 = vdwg.mxu0
  %485 = vmatpush.bf16.msra.mxu0 %v413
  %486 = vmatpush.bf16.msra.mxu0 %v409
  %487 = vmatpush.bf16.msra.mxu0 %v405
  %488 = vmatpush.bf16.msra.mxu0 %v401
  %489 = vmatpush.bf16.msra.mxu0 %v397
  %490 = vmatpush.bf16.msra.mxu0 %v393
  %491 = vmatpush.bf16.msra.mxu0 %v389
  %492 = vmatpush.bf16.msra.mxu0 %v385
  %493 = vmatmul.bf16.gmra.mxu0 0
  %v494 = vpop.f32.mrf.mxu0
  %v495 = vadd.f32 0.0, %v494
  %v496 = vpop.f32.mrf.mxu0
  %497 = vdwg.mxu0
  %v498 = vadd.f32 %v250, %v456
  %v499 = vadd.f32 %v251, %v469
  %v500 = vadd.f32 %v252, %v482
  %v501 = vadd.f32 %v253, %v495
  %v502 = vxor.u32 %v498, 2147483648
  %v503 = vxor.u32 %v499, 2147483648
  %v504 = vxor.u32 %v500, 2147483648
  %v505 = vmul.f32 %v502, 1.442695
  %v506 = vpow.pop %v505
  %v507 = vmul.f32 %v503, 1.442695
  %v508 = vpow.pop %v507
  %v509 = vmul.f32 %v504, 1.442695
  %v510 = vpow.pop %v509
  %v511 = vadd.f32 %v506, 1.0
  %v512 = vadd.f32 %v508, 1.0
  %v513 = vadd.f32 %v510, 1.0
  %v514 = vrcp.pop %v511
  %v515 = vmul.f32 %v511, %v514
  %v516 = vsub.f32 1.0, %v515
  %v517 = vmul.f32 %v514, %v516
  %v518 = vadd.f32 %v514, %v517
  %vm519 = vweird.f32 %v511
  %vm520 = vweird.f32 %v514
  %vm521 = vmor %vm519, %vm520
  %v522 = vsel %vm521, %v514, %v518
  %v523 = vand.u32 2147483647, %v511
  %vm524 = vcmp.eq.f32.partialorder %v523, 8.507059e+37
  %v525 = vand.u32 %v511, 2147483648
  %v526 = vor.u32 1.1754944e-38, %v525
  %v527 = vsel %vm524, %v526, %v522
  %v528 = vmul.f32 1.0, %v527
  %v529 = vrcp.pop %v512
  %v530 = vmul.f32 %v512, %v529
  %v531 = vsub.f32 1.0, %v530
  %v532 = vmul.f32 %v529, %v531
  %v533 = vadd.f32 %v529, %v532
  %vm534 = vweird.f32 %v512
  %vm535 = vweird.f32 %v529
  %vm536 = vmor %vm534, %vm535
  %v537 = vsel %vm536, %v529, %v533
  %v538 = vand.u32 2147483647, %v512
  %vm539 = vcmp.eq.f32.partialorder %v538, 8.507059e+37
  %v540 = vand.u32 %v512, 2147483648
  %v541 = vor.u32 1.1754944e-38, %v540
  %v542 = vsel %vm539, %v541, %v537
  %v543 = vmul.f32 1.0, %v542
  %v544 = vrcp.pop %v513
  %v545 = vmul.f32 %v513, %v544
  %v546 = vsub.f32 1.0, %v545
  %v547 = vmul.f32 %v544, %v546
  %v548 = vadd.f32 %v544, %v547
  %vm549 = vweird.f32 %v513
  %vm550 = vweird.f32 %v544
  %vm551 = vmor %vm549, %vm550
  %v552 = vsel %vm551, %v544, %v548
  %v553 = vand.u32 2147483647, %v513
  %vm554 = vcmp.eq.f32.partialorder %v553, 8.507059e+37
  %v555 = vand.u32 %v513, 2147483648
  %v556 = vor.u32 1.1754944e-38, %v555
  %v557 = vsel %vm554, %v556, %v552
  %v558 = vmul.f32 1.0, %v557
  %v559 = vtanh.pop %v501
  %v560 = vmul.f32 %v543, 0.0
  %v561 = vmul.f32 %v528, %v559
  %v562 = vadd.f32 %v560, %v561
  %v563 = vtanh.pop %v562
  %v564 = vmul.f32 %v558, %v563
  %s565 = scalar_lea.vmem [#allocation3], 8
  %566 = vst [vmem:[%s565] sm:$0xff] %v564
  %s567 = scalar_lea.vmem [#allocation2], 32
  %v568 = vld [vmem:[%s567] sm:$0xff]
  %v569 = vld [vmem:[%s567 + $0x8] sm:$0xff]
  %v570 = vld [vmem:[%s567 + $0x10] sm:$0xff]
  %v571 = vld [vmem:[%s567 + $0x18] sm:$0xff]
  %v572 = vpack.c.bf16 %v564, %v564
  %v573 = vld [vmem:[%s3] sm:$0xff]
  %v574 = vld [vmem:[%s3 + $0x8] sm:$0xff]
  %v575 = vld [vmem:[%s3 + $0x10] sm:$0xff]
  %v576 = vld [vmem:[%s3 + $0x18] sm:$0xff]
  %v577 = vld [vmem:[%s3 + $0x20] sm:$0xff]
  %v578 = vld [vmem:[%s3 + $0x28] sm:$0xff]
  %v579 = vld [vmem:[%s3 + $0x30] sm:$0xff]
  %v580 = vld [vmem:[%s3 + $0x38] sm:$0xff]
  %v581 = vld [vmem:[%s3 + $0x40] sm:$0xff]
  %v582 = vld [vmem:[%s3 + $0x48] sm:$0xff]
  %v583 = vld [vmem:[%s3 + $0x50] sm:$0xff]
  %v584 = vld [vmem:[%s3 + $0x58] sm:$0xff]
  %v585 = vld [vmem:[%s3 + $0x60] sm:$0xff]
  %v586 = vld [vmem:[%s3 + $0x68] sm:$0xff]
  %v587 = vld [vmem:[%s3 + $0x70] sm:$0xff]
  %v588 = vld [vmem:[%s3 + $0x78] sm:$0xff]
  %v589 = vld [vmem:[%s3 + $0x80] sm:$0xff]
  %v590 = vld [vmem:[%s3 + $0x88] sm:$0xff]
  %v591 = vld [vmem:[%s3 + $0x90] sm:$0xff]
  %v592 = vld [vmem:[%s3 + $0x98] sm:$0xff]
  %v593 = vld [vmem:[%s3 + $0xa0] sm:$0xff]
  %v594 = vld [vmem:[%s3 + $0xa8] sm:$0xff]
  %v595 = vld [vmem:[%s3 + $0xb0] sm:$0xff]
  %v596 = vld [vmem:[%s3 + $0xb8] sm:$0xff]
  %v597 = vld [vmem:[%s3 + $0xc0] sm:$0xff]
  %v598 = vld [vmem:[%s3 + $0xc8] sm:$0xff]
  %v599 = vld [vmem:[%s3 + $0xd0] sm:$0xff]
  %v600 = vld [vmem:[%s3 + $0xd8] sm:$0xff]
  %v601 = vld [vmem:[%s3 + $0xe0] sm:$0xff]
  %v602 = vld [vmem:[%s3 + $0xe8] sm:$0xff]
  %v603 = vld [vmem:[%s3 + $0xf0] sm:$0xff]
  %v604 = vld [vmem:[%s3 + $0xf8] sm:$0xff]
  %v637 = vunpack.c.l.b16 %v573
  %v638 = vunpack.c.h.b16 %v573
  %v639 = vunpack.c.l.b16 %v574
  %v640 = vunpack.c.h.b16 %v574
  %v641 = vunpack.c.l.b16 %v575
  %v642 = vunpack.c.h.b16 %v575
  %v643 = vunpack.c.l.b16 %v576
  %v644 = vunpack.c.h.b16 %v576
  %v645 = vunpack.c.l.b16 %v577
  %v646 = vunpack.c.h.b16 %v577
  %v647 = vunpack.c.l.b16 %v578
  %v648 = vunpack.c.h.b16 %v578
  %v649 = vunpack.c.l.b16 %v579
  %v650 = vunpack.c.h.b16 %v579
  %v651 = vunpack.c.l.b16 %v580
  %v652 = vunpack.c.h.b16 %v580
  %v653 = vunpack.c.l.b16 %v581
  %v654 = vunpack.c.h.b16 %v581
  %v655 = vunpack.c.l.b16 %v582
  %v656 = vunpack.c.h.b16 %v582
  %v657 = vunpack.c.l.b16 %v583
  %v658 = vunpack.c.h.b16 %v583
  %v659 = vunpack.c.l.b16 %v584
  %v660 = vunpack.c.h.b16 %v584
  %v661 = vunpack.c.l.b16 %v585
  %v662 = vunpack.c.h.b16 %v585
  %v663 = vunpack.c.l.b16 %v586
  %v664 = vunpack.c.h.b16 %v586
  %v665 = vunpack.c.l.b16 %v587
  %v666 = vunpack.c.h.b16 %v587
  %v667 = vunpack.c.l.b16 %v588
  %v668 = vunpack.c.h.b16 %v588
  %v669 = vunpack.c.l.b16 %v589
  %v670 = vunpack.c.h.b16 %v589
  %v671 = vunpack.c.l.b16 %v590
  %v672 = vunpack.c.h.b16 %v590
  %v673 = vunpack.c.l.b16 %v591
  %v674 = vunpack.c.h.b16 %v591
  %v675 = vunpack.c.l.b16 %v592
  %v676 = vunpack.c.h.b16 %v592
  %v677 = vunpack.c.l.b16 %v593
  %v678 = vunpack.c.h.b16 %v593
  %v679 = vunpack.c.l.b16 %v594
  %v680 = vunpack.c.h.b16 %v594
  %v681 = vunpack.c.l.b16 %v595
  %v682 = vunpack.c.h.b16 %v595
  %v683 = vunpack.c.l.b16 %v596
  %v684 = vunpack.c.h.b16 %v596
  %v685 = vunpack.c.l.b16 %v597
  %v686 = vunpack.c.h.b16 %v597
  %v687 = vunpack.c.l.b16 %v598
  %v688 = vunpack.c.h.b16 %v598
  %v689 = vunpack.c.l.b16 %v599
  %v690 = vunpack.c.h.b16 %v599
  %v691 = vunpack.c.l.b16 %v600
  %v692 = vunpack.c.h.b16 %v600
  %v693 = vunpack.c.l.b16 %v601
  %v694 = vunpack.c.h.b16 %v601
  %v695 = vunpack.c.l.b16 %v602
  %v696 = vunpack.c.h.b16 %v602
  %v697 = vunpack.c.l.b16 %v603
  %v698 = vunpack.c.h.b16 %v603
  %v699 = vunpack.c.l.b16 %v604
  %v700 = vunpack.c.h.b16 %v604
  %v701 = vpack.c.b16 %v641, %v637
  %v702 = vpack.c.b16 %v642, %v638
  %v703 = vpack.c.b16 %v643, %v639
  %v704 = vpack.c.b16 %v644, %v640
  %v705 = vpack.c.b16 %v649, %v645
  %v706 = vpack.c.b16 %v650, %v646
  %v707 = vpack.c.b16 %v651, %v647
  %v708 = vpack.c.b16 %v652, %v648
  %v709 = vpack.c.b16 %v657, %v653
  %v710 = vpack.c.b16 %v658, %v654
  %v711 = vpack.c.b16 %v659, %v655
  %v712 = vpack.c.b16 %v660, %v656
  %v713 = vpack.c.b16 %v665, %v661
  %v714 = vpack.c.b16 %v666, %v662
  %v715 = vpack.c.b16 %v667, %v663
  %v716 = vpack.c.b16 %v668, %v664
  %v717 = vpack.c.b16 %v673, %v669
  %v718 = vpack.c.b16 %v674, %v670
  %v719 = vpack.c.b16 %v675, %v671
  %v720 = vpack.c.b16 %v676, %v672
  %v721 = vpack.c.b16 %v681, %v677
  %v722 = vpack.c.b16 %v682, %v678
  %v723 = vpack.c.b16 %v683, %v679
  %v724 = vpack.c.b16 %v684, %v680
  %v725 = vpack.c.b16 %v689, %v685
  %v726 = vpack.c.b16 %v690, %v686
  %v727 = vpack.c.b16 %v691, %v687
  %v728 = vpack.c.b16 %v692, %v688
  %v729 = vpack.c.b16 %v697, %v693
  %v730 = vpack.c.b16 %v698, %v694
  %v731 = vpack.c.b16 %v699, %v695
  %v732 = vpack.c.b16 %v700, %v696
  %765 = vmatpush.bf16.msra.mxu0 %v729
  %766 = vmatpush.bf16.msra.mxu0 %v725
  %767 = vmatpush.bf16.msra.mxu0 %v721
  %768 = vmatpush.bf16.msra.mxu0 %v717
  %769 = vmatpush.bf16.msra.mxu0 %v713
  %770 = vmatpush.bf16.msra.mxu0 %v709
  %771 = vmatpush.bf16.msra.mxu0 %v705
  %772 = vmatpush.bf16.msra.mxu0 %v701
  %773 = vmatmul.bf16.gmra.mxu0 %v572
  %v774 = vpop.f32.mrf.mxu0
  %v775 = vadd.f32 0.0, %v774
  %v776 = vpop.f32.mrf.mxu0
  %777 = vdwg.mxu0
  %778 = vmatpush.bf16.msra.mxu0 %v730
  %779 = vmatpush.bf16.msra.mxu0 %v726
  %780 = vmatpush.bf16.msra.mxu0 %v722
  %781 = vmatpush.bf16.msra.mxu0 %v718
  %782 = vmatpush.bf16.msra.mxu0 %v714
  %783 = vmatpush.bf16.msra.mxu0 %v710
  %784 = vmatpush.bf16.msra.mxu0 %v706
  %785 = vmatpush.bf16.msra.mxu0 %v702
  %786 = vmatmul.bf16.gmra.mxu0 %v572
  %v787 = vpop.f32.mrf.mxu0
  %v788 = vadd.f32 0.0, %v787
  %v789 = vpop.f32.mrf.mxu0
  %790 = vdwg.mxu0
  %791 = vmatpush.bf16.msra.mxu0 %v731
  %792 = vmatpush.bf16.msra.mxu0 %v727
  %793 = vmatpush.bf16.msra.mxu0 %v723
  %794 = vmatpush.bf16.msra.mxu0 %v719
  %795 = vmatpush.bf16.msra.mxu0 %v715
  %796 = vmatpush.bf16.msra.mxu0 %v711
  %797 = vmatpush.bf16.msra.mxu0 %v707
  %798 = vmatpush.bf16.msra.mxu0 %v703
  %799 = vmatmul.bf16.gmra.mxu0 %v572
  %v800 = vpop.f32.mrf.mxu0
  %v801 = vadd.f32 0.0, %v800
  %v802 = vpop.f32.mrf.mxu0
  %803 = vdwg.mxu0
  %804 = vmatpush.bf16.msra.mxu0 %v732
  %805 = vmatpush.bf16.msra.mxu0 %v728
  %806 = vmatpush.bf16.msra.mxu0 %v724
  %807 = vmatpush.bf16.msra.mxu0 %v720
  %808 = vmatpush.bf16.msra.mxu0 %v716
  %809 = vmatpush.bf16.msra.mxu0 %v712
  %810 = vmatpush.bf16.msra.mxu0 %v708
  %811 = vmatpush.bf16.msra.mxu0 %v704
  %812 = vmatmul.bf16.gmra.mxu0 %v572
  %v813 = vpop.f32.mrf.mxu0
  %v814 = vadd.f32 0.0, %v813
  %v815 = vpop.f32.mrf.mxu0
  %816 = vdwg.mxu0
  %v817 = vadd.f32 %v568, %v775
  %v818 = vadd.f32 %v569, %v788
  %v819 = vadd.f32 %v570, %v801
  %v820 = vadd.f32 %v571, %v814
  %v821 = vxor.u32 %v817, 2147483648
  %v822 = vxor.u32 %v818, 2147483648
  %v823 = vxor.u32 %v819, 2147483648
  %v824 = vmul.f32 %v821, 1.442695
  %v825 = vpow.pop %v824
  %v826 = vmul.f32 %v822, 1.442695
  %v827 = vpow.pop %v826
  %v828 = vmul.f32 %v823, 1.442695
  %v829 = vpow.pop %v828
  %v830 = vadd.f32 %v825, 1.0
  %v831 = vadd.f32 %v827, 1.0
  %v832 = vadd.f32 %v829, 1.0
  %v833 = vrcp.pop %v830
  %v834 = vmul.f32 %v830, %v833
  %v835 = vsub.f32 1.0, %v834
  %v836 = vmul.f32 %v833, %v835
  %v837 = vadd.f32 %v833, %v836
  %vm838 = vweird.f32 %v830
  %vm839 = vweird.f32 %v833
  %vm840 = vmor %vm838, %vm839
  %v841 = vsel %vm840, %v833, %v837
  %v842 = vand.u32 2147483647, %v830
  %vm843 = vcmp.eq.f32.partialorder %v842, 8.507059e+37
  %v844 = vand.u32 %v830, 2147483648
  %v845 = vor.u32 1.1754944e-38, %v844
  %v846 = vsel %vm843, %v845, %v841
  %v847 = vmul.f32 1.0, %v846
  %v848 = vrcp.pop %v831
  %v849 = vmul.f32 %v831, %v848
  %v850 = vsub.f32 1.0, %v849
  %v851 = vmul.f32 %v848, %v850
  %v852 = vadd.f32 %v848, %v851
  %vm853 = vweird.f32 %v831
  %vm854 = vweird.f32 %v848
  %vm855 = vmor %vm853, %vm854
  %v856 = vsel %vm855, %v848, %v852
  %v857 = vand.u32 2147483647, %v831
  %vm858 = vcmp.eq.f32.partialorder %v857, 8.507059e+37
  %v859 = vand.u32 %v831, 2147483648
  %v860 = vor.u32 1.1754944e-38, %v859
  %v861 = vsel %vm858, %v860, %v856
  %v862 = vmul.f32 1.0, %v861
  %v863 = vrcp.pop %v832
  %v864 = vmul.f32 %v832, %v863
  %v865 = vsub.f32 1.0, %v864
  %v866 = vmul.f32 %v863, %v865
  %v867 = vadd.f32 %v863, %v866
  %vm868 = vweird.f32 %v832
  %vm869 = vweird.f32 %v863
  %vm870 = vmor %vm868, %vm869
  %v871 = vsel %vm870, %v863, %v867
  %v872 = vand.u32 2147483647, %v832
  %vm873 = vcmp.eq.f32.partialorder %v872, 8.507059e+37
  %v874 = vand.u32 %v832, 2147483648
  %v875 = vor.u32 1.1754944e-38, %v874
  %v876 = vsel %vm873, %v875, %v871
  %v877 = vmul.f32 1.0, %v876
  %v878 = vtanh.pop %v820
  %v879 = vmul.f32 %v862, %v562
  %v880 = vmul.f32 %v847, %v878
  %v881 = vadd.f32 %v879, %v880
  %v882 = vtanh.pop %v881
  %v883 = vmul.f32 %v877, %v882
  %s884 = scalar_lea.vmem [#allocation3], 16
  %885 = vst [vmem:[%s884] sm:$0xff] %v883
  %s886 = scalar_lea.vmem [#allocation2], 64
  %v887 = vld [vmem:[%s886] sm:$0xff]
  %v888 = vld [vmem:[%s886 + $0x8] sm:$0xff]
  %v889 = vld [vmem:[%s886 + $0x10] sm:$0xff]
  %v890 = vld [vmem:[%s886 + $0x18] sm:$0xff]
  %v891 = vpack.c.bf16 %v883, %v883
  %v892 = vld [vmem:[%s3] sm:$0xff]
  %v893 = vld [vmem:[%s3 + $0x8] sm:$0xff]
  %v894 = vld [vmem:[%s3 + $0x10] sm:$0xff]
  %v895 = vld [vmem:[%s3 + $0x18] sm:$0xff]
  %v896 = vld [vmem:[%s3 + $0x20] sm:$0xff]
  %v897 = vld [vmem:[%s3 + $0x28] sm:$0xff]
  %v898 = vld [vmem:[%s3 + $0x30] sm:$0xff]
  %v899 = vld [vmem:[%s3 + $0x38] sm:$0xff]
  %v900 = vld [vmem:[%s3 + $0x40] sm:$0xff]
  %v901 = vld [vmem:[%s3 + $0x48] sm:$0xff]
  %v902 = vld [vmem:[%s3 + $0x50] sm:$0xff]
  %v903 = vld [vmem:[%s3 + $0x58] sm:$0xff]
  %v904 = vld [vmem:[%s3 + $0x60] sm:$0xff]
  %v905 = vld [vmem:[%s3 + $0x68] sm:$0xff]
  %v906 = vld [vmem:[%s3 + $0x70] sm:$0xff]
  %v907 = vld [vmem:[%s3 + $0x78] sm:$0xff]
  %v908 = vld [vmem:[%s3 + $0x80] sm:$0xff]
  %v909 = vld [vmem:[%s3 + $0x88] sm:$0xff]
  %v910 = vld [vmem:[%s3 + $0x90] sm:$0xff]
  %v911 = vld [vmem:[%s3 + $0x98] sm:$0xff]
  %v912 = vld [vmem:[%s3 + $0xa0] sm:$0xff]
  %v913 = vld [vmem:[%s3 + $0xa8] sm:$0xff]
  %v914 = vld [vmem:[%s3 + $0xb0] sm:$0xff]
  %v915 = vld [vmem:[%s3 + $0xb8] sm:$0xff]
  %v916 = vld [vmem:[%s3 + $0xc0] sm:$0xff]
  %v917 = vld [vmem:[%s3 + $0xc8] sm:$0xff]
  %v918 = vld [vmem:[%s3 + $0xd0] sm:$0xff]
  %v919 = vld [vmem:[%s3 + $0xd8] sm:$0xff]
  %v920 = vld [vmem:[%s3 + $0xe0] sm:$0xff]
  %v921 = vld [vmem:[%s3 + $0xe8] sm:$0xff]
  %v922 = vld [vmem:[%s3 + $0xf0] sm:$0xff]
  %v923 = vld [vmem:[%s3 + $0xf8] sm:$0xff]
  %v956 = vunpack.c.l.b16 %v892
  %v957 = vunpack.c.h.b16 %v892
  %v958 = vunpack.c.l.b16 %v893
  %v959 = vunpack.c.h.b16 %v893
  %v960 = vunpack.c.l.b16 %v894
  %v961 = vunpack.c.h.b16 %v894
  %v962 = vunpack.c.l.b16 %v895
  %v963 = vunpack.c.h.b16 %v895
  %v964 = vunpack.c.l.b16 %v896
  %v965 = vunpack.c.h.b16 %v896
  %v966 = vunpack.c.l.b16 %v897
  %v967 = vunpack.c.h.b16 %v897
  %v968 = vunpack.c.l.b16 %v898
  %v969 = vunpack.c.h.b16 %v898
  %v970 = vunpack.c.l.b16 %v899
  %v971 = vunpack.c.h.b16 %v899
  %v972 = vunpack.c.l.b16 %v900
  %v973 = vunpack.c.h.b16 %v900
  %v974 = vunpack.c.l.b16 %v901
  %v975 = vunpack.c.h.b16 %v901
  %v976 = vunpack.c.l.b16 %v902
  %v977 = vunpack.c.h.b16 %v902
  %v978 = vunpack.c.l.b16 %v903
  %v979 = vunpack.c.h.b16 %v903
  %v980 = vunpack.c.l.b16 %v904
  %v981 = vunpack.c.h.b16 %v904
  %v982 = vunpack.c.l.b16 %v905
  %v983 = vunpack.c.h.b16 %v905
  %v984 = vunpack.c.l.b16 %v906
  %v985 = vunpack.c.h.b16 %v906
  %v986 = vunpack.c.l.b16 %v907
  %v987 = vunpack.c.h.b16 %v907
  %v988 = vunpack.c.l.b16 %v908
  %v989 = vunpack.c.h.b16 %v908
  %v990 = vunpack.c.l.b16 %v909
  %v991 = vunpack.c.h.b16 %v909
  %v992 = vunpack.c.l.b16 %v910
  %v993 = vunpack.c.h.b16 %v910
  %v994 = vunpack.c.l.b16 %v911
  %v995 = vunpack.c.h.b16 %v911
  %v996 = vunpack.c.l.b16 %v912
  %v997 = vunpack.c.h.b16 %v912
  %v998 = vunpack.c.l.b16 %v913
  %v999 = vunpack.c.h.b16 %v913
  %v1000 = vunpack.c.l.b16 %v914
  %v1001 = vunpack.c.h.b16 %v914
  %v1002 = vunpack.c.l.b16 %v915
  %v1003 = vunpack.c.h.b16 %v915
  %v1004 = vunpack.c.l.b16 %v916
  %v1005 = vunpack.c.h.b16 %v916
  %v1006 = vunpack.c.l.b16 %v917
  %v1007 = vunpack.c.h.b16 %v917
  %v1008 = vunpack.c.l.b16 %v918
  %v1009 = vunpack.c.h.b16 %v918
  %v1010 = vunpack.c.l.b16 %v919
  %v1011 = vunpack.c.h.b16 %v919
  %v1012 = vunpack.c.l.b16 %v920
  %v1013 = vunpack.c.h.b16 %v920
  %v1014 = vunpack.c.l.b16 %v921
  %v1015 = vunpack.c.h.b16 %v921
  %v1016 = vunpack.c.l.b16 %v922
  %v1017 = vunpack.c.h.b16 %v922
  %v1018 = vunpack.c.l.b16 %v923
  %v1019 = vunpack.c.h.b16 %v923
  %v1020 = vpack.c.b16 %v960, %v956
  %v1021 = vpack.c.b16 %v961, %v957
  %v1022 = vpack.c.b16 %v962, %v958
  %v1023 = vpack.c.b16 %v963, %v959
  %v1024 = vpack.c.b16 %v968, %v964
  %v1025 = vpack.c.b16 %v969, %v965
  %v1026 = vpack.c.b16 %v970, %v966
  %v1027 = vpack.c.b16 %v971, %v967
  %v1028 = vpack.c.b16 %v976, %v972
  %v1029 = vpack.c.b16 %v977, %v973
  %v1030 = vpack.c.b16 %v978, %v974
  %v1031 = vpack.c.b16 %v979, %v975
  %v1032 = vpack.c.b16 %v984, %v980
  %v1033 = vpack.c.b16 %v985, %v981
  %v1034 = vpack.c.b16 %v986, %v982
  %v1035 = vpack.c.b16 %v987, %v983
  %v1036 = vpack.c.b16 %v992, %v988
  %v1037 = vpack.c.b16 %v993, %v989
  %v1038 = vpack.c.b16 %v994, %v990
  %v1039 = vpack.c.b16 %v995, %v991
  %v1040 = vpack.c.b16 %v1000, %v996
  %v1041 = vpack.c.b16 %v1001, %v997
  %v1042 = vpack.c.b16 %v1002, %v998
  %v1043 = vpack.c.b16 %v1003, %v999
  %v1044 = vpack.c.b16 %v1008, %v1004
  %v1045 = vpack.c.b16 %v1009, %v1005
  %v1046 = vpack.c.b16 %v1010, %v1006
  %v1047 = vpack.c.b16 %v1011, %v1007
  %v1048 = vpack.c.b16 %v1016, %v1012
  %v1049 = vpack.c.b16 %v1017, %v1013
  %v1050 = vpack.c.b16 %v1018, %v1014
  %v1051 = vpack.c.b16 %v1019, %v1015
  %1084 = vmatpush.bf16.msra.mxu0 %v1048
  %1085 = vmatpush.bf16.msra.mxu0 %v1044
  %1086 = vmatpush.bf16.msra.mxu0 %v1040
  %1087 = vmatpush.bf16.msra.mxu0 %v1036
  %1088 = vmatpush.bf16.msra.mxu0 %v1032
  %1089 = vmatpush.bf16.msra.mxu0 %v1028
  %1090 = vmatpush.bf16.msra.mxu0 %v1024
  %1091 = vmatpush.bf16.msra.mxu0 %v1020
  %1092 = vmatmul.bf16.gmra.mxu0 %v891
  %v1093 = vpop.f32.mrf.mxu0
  %v1094 = vadd.f32 0.0, %v1093
  %v1095 = vpop.f32.mrf.mxu0
  %1096 = vdwg.mxu0
  %1097 = vmatpush.bf16.msra.mxu0 %v1049
  %1098 = vmatpush.bf16.msra.mxu0 %v1045
  %1099 = vmatpush.bf16.msra.mxu0 %v1041
  %1100 = vmatpush.bf16.msra.mxu0 %v1037
  %1101 = vmatpush.bf16.msra.mxu0 %v1033
  %1102 = vmatpush.bf16.msra.mxu0 %v1029
  %1103 = vmatpush.bf16.msra.mxu0 %v1025
  %1104 = vmatpush.bf16.msra.mxu0 %v1021
  %1105 = vmatmul.bf16.gmra.mxu0 %v891
  %v1106 = vpop.f32.mrf.mxu0
  %v1107 = vadd.f32 0.0, %v1106
  %v1108 = vpop.f32.mrf.mxu0
  %1109 = vdwg.mxu0
  %1110 = vmatpush.bf16.msra.mxu0 %v1050
  %1111 = vmatpush.bf16.msra.mxu0 %v1046
  %1112 = vmatpush.bf16.msra.mxu0 %v1042
  %1113 = vmatpush.bf16.msra.mxu0 %v1038
  %1114 = vmatpush.bf16.msra.mxu0 %v1034
  %1115 = vmatpush.bf16.msra.mxu0 %v1030
  %1116 = vmatpush.bf16.msra.mxu0 %v1026
  %1117 = vmatpush.bf16.msra.mxu0 %v1022
  %1118 = vmatmul.bf16.gmra.mxu0 %v891
  %v1119 = vpop.f32.mrf.mxu0
  %v1120 = vadd.f32 0.0, %v1119
  %v1121 = vpop.f32.mrf.mxu0
  %1122 = vdwg.mxu0
  %1123 = vmatpush.bf16.msra.mxu0 %v1051
  %1124 = vmatpush.bf16.msra.mxu0 %v1047
  %1125 = vmatpush.bf16.msra.mxu0 %v1043
  %1126 = vmatpush.bf16.msra.mxu0 %v1039
  %1127 = vmatpush.bf16.msra.mxu0 %v1035
  %1128 = vmatpush.bf16.msra.mxu0 %v1031
  %1129 = vmatpush.bf16.msra.mxu0 %v1027
  %1130 = vmatpush.bf16.msra.mxu0 %v1023
  %1131 = vmatmul.bf16.gmra.mxu0 %v891
  %v1132 = vpop.f32.mrf.mxu0
  %v1133 = vadd.f32 0.0, %v1132
  %v1134 = vpop.f32.mrf.mxu0
  %1135 = vdwg.mxu0
  %v1136 = vadd.f32 %v887, %v1094
  %v1137 = vadd.f32 %v888, %v1107
  %v1138 = vadd.f32 %v889, %v1120
  %v1139 = vadd.f32 %v890, %v1133
  %v1140 = vxor.u32 %v1136, 2147483648
  %v1141 = vxor.u32 %v1137, 2147483648
  %v1142 = vxor.u32 %v1138, 2147483648
  %v1143 = vmul.f32 %v1140, 1.442695
  %v1144 = vpow.pop %v1143
  %v1145 = vmul.f32 %v1141, 1.442695
  %v1146 = vpow.pop %v1145
  %v1147 = vmul.f32 %v1142, 1.442695
  %v1148 = vpow.pop %v1147
  %v1149 = vadd.f32 %v1144, 1.0
  %v1150 = vadd.f32 %v1146, 1.0
  %v1151 = vadd.f32 %v1148, 1.0
  %v1152 = vrcp.pop %v1149
  %v1153 = vmul.f32 %v1149, %v1152
  %v1154 = vsub.f32 1.0, %v1153
  %v1155 = vmul.f32 %v1152, %v1154
  %v1156 = vadd.f32 %v1152, %v1155
  %vm1157 = vweird.f32 %v1149
  %vm1158 = vweird.f32 %v1152
  %vm1159 = vmor %vm1157, %vm1158
  %v1160 = vsel %vm1159, %v1152, %v1156
  %v1161 = vand.u32 2147483647, %v1149
  %vm1162 = vcmp.eq.f32.partialorder %v1161, 8.507059e+37
  %v1163 = vand.u32 %v1149, 2147483648
  %v1164 = vor.u32 1.1754944e-38, %v1163
  %v1165 = vsel %vm1162, %v1164, %v1160
  %v1166 = vmul.f32 1.0, %v1165
  %v1167 = vrcp.pop %v1150
  %v1168 = vmul.f32 %v1150, %v1167
  %v1169 = vsub.f32 1.0, %v1168
  %v1170 = vmul.f32 %v1167, %v1169
  %v1171 = vadd.f32 %v1167, %v1170
  %vm1172 = vweird.f32 %v1150
  %vm1173 = vweird.f32 %v1167
  %vm1174 = vmor %vm1172, %vm1173
  %v1175 = vsel %vm1174, %v1167, %v1171
  %v1176 = vand.u32 2147483647, %v1150
  %vm1177 = vcmp.eq.f32.partialorder %v1176, 8.507059e+37
  %v1178 = vand.u32 %v1150, 2147483648
  %v1179 = vor.u32 1.1754944e-38, %v1178
  %v1180 = vsel %vm1177, %v1179, %v1175
  %v1181 = vmul.f32 1.0, %v1180
  %v1182 = vrcp.pop %v1151
  %v1183 = vmul.f32 %v1151, %v1182
  %v1184 = vsub.f32 1.0, %v1183
  %v1185 = vmul.f32 %v1182, %v1184
  %v1186 = vadd.f32 %v1182, %v1185
  %vm1187 = vweird.f32 %v1151
  %vm1188 = vweird.f32 %v1182
  %vm1189 = vmor %vm1187, %vm1188
  %v1190 = vsel %vm1189, %v1182, %v1186
  %v1191 = vand.u32 2147483647, %v1151
  %vm1192 = vcmp.eq.f32.partialorder %v1191, 8.507059e+37
  %v1193 = vand.u32 %v1151, 2147483648
  %v1194 = vor.u32 1.1754944e-38, %v1193
  %v1195 = vsel %vm1192, %v1194, %v1190
  %v1196 = vmul.f32 1.0, %v1195
  %v1197 = vtanh.pop %v1139
  %v1198 = vmul.f32 %v1181, %v881
  %v1199 = vmul.f32 %v1166, %v1197
  %v1200 = vadd.f32 %v1198, %v1199
  %v1201 = vtanh.pop %v1200
  %v1202 = vmul.f32 %v1196, %v1201
  %s1203 = scalar_lea.vmem [#allocation3], 24
  %1204 = vst [vmem:[%s1203] sm:$0xff] %v1202
  %s1205 = scalar_lea.vmem [#allocation2], 96
  %v1206 = vld [vmem:[%s1205] sm:$0xff]
  %v1207 = vld [vmem:[%s1205 + $0x8] sm:$0xff]
  %v1208 = vld [vmem:[%s1205 + $0x10] sm:$0xff]
  %v1209 = vld [vmem:[%s1205 + $0x18] sm:$0xff]
  %v1210 = vpack.c.bf16 %v1202, %v1202
  %v1211 = vld [vmem:[%s3] sm:$0xff]
  %v1212 = vld [vmem:[%s3 + $0x8] sm:$0xff]
  %v1213 = vld [vmem:[%s3 + $0x10] sm:$0xff]
  %v1214 = vld [vmem:[%s3 + $0x18] sm:$0xff]
  %v1215 = vld [vmem:[%s3 + $0x20] sm:$0xff]
  %v1216 = vld [vmem:[%s3 + $0x28] sm:$0xff]
  %v1217 = vld [vmem:[%s3 + $0x30] sm:$0xff]
  %v1218 = vld [vmem:[%s3 + $0x38] sm:$0xff]
  %v1219 = vld [vmem:[%s3 + $0x40] sm:$0xff]
  %v1220 = vld [vmem:[%s3 + $0x48] sm:$0xff]
  %v1221 = vld [vmem:[%s3 + $0x50] sm:$0xff]
  %v1222 = vld [vmem:[%s3 + $0x58] sm:$0xff]
  %v1223 = vld [vmem:[%s3 + $0x60] sm:$0xff]
  %v1224 = vld [vmem:[%s3 + $0x68] sm:$0xff]
  %v1225 = vld [vmem:[%s3 + $0x70] sm:$0xff]
  %v1226 = vld [vmem:[%s3 + $0x78] sm:$0xff]
  %v1227 = vld [vmem:[%s3 + $0x80] sm:$0xff]
  %v1228 = vld [vmem:[%s3 + $0x88] sm:$0xff]
  %v1229 = vld [vmem:[%s3 + $0x90] sm:$0xff]
  %v1230 = vld [vmem:[%s3 + $0x98] sm:$0xff]
  %v1231 = vld [vmem:[%s3 + $0xa0] sm:$0xff]
  %v1232 = vld [vmem:[%s3 + $0xa8] sm:$0xff]
  %v1233 = vld [vmem:[%s3 + $0xb0] sm:$0xff]
  %v1234 = vld [vmem:[%s3 + $0xb8] sm:$0xff]
  %v1235 = vld [vmem:[%s3 + $0xc0] sm:$0xff]
  %v1236 = vld [vmem:[%s3 + $0xc8] sm:$0xff]
  %v1237 = vld [vmem:[%s3 + $0xd0] sm:$0xff]
  %v1238 = vld [vmem:[%s3 + $0xd8] sm:$0xff]
  %v1239 = vld [vmem:[%s3 + $0xe0] sm:$0xff]
  %v1240 = vld [vmem:[%s3 + $0xe8] sm:$0xff]
  %v1241 = vld [vmem:[%s3 + $0xf0] sm:$0xff]
  %v1242 = vld [vmem:[%s3 + $0xf8] sm:$0xff]
  %v1275 = vunpack.c.l.b16 %v1211
  %v1276 = vunpack.c.h.b16 %v1211
  %v1277 = vunpack.c.l.b16 %v1212
  %v1278 = vunpack.c.h.b16 %v1212
  %v1279 = vunpack.c.l.b16 %v1213
  %v1280 = vunpack.c.h.b16 %v1213
  %v1281 = vunpack.c.l.b16 %v1214
  %v1282 = vunpack.c.h.b16 %v1214
  %v1283 = vunpack.c.l.b16 %v1215
  %v1284 = vunpack.c.h.b16 %v1215
  %v1285 = vunpack.c.l.b16 %v1216
  %v1286 = vunpack.c.h.b16 %v1216
  %v1287 = vunpack.c.l.b16 %v1217
  %v1288 = vunpack.c.h.b16 %v1217
  %v1289 = vunpack.c.l.b16 %v1218
  %v1290 = vunpack.c.h.b16 %v1218
  %v1291 = vunpack.c.l.b16 %v1219
  %v1292 = vunpack.c.h.b16 %v1219
  %v1293 = vunpack.c.l.b16 %v1220
  %v1294 = vunpack.c.h.b16 %v1220
  %v1295 = vunpack.c.l.b16 %v1221
  %v1296 = vunpack.c.h.b16 %v1221
  %v1297 = vunpack.c.l.b16 %v1222
  %v1298 = vunpack.c.h.b16 %v1222
  %v1299 = vunpack.c.l.b16 %v1223
  %v1300 = vunpack.c.h.b16 %v1223
  %v1301 = vunpack.c.l.b16 %v1224
  %v1302 = vunpack.c.h.b16 %v1224
  %v1303 = vunpack.c.l.b16 %v1225
  %v1304 = vunpack.c.h.b16 %v1225
  %v1305 = vunpack.c.l.b16 %v1226
  %v1306 = vunpack.c.h.b16 %v1226
  %v1307 = vunpack.c.l.b16 %v1227
  %v1308 = vunpack.c.h.b16 %v1227
  %v1309 = vunpack.c.l.b16 %v1228
  %v1310 = vunpack.c.h.b16 %v1228
  %v1311 = vunpack.c.l.b16 %v1229
  %v1312 = vunpack.c.h.b16 %v1229
  %v1313 = vunpack.c.l.b16 %v1230
  %v1314 = vunpack.c.h.b16 %v1230
  %v1315 = vunpack.c.l.b16 %v1231
  %v1316 = vunpack.c.h.b16 %v1231
  %v1317 = vunpack.c.l.b16 %v1232
  %v1318 = vunpack.c.h.b16 %v1232
  %v1319 = vunpack.c.l.b16 %v1233
  %v1320 = vunpack.c.h.b16 %v1233
  %v1321 = vunpack.c.l.b16 %v1234
  %v1322 = vunpack.c.h.b16 %v1234
  %v1323 = vunpack.c.l.b16 %v1235
  %v1324 = vunpack.c.h.b16 %v1235
  %v1325 = vunpack.c.l.b16 %v1236
  %v1326 = vunpack.c.h.b16 %v1236
  %v1327 = vunpack.c.l.b16 %v1237
  %v1328 = vunpack.c.h.b16 %v1237
  %v1329 = vunpack.c.l.b16 %v1238
  %v1330 = vunpack.c.h.b16 %v1238
  %v1331 = vunpack.c.l.b16 %v1239
  %v1332 = vunpack.c.h.b16 %v1239
  %v1333 = vunpack.c.l.b16 %v1240
  %v1334 = vunpack.c.h.b16 %v1240
  %v1335 = vunpack.c.l.b16 %v1241
  %v1336 = vunpack.c.h.b16 %v1241
  %v1337 = vunpack.c.l.b16 %v1242
  %v1338 = vunpack.c.h.b16 %v1242
  %v1339 = vpack.c.b16 %v1279, %v1275
  %v1340 = vpack.c.b16 %v1280, %v1276
  %v1341 = vpack.c.b16 %v1281, %v1277
  %v1342 = vpack.c.b16 %v1282, %v1278
  %v1343 = vpack.c.b16 %v1287, %v1283
  %v1344 = vpack.c.b16 %v1288, %v1284
  %v1345 = vpack.c.b16 %v1289, %v1285
  %v1346 = vpack.c.b16 %v1290, %v1286
  %v1347 = vpack.c.b16 %v1295, %v1291
  %v1348 = vpack.c.b16 %v1296, %v1292
  %v1349 = vpack.c.b16 %v1297, %v1293
  %v1350 = vpack.c.b16 %v1298, %v1294
  %v1351 = vpack.c.b16 %v1303, %v1299
  %v1352 = vpack.c.b16 %v1304, %v1300
  %v1353 = vpack.c.b16 %v1305, %v1301
  %v1354 = vpack.c.b16 %v1306, %v1302
  %v1355 = vpack.c.b16 %v1311, %v1307
  %v1356 = vpack.c.b16 %v1312, %v1308
  %v1357 = vpack.c.b16 %v1313, %v1309
  %v1358 = vpack.c.b16 %v1314, %v1310
  %v1359 = vpack.c.b16 %v1319, %v1315
  %v1360 = vpack.c.b16 %v1320, %v1316
  %v1361 = vpack.c.b16 %v1321, %v1317
  %v1362 = vpack.c.b16 %v1322, %v1318
  %v1363 = vpack.c.b16 %v1327, %v1323
  %v1364 = vpack.c.b16 %v1328, %v1324
  %v1365 = vpack.c.b16 %v1329, %v1325
  %v1366 = vpack.c.b16 %v1330, %v1326
  %v1367 = vpack.c.b16 %v1335, %v1331
  %v1368 = vpack.c.b16 %v1336, %v1332
  %v1369 = vpack.c.b16 %v1337, %v1333
  %v1370 = vpack.c.b16 %v1338, %v1334
  %1403 = vmatpush.bf16.msra.mxu0 %v1367
  %1404 = vmatpush.bf16.msra.mxu0 %v1363
  %1405 = vmatpush.bf16.msra.mxu0 %v1359
  %1406 = vmatpush.bf16.msra.mxu0 %v1355
  %1407 = vmatpush.bf16.msra.mxu0 %v1351
  %1408 = vmatpush.bf16.msra.mxu0 %v1347
  %1409 = vmatpush.bf16.msra.mxu0 %v1343
  %1410 = vmatpush.bf16.msra.mxu0 %v1339
  %1411 = vmatmul.bf16.gmra.mxu0 %v1210
  %v1412 = vpop.f32.mrf.mxu0
  %v1413 = vadd.f32 0.0, %v1412
  %v1414 = vpop.f32.mrf.mxu0
  %1415 = vdwg.mxu0
  %1416 = vmatpush.bf16.msra.mxu0 %v1368
  %1417 = vmatpush.bf16.msra.mxu0 %v1364
  %1418 = vmatpush.bf16.msra.mxu0 %v1360
  %1419 = vmatpush.bf16.msra.mxu0 %v1356
  %1420 = vmatpush.bf16.msra.mxu0 %v1352
  %1421 = vmatpush.bf16.msra.mxu0 %v1348
  %1422 = vmatpush.bf16.msra.mxu0 %v1344
  %1423 = vmatpush.bf16.msra.mxu0 %v1340
  %1424 = vmatmul.bf16.gmra.mxu0 %v1210
  %v1425 = vpop.f32.mrf.mxu0
  %v1426 = vadd.f32 0.0, %v1425
  %v1427 = vpop.f32.mrf.mxu0
  %1428 = vdwg.mxu0
  %1429 = vmatpush.bf16.msra.mxu0 %v1369
  %1430 = vmatpush.bf16.msra.mxu0 %v1365
  %1431 = vmatpush.bf16.msra.mxu0 %v1361
  %1432 = vmatpush.bf16.msra.mxu0 %v1357
  %1433 = vmatpush.bf16.msra.mxu0 %v1353
  %1434 = vmatpush.bf16.msra.mxu0 %v1349
  %1435 = vmatpush.bf16.msra.mxu0 %v1345
  %1436 = vmatpush.bf16.msra.mxu0 %v1341
  %1437 = vmatmul.bf16.gmra.mxu0 %v1210
  %v1438 = vpop.f32.mrf.mxu0
  %v1439 = vadd.f32 0.0, %v1438
  %v1440 = vpop.f32.mrf.mxu0
  %1441 = vdwg.mxu0
  %1442 = vmatpush.bf16.msra.mxu0 %v1370
  %1443 = vmatpush.bf16.msra.mxu0 %v1366
  %1444 = vmatpush.bf16.msra.mxu0 %v1362
  %1445 = vmatpush.bf16.msra.mxu0 %v1358
  %1446 = vmatpush.bf16.msra.mxu0 %v1354
  %1447 = vmatpush.bf16.msra.mxu0 %v1350
  %1448 = vmatpush.bf16.msra.mxu0 %v1346
  %1449 = vmatpush.bf16.msra.mxu0 %v1342
  %1450 = vmatmul.bf16.gmra.mxu0 %v1210
  %v1451 = vpop.f32.mrf.mxu0
  %v1452 = vadd.f32 0.0, %v1451
  %v1453 = vpop.f32.mrf.mxu0
  %1454 = vdwg.mxu0
  %v1455 = vadd.f32 %v1206, %v1413
  %v1456 = vadd.f32 %v1207, %v1426
  %v1457 = vadd.f32 %v1208, %v1439
  %v1458 = vadd.f32 %v1209, %v1452
  %v1459 = vxor.u32 %v1455, 2147483648
  %v1460 = vxor.u32 %v1456, 2147483648
  %v1461 = vxor.u32 %v1457, 2147483648
  %v1462 = vmul.f32 %v1459, 1.442695
  %v1463 = vpow.pop %v1462
  %v1464 = vmul.f32 %v1460, 1.442695
  %v1465 = vpow.pop %v1464
  %v1466 = vmul.f32 %v1461, 1.442695
  %v1467 = vpow.pop %v1466
  %v1468 = vadd.f32 %v1463, 1.0
  %v1469 = vadd.f32 %v1465, 1.0
  %v1470 = vadd.f32 %v1467, 1.0
  %v1471 = vrcp.pop %v1468
  %v1472 = vmul.f32 %v1468, %v1471
  %v1473 = vsub.f32 1.0, %v1472
  %v1474 = vmul.f32 %v1471, %v1473
  %v1475 = vadd.f32 %v1471, %v1474
  %vm1476 = vweird.f32 %v1468
  %vm1477 = vweird.f32 %v1471
  %vm1478 = vmor %vm1476, %vm1477
  %v1479 = vsel %vm1478, %v1471, %v1475
  %v1480 = vand.u32 2147483647, %v1468
  %vm1481 = vcmp.eq.f32.partialorder %v1480, 8.507059e+37
  %v1482 = vand.u32 %v1468, 2147483648
  %v1483 = vor.u32 1.1754944e-38, %v1482
  %v1484 = vsel %vm1481, %v1483, %v1479
  %v1485 = vmul.f32 1.0, %v1484
  %v1486 = vrcp.pop %v1469
  %v1487 = vmul.f32 %v1469, %v1486
  %v1488 = vsub.f32 1.0, %v1487
  %v1489 = vmul.f32 %v1486, %v1488
  %v1490 = vadd.f32 %v1486, %v1489
  %vm1491 = vweird.f32 %v1469
  %vm1492 = vweird.f32 %v1486
  %vm1493 = vmor %vm1491, %vm1492
  %v1494 = vsel %vm1493, %v1486, %v1490
  %v1495 = vand.u32 2147483647, %v1469
  %vm1496 = vcmp.eq.f32.partialorder %v1495, 8.507059e+37
  %v1497 = vand.u32 %v1469, 2147483648
  %v1498 = vor.u32 1.1754944e-38, %v1497
  %v1499 = vsel %vm1496, %v1498, %v1494
  %v1500 = vmul.f32 1.0, %v1499
  %v1501 = vrcp.pop %v1470
  %v1502 = vmul.f32 %v1470, %v1501
  %v1503 = vsub.f32 1.0, %v1502
  %v1504 = vmul.f32 %v1501, %v1503
  %v1505 = vadd.f32 %v1501, %v1504
  %vm1506 = vweird.f32 %v1470
  %vm1507 = vweird.f32 %v1501
  %vm1508 = vmor %vm1506, %vm1507
  %v1509 = vsel %vm1508, %v1501, %v1505
  %v1510 = vand.u32 2147483647, %v1470
  %vm1511 = vcmp.eq.f32.partialorder %v1510, 8.507059e+37
  %v1512 = vand.u32 %v1470, 2147483648
  %v1513 = vor.u32 1.1754944e-38, %v1512
  %v1514 = vsel %vm1511, %v1513, %v1509
  %v1515 = vmul.f32 1.0, %v1514
  %v1516 = vtanh.pop %v1458
  %v1517 = vmul.f32 %v1500, %v1200
  %v1518 = vmul.f32 %v1485, %v1516
  %v1519 = vadd.f32 %v1517, %v1518
  %v1520 = vtanh.pop %v1519
  %v1521 = vmul.f32 %v1515, %v1520
  %s1522 = scalar_lea.vmem [#allocation3], 32
  %1523 = vst [vmem:[%s1522] sm:$0xff] %v1521
  %s1524 = scalar_lea.vmem [#allocation2], 128
  %v1525 = vld [vmem:[%s1524] sm:$0xff]
  %v1526 = vld [vmem:[%s1524 + $0x8] sm:$0xff]
  %v1527 = vld [vmem:[%s1524 + $0x10] sm:$0xff]
  %v1528 = vld [vmem:[%s1524 + $0x18] sm:$0xff]
  %v1529 = vpack.c.bf16 %v1521, %v1521
  %v1530 = vld [vmem:[%s3] sm:$0xff]
  %v1531 = vld [vmem:[%s3 + $0x8] sm:$0xff]
  %v1532 = vld [vmem:[%s3 + $0x10] sm:$0xff]
  %v1533 = vld [vmem:[%s3 + $0x18] sm:$0xff]
  %v1534 = vld [vmem:[%s3 + $0x20] sm:$0xff]
  %v1535 = vld [vmem:[%s3 + $0x28] sm:$0xff]
  %v1536 = vld [vmem:[%s3 + $0x30] sm:$0xff]
  %v1537 = vld [vmem:[%s3 + $0x38] sm:$0xff]
  %v1538 = vld [vmem:[%s3 + $0x40] sm:$0xff]
  %v1539 = vld [vmem:[%s3 + $0x48] sm:$0xff]
  %v1540 = vld [vmem:[%s3 + $0x50] sm:$0xff]
  %v1541 = vld [vmem:[%s3 + $0x58] sm:$0xff]
  %v1542 = vld [vmem:[%s3 + $0x60] sm:$0xff]
  %v1543 = vld [vmem:[%s3 + $0x68] sm:$0xff]
  %v1544 = vld [vmem:[%s3 + $0x70] sm:$0xff]
  %v1545 = vld [vmem:[%s3 + $0x78] sm:$0xff]
  %v1546 = vld [vmem:[%s3 + $0x80] sm:$0xff]
  %v1547 = vld [vmem:[%s3 + $0x88] sm:$0xff]
  %v1548 = vld [vmem:[%s3 + $0x90] sm:$0xff]
  %v1549 = vld [vmem:[%s3 + $0x98] sm:$0xff]
  %v1550 = vld [vmem:[%s3 + $0xa0] sm:$0xff]
  %v1551 = vld [vmem:[%s3 + $0xa8] sm:$0xff]
  %v1552 = vld [vmem:[%s3 + $0xb0] sm:$0xff]
  %v1553 = vld [vmem:[%s3 + $0xb8] sm:$0xff]
  %v1554 = vld [vmem:[%s3 + $0xc0] sm:$0xff]
  %v1555 = vld [vmem:[%s3 + $0xc8] sm:$0xff]
  %v1556 = vld [vmem:[%s3 + $0xd0] sm:$0xff]
  %v1557 = vld [vmem:[%s3 + $0xd8] sm:$0xff]
  %v1558 = vld [vmem:[%s3 + $0xe0] sm:$0xff]
  %v1559 = vld [vmem:[%s3 + $0xe8] sm:$0xff]
  %v1560 = vld [vmem:[%s3 + $0xf0] sm:$0xff]
  %v1561 = vld [vmem:[%s3 + $0xf8] sm:$0xff]
  %v1594 = vunpack.c.l.b16 %v1530
  %v1595 = vunpack.c.h.b16 %v1530
  %v1596 = vunpack.c.l.b16 %v1531
  %v1597 = vunpack.c.h.b16 %v1531
  %v1598 = vunpack.c.l.b16 %v1532
  %v1599 = vunpack.c.h.b16 %v1532
  %v1600 = vunpack.c.l.b16 %v1533
  %v1601 = vunpack.c.h.b16 %v1533
  %v1602 = vunpack.c.l.b16 %v1534
  %v1603 = vunpack.c.h.b16 %v1534
  %v1604 = vunpack.c.l.b16 %v1535
  %v1605 = vunpack.c.h.b16 %v1535
  %v1606 = vunpack.c.l.b16 %v1536
  %v1607 = vunpack.c.h.b16 %v1536
  %v1608 = vunpack.c.l.b16 %v1537
  %v1609 = vunpack.c.h.b16 %v1537
  %v1610 = vunpack.c.l.b16 %v1538
  %v1611 = vunpack.c.h.b16 %v1538
  %v1612 = vunpack.c.l.b16 %v1539
  %v1613 = vunpack.c.h.b16 %v1539
  %v1614 = vunpack.c.l.b16 %v1540
  %v1615 = vunpack.c.h.b16 %v1540
  %v1616 = vunpack.c.l.b16 %v1541
  %v1617 = vunpack.c.h.b16 %v1541
  %v1618 = vunpack.c.l.b16 %v1542
  %v1619 = vunpack.c.h.b16 %v1542
  %v1620 = vunpack.c.l.b16 %v1543
  %v1621 = vunpack.c.h.b16 %v1543
  %v1622 = vunpack.c.l.b16 %v1544
  %v1623 = vunpack.c.h.b16 %v1544
  %v1624 = vunpack.c.l.b16 %v1545
  %v1625 = vunpack.c.h.b16 %v1545
  %v1626 = vunpack.c.l.b16 %v1546
  %v1627 = vunpack.c.h.b16 %v1546
  %v1628 = vunpack.c.l.b16 %v1547
  %v1629 = vunpack.c.h.b16 %v1547
  %v1630 = vunpack.c.l.b16 %v1548
  %v1631 = vunpack.c.h.b16 %v1548
  %v1632 = vunpack.c.l.b16 %v1549
  %v1633 = vunpack.c.h.b16 %v1549
  %v1634 = vunpack.c.l.b16 %v1550
  %v1635 = vunpack.c.h.b16 %v1550
  %v1636 = vunpack.c.l.b16 %v1551
  %v1637 = vunpack.c.h.b16 %v1551
  %v1638 = vunpack.c.l.b16 %v1552
  %v1639 = vunpack.c.h.b16 %v1552
  %v1640 = vunpack.c.l.b16 %v1553
  %v1641 = vunpack.c.h.b16 %v1553
  %v1642 = vunpack.c.l.b16 %v1554
  %v1643 = vunpack.c.h.b16 %v1554
  %v1644 = vunpack.c.l.b16 %v1555
  %v1645 = vunpack.c.h.b16 %v1555
  %v1646 = vunpack.c.l.b16 %v1556
  %v1647 = vunpack.c.h.b16 %v1556
  %v1648 = vunpack.c.l.b16 %v1557
  %v1649 = vunpack.c.h.b16 %v1557
  %v1650 = vunpack.c.l.b16 %v1558
  %v1651 = vunpack.c.h.b16 %v1558
  %v1652 = vunpack.c.l.b16 %v1559
  %v1653 = vunpack.c.h.b16 %v1559
  %v1654 = vunpack.c.l.b16 %v1560
  %v1655 = vunpack.c.h.b16 %v1560
  %v1656 = vunpack.c.l.b16 %v1561
  %v1657 = vunpack.c.h.b16 %v1561
  %v1658 = vpack.c.b16 %v1598, %v1594
  %v1659 = vpack.c.b16 %v1599, %v1595
  %v1660 = vpack.c.b16 %v1600, %v1596
  %v1661 = vpack.c.b16 %v1601, %v1597
  %v1662 = vpack.c.b16 %v1606, %v1602
  %v1663 = vpack.c.b16 %v1607, %v1603
  %v1664 = vpack.c.b16 %v1608, %v1604
  %v1665 = vpack.c.b16 %v1609, %v1605
  %v1666 = vpack.c.b16 %v1614, %v1610
  %v1667 = vpack.c.b16 %v1615, %v1611
  %v1668 = vpack.c.b16 %v1616, %v1612
  %v1669 = vpack.c.b16 %v1617, %v1613
  %v1670 = vpack.c.b16 %v1622, %v1618
  %v1671 = vpack.c.b16 %v1623, %v1619
  %v1672 = vpack.c.b16 %v1624, %v1620
  %v1673 = vpack.c.b16 %v1625, %v1621
  %v1674 = vpack.c.b16 %v1630, %v1626
  %v1675 = vpack.c.b16 %v1631, %v1627
  %v1676 = vpack.c.b16 %v1632, %v1628
  %v1677 = vpack.c.b16 %v1633, %v1629
  %v1678 = vpack.c.b16 %v1638, %v1634
  %v1679 = vpack.c.b16 %v1639, %v1635
  %v1680 = vpack.c.b16 %v1640, %v1636
  %v1681 = vpack.c.b16 %v1641, %v1637
  %v1682 = vpack.c.b16 %v1646, %v1642
  %v1683 = vpack.c.b16 %v1647, %v1643
  %v1684 = vpack.c.b16 %v1648, %v1644
  %v1685 = vpack.c.b16 %v1649, %v1645
  %v1686 = vpack.c.b16 %v1654, %v1650
  %v1687 = vpack.c.b16 %v1655, %v1651
  %v1688 = vpack.c.b16 %v1656, %v1652
  %v1689 = vpack.c.b16 %v1657, %v1653
  %1722 = vmatpush.bf16.msra.mxu0 %v1686
  %1723 = vmatpush.bf16.msra.mxu0 %v1682
  %1724 = vmatpush.bf16.msra.mxu0 %v1678
  %1725 = vmatpush.bf16.msra.mxu0 %v1674
  %1726 = vmatpush.bf16.msra.mxu0 %v1670
  %1727 = vmatpush.bf16.msra.mxu0 %v1666
  %1728 = vmatpush.bf16.msra.mxu0 %v1662
  %1729 = vmatpush.bf16.msra.mxu0 %v1658
  %1730 = vmatmul.bf16.gmra.mxu0 %v1529
  %v1731 = vpop.f32.mrf.mxu0
  %v1732 = vadd.f32 0.0, %v1731
  %v1733 = vpop.f32.mrf.mxu0
  %1734 = vdwg.mxu0
  %1735 = vmatpush.bf16.msra.mxu0 %v1687
  %1736 = vmatpush.bf16.msra.mxu0 %v1683
  %1737 = vmatpush.bf16.msra.mxu0 %v1679
  %1738 = vmatpush.bf16.msra.mxu0 %v1675
  %1739 = vmatpush.bf16.msra.mxu0 %v1671
  %1740 = vmatpush.bf16.msra.mxu0 %v1667
  %1741 = vmatpush.bf16.msra.mxu0 %v1663
  %1742 = vmatpush.bf16.msra.mxu0 %v1659
  %1743 = vmatmul.bf16.gmra.mxu0 %v1529
  %v1744 = vpop.f32.mrf.mxu0
  %v1745 = vadd.f32 0.0, %v1744
  %v1746 = vpop.f32.mrf.mxu0
  %1747 = vdwg.mxu0
  %1748 = vmatpush.bf16.msra.mxu0 %v1688
  %1749 = vmatpush.bf16.msra.mxu0 %v1684
  %1750 = vmatpush.bf16.msra.mxu0 %v1680
  %1751 = vmatpush.bf16.msra.mxu0 %v1676
  %1752 = vmatpush.bf16.msra.mxu0 %v1672
  %1753 = vmatpush.bf16.msra.mxu0 %v1668
  %1754 = vmatpush.bf16.msra.mxu0 %v1664
  %1755 = vmatpush.bf16.msra.mxu0 %v1660
  %1756 = vmatmul.bf16.gmra.mxu0 %v1529
  %v1757 = vpop.f32.mrf.mxu0
  %v1758 = vadd.f32 0.0, %v1757
  %v1759 = vpop.f32.mrf.mxu0
  %1760 = vdwg.mxu0
  %1761 = vmatpush.bf16.msra.mxu0 %v1689
  %1762 = vmatpush.bf16.msra.mxu0 %v1685
  %1763 = vmatpush.bf16.msra.mxu0 %v1681
  %1764 = vmatpush.bf16.msra.mxu0 %v1677
  %1765 = vmatpush.bf16.msra.mxu0 %v1673
  %1766 = vmatpush.bf16.msra.mxu0 %v1669
  %1767 = vmatpush.bf16.msra.mxu0 %v1665
  %1768 = vmatpush.bf16.msra.mxu0 %v1661
  %1769 = vmatmul.bf16.gmra.mxu0 %v1529
  %v1770 = vpop.f32.mrf.mxu0
  %v1771 = vadd.f32 0.0, %v1770
  %v1772 = vpop.f32.mrf.mxu0
  %1773 = vdwg.mxu0
  %v1774 = vadd.f32 %v1525, %v1732
  %v1775 = vadd.f32 %v1526, %v1745
  %v1776 = vadd.f32 %v1527, %v1758
  %v1777 = vadd.f32 %v1528, %v1771
  %v1778 = vxor.u32 %v1774, 2147483648
  %v1779 = vxor.u32 %v1775, 2147483648
  %v1780 = vxor.u32 %v1776, 2147483648
  %v1781 = vmul.f32 %v1778, 1.442695
  %v1782 = vpow.pop %v1781
  %v1783 = vmul.f32 %v1779, 1.442695
  %v1784 = vpow.pop %v1783
  %v1785 = vmul.f32 %v1780, 1.442695
  %v1786 = vpow.pop %v1785
  %v1787 = vadd.f32 %v1782, 1.0
  %v1788 = vadd.f32 %v1784, 1.0
  %v1789 = vadd.f32 %v1786, 1.0
  %v1790 = vrcp.pop %v1787
  %v1791 = vmul.f32 %v1787, %v1790
  %v1792 = vsub.f32 1.0, %v1791
  %v1793 = vmul.f32 %v1790, %v1792
  %v1794 = vadd.f32 %v1790, %v1793
  %vm1795 = vweird.f32 %v1787
  %vm1796 = vweird.f32 %v1790
  %vm1797 = vmor %vm1795, %vm1796
  %v1798 = vsel %vm1797, %v1790, %v1794
  %v1799 = vand.u32 2147483647, %v1787
  %vm1800 = vcmp.eq.f32.partialorder %v1799, 8.507059e+37
  %v1801 = vand.u32 %v1787, 2147483648
  %v1802 = vor.u32 1.1754944e-38, %v1801
  %v1803 = vsel %vm1800, %v1802, %v1798
  %v1804 = vmul.f32 1.0, %v1803
  %v1805 = vrcp.pop %v1788
  %v1806 = vmul.f32 %v1788, %v1805
  %v1807 = vsub.f32 1.0, %v1806
  %v1808 = vmul.f32 %v1805, %v1807
  %v1809 = vadd.f32 %v1805, %v1808
  %vm1810 = vweird.f32 %v1788
  %vm1811 = vweird.f32 %v1805
  %vm1812 = vmor %vm1810, %vm1811
  %v1813 = vsel %vm1812, %v1805, %v1809
  %v1814 = vand.u32 2147483647, %v1788
  %vm1815 = vcmp.eq.f32.partialorder %v1814, 8.507059e+37
  %v1816 = vand.u32 %v1788, 2147483648
  %v1817 = vor.u32 1.1754944e-38, %v1816
  %v1818 = vsel %vm1815, %v1817, %v1813
  %v1819 = vmul.f32 1.0, %v1818
  %v1820 = vrcp.pop %v1789
  %v1821 = vmul.f32 %v1789, %v1820
  %v1822 = vsub.f32 1.0, %v1821
  %v1823 = vmul.f32 %v1820, %v1822
  %v1824 = vadd.f32 %v1820, %v1823
  %vm1825 = vweird.f32 %v1789
  %vm1826 = vweird.f32 %v1820
  %vm1827 = vmor %vm1825, %vm1826
  %v1828 = vsel %vm1827, %v1820, %v1824
  %v1829 = vand.u32 2147483647, %v1789
  %vm1830 = vcmp.eq.f32.partialorder %v1829, 8.507059e+37
  %v1831 = vand.u32 %v1789, 2147483648
  %v1832 = vor.u32 1.1754944e-38, %v1831
  %v1833 = vsel %vm1830, %v1832, %v1828
  %v1834 = vmul.f32 1.0, %v1833
  %v1835 = vtanh.pop %v1777
  %v1836 = vmul.f32 %v1819, %v1519
  %v1837 = vmul.f32 %v1804, %v1835
  %v1838 = vadd.f32 %v1836, %v1837
  %v1839 = vtanh.pop %v1838
  %v1840 = vmul.f32 %v1834, %v1839
  %s1841 = scalar_lea.vmem [#allocation3], 40
  %1842 = vst [vmem:[%s1841] sm:$0xff] %v1840
  %s1843 = scalar_lea.vmem [#allocation2], 160
  %v1844 = vld [vmem:[%s1843] sm:$0xff]
  %v1845 = vld [vmem:[%s1843 + $0x8] sm:$0xff]
  %v1846 = vld [vmem:[%s1843 + $0x10] sm:$0xff]
  %v1847 = vld [vmem:[%s1843 + $0x18] sm:$0xff]
  %v1848 = vpack.c.bf16 %v1840, %v1840
  %v1849 = vld [vmem:[%s3] sm:$0xff]
  %v1850 = vld [vmem:[%s3 + $0x8] sm:$0xff]
  %v1851 = vld [vmem:[%s3 + $0x10] sm:$0xff]
  %v1852 = vld [vmem:[%s3 + $0x18] sm:$0xff]
  %v1853 = vld [vmem:[%s3 + $0x20] sm:$0xff]
  %v1854 = vld [vmem:[%s3 + $0x28] sm:$0xff]
  %v1855 = vld [vmem:[%s3 + $0x30] sm:$0xff]
  %v1856 = vld [vmem:[%s3 + $0x38] sm:$0xff]
  %v1857 = vld [vmem:[%s3 + $0x40] sm:$0xff]
  %v1858 = vld [vmem:[%s3 + $0x48] sm:$0xff]
  %v1859 = vld [vmem:[%s3 + $0x50] sm:$0xff]
  %v1860 = vld [vmem:[%s3 + $0x58] sm:$0xff]
  %v1861 = vld [vmem:[%s3 + $0x60] sm:$0xff]
  %v1862 = vld [vmem:[%s3 + $0x68] sm:$0xff]
  %v1863 = vld [vmem:[%s3 + $0x70] sm:$0xff]
  %v1864 = vld [vmem:[%s3 + $0x78] sm:$0xff]
  %v1865 = vld [vmem:[%s3 + $0x80] sm:$0xff]
  %v1866 = vld [vmem:[%s3 + $0x88] sm:$0xff]
  %v1867 = vld [vmem:[%s3 + $0x90] sm:$0xff]
  %v1868 = vld [vmem:[%s3 + $0x98] sm:$0xff]
  %v1869 = vld [vmem:[%s3 + $0xa0] sm:$0xff]
  %v1870 = vld [vmem:[%s3 + $0xa8] sm:$0xff]
  %v1871 = vld [vmem:[%s3 + $0xb0] sm:$0xff]
  %v1872 = vld [vmem:[%s3 + $0xb8] sm:$0xff]
  %v1873 = vld [vmem:[%s3 + $0xc0] sm:$0xff]
  %v1874 = vld [vmem:[%s3 + $0xc8] sm:$0xff]
  %v1875 = vld [vmem:[%s3 + $0xd0] sm:$0xff]
  %v1876 = vld [vmem:[%s3 + $0xd8] sm:$0xff]
  %v1877 = vld [vmem:[%s3 + $0xe0] sm:$0xff]
  %v1878 = vld [vmem:[%s3 + $0xe8] sm:$0xff]
  %v1879 = vld [vmem:[%s3 + $0xf0] sm:$0xff]
  %v1880 = vld [vmem:[%s3 + $0xf8] sm:$0xff]
  %v1913 = vunpack.c.l.b16 %v1849
  %v1914 = vunpack.c.h.b16 %v1849
  %v1915 = vunpack.c.l.b16 %v1850
  %v1916 = vunpack.c.h.b16 %v1850
  %v1917 = vunpack.c.l.b16 %v1851
  %v1918 = vunpack.c.h.b16 %v1851
  %v1919 = vunpack.c.l.b16 %v1852
  %v1920 = vunpack.c.h.b16 %v1852
  %v1921 = vunpack.c.l.b16 %v1853
  %v1922 = vunpack.c.h.b16 %v1853
  %v1923 = vunpack.c.l.b16 %v1854
  %v1924 = vunpack.c.h.b16 %v1854
  %v1925 = vunpack.c.l.b16 %v1855
  %v1926 = vunpack.c.h.b16 %v1855
  %v1927 = vunpack.c.l.b16 %v1856
  %v1928 = vunpack.c.h.b16 %v1856
  %v1929 = vunpack.c.l.b16 %v1857
  %v1930 = vunpack.c.h.b16 %v1857
  %v1931 = vunpack.c.l.b16 %v1858
  %v1932 = vunpack.c.h.b16 %v1858
  %v1933 = vunpack.c.l.b16 %v1859
  %v1934 = vunpack.c.h.b16 %v1859
  %v1935 = vunpack.c.l.b16 %v1860
  %v1936 = vunpack.c.h.b16 %v1860
  %v1937 = vunpack.c.l.b16 %v1861
  %v1938 = vunpack.c.h.b16 %v1861
  %v1939 = vunpack.c.l.b16 %v1862
  %v1940 = vunpack.c.h.b16 %v1862
  %v1941 = vunpack.c.l.b16 %v1863
  %v1942 = vunpack.c.h.b16 %v1863
  %v1943 = vunpack.c.l.b16 %v1864
  %v1944 = vunpack.c.h.b16 %v1864
  %v1945 = vunpack.c.l.b16 %v1865
  %v1946 = vunpack.c.h.b16 %v1865
  %v1947 = vunpack.c.l.b16 %v1866
  %v1948 = vunpack.c.h.b16 %v1866
  %v1949 = vunpack.c.l.b16 %v1867
  %v1950 = vunpack.c.h.b16 %v1867
  %v1951 = vunpack.c.l.b16 %v1868
  %v1952 = vunpack.c.h.b16 %v1868
  %v1953 = vunpack.c.l.b16 %v1869
  %v1954 = vunpack.c.h.b16 %v1869
  %v1955 = vunpack.c.l.b16 %v1870
  %v1956 = vunpack.c.h.b16 %v1870
  %v1957 = vunpack.c.l.b16 %v1871
  %v1958 = vunpack.c.h.b16 %v1871
  %v1959 = vunpack.c.l.b16 %v1872
  %v1960 = vunpack.c.h.b16 %v1872
  %v1961 = vunpack.c.l.b16 %v1873
  %v1962 = vunpack.c.h.b16 %v1873
  %v1963 = vunpack.c.l.b16 %v1874
  %v1964 = vunpack.c.h.b16 %v1874
  %v1965 = vunpack.c.l.b16 %v1875
  %v1966 = vunpack.c.h.b16 %v1875
  %v1967 = vunpack.c.l.b16 %v1876
  %v1968 = vunpack.c.h.b16 %v1876
  %v1969 = vunpack.c.l.b16 %v1877
  %v1970 = vunpack.c.h.b16 %v1877
  %v1971 = vunpack.c.l.b16 %v1878
  %v1972 = vunpack.c.h.b16 %v1878
  %v1973 = vunpack.c.l.b16 %v1879
  %v1974 = vunpack.c.h.b16 %v1879
  %v1975 = vunpack.c.l.b16 %v1880
  %v1976 = vunpack.c.h.b16 %v1880
  %v1977 = vpack.c.b16 %v1917, %v1913
  %v1978 = vpack.c.b16 %v1918, %v1914
  %v1979 = vpack.c.b16 %v1919, %v1915
  %v1980 = vpack.c.b16 %v1920, %v1916
  %v1981 = vpack.c.b16 %v1925, %v1921
  %v1982 = vpack.c.b16 %v1926, %v1922
  %v1983 = vpack.c.b16 %v1927, %v1923
  %v1984 = vpack.c.b16 %v1928, %v1924
  %v1985 = vpack.c.b16 %v1933, %v1929
  %v1986 = vpack.c.b16 %v1934, %v1930
  %v1987 = vpack.c.b16 %v1935, %v1931
  %v1988 = vpack.c.b16 %v1936, %v1932
  %v1989 = vpack.c.b16 %v1941, %v1937
  %v1990 = vpack.c.b16 %v1942, %v1938
  %v1991 = vpack.c.b16 %v1943, %v1939
  %v1992 = vpack.c.b16 %v1944, %v1940
  %v1993 = vpack.c.b16 %v1949, %v1945
  %v1994 = vpack.c.b16 %v1950, %v1946
  %v1995 = vpack.c.b16 %v1951, %v1947
  %v1996 = vpack.c.b16 %v1952, %v1948
  %v1997 = vpack.c.b16 %v1957, %v1953
  %v1998 = vpack.c.b16 %v1958, %v1954
  %v1999 = vpack.c.b16 %v1959, %v1955
  %v2000 = vpack.c.b16 %v1960, %v1956
  %v2001 = vpack.c.b16 %v1965, %v1961
  %v2002 = vpack.c.b16 %v1966, %v1962
  %v2003 = vpack.c.b16 %v1967, %v1963
  %v2004 = vpack.c.b16 %v1968, %v1964
  %v2005 = vpack.c.b16 %v1973, %v1969
  %v2006 = vpack.c.b16 %v1974, %v1970
  %v2007 = vpack.c.b16 %v1975, %v1971
  %v2008 = vpack.c.b16 %v1976, %v1972
  %2041 = vmatpush.bf16.msra.mxu0 %v2005
  %2042 = vmatpush.bf16.msra.mxu0 %v2001
  %2043 = vmatpush.bf16.msra.mxu0 %v1997
  %2044 = vmatpush.bf16.msra.mxu0 %v1993
  %2045 = vmatpush.bf16.msra.mxu0 %v1989
  %2046 = vmatpush.bf16.msra.mxu0 %v1985
  %2047 = vmatpush.bf16.msra.mxu0 %v1981
  %2048 = vmatpush.bf16.msra.mxu0 %v1977
  %2049 = vmatmul.bf16.gmra.mxu0 %v1848
  %v2050 = vpop.f32.mrf.mxu0
  %v2051 = vadd.f32 0.0, %v2050
  %v2052 = vpop.f32.mrf.mxu0
  %2053 = vdwg.mxu0
  %2054 = vmatpush.bf16.msra.mxu0 %v2006
  %2055 = vmatpush.bf16.msra.mxu0 %v2002
  %2056 = vmatpush.bf16.msra.mxu0 %v1998
  %2057 = vmatpush.bf16.msra.mxu0 %v1994
  %2058 = vmatpush.bf16.msra.mxu0 %v1990
  %2059 = vmatpush.bf16.msra.mxu0 %v1986
  %2060 = vmatpush.bf16.msra.mxu0 %v1982
  %2061 = vmatpush.bf16.msra.mxu0 %v1978
  %2062 = vmatmul.bf16.gmra.mxu0 %v1848
  %v2063 = vpop.f32.mrf.mxu0
  %v2064 = vadd.f32 0.0, %v2063
  %v2065 = vpop.f32.mrf.mxu0
  %2066 = vdwg.mxu0
  %2067 = vmatpush.bf16.msra.mxu0 %v2007
  %2068 = vmatpush.bf16.msra.mxu0 %v2003
  %2069 = vmatpush.bf16.msra.mxu0 %v1999
  %2070 = vmatpush.bf16.msra.mxu0 %v1995
  %2071 = vmatpush.bf16.msra.mxu0 %v1991
  %2072 = vmatpush.bf16.msra.mxu0 %v1987
  %2073 = vmatpush.bf16.msra.mxu0 %v1983
  %2074 = vmatpush.bf16.msra.mxu0 %v1979
  %2075 = vmatmul.bf16.gmra.mxu0 %v1848
  %v2076 = vpop.f32.mrf.mxu0
  %v2077 = vadd.f32 0.0, %v2076
  %v2078 = vpop.f32.mrf.mxu0
  %2079 = vdwg.mxu0
  %2080 = vmatpush.bf16.msra.mxu0 %v2008
  %2081 = vmatpush.bf16.msra.mxu0 %v2004
  %2082 = vmatpush.bf16.msra.mxu0 %v2000
  %2083 = vmatpush.bf16.msra.mxu0 %v1996
  %2084 = vmatpush.bf16.msra.mxu0 %v1992
  %2085 = vmatpush.bf16.msra.mxu0 %v1988
  %2086 = vmatpush.bf16.msra.mxu0 %v1984
  %2087 = vmatpush.bf16.msra.mxu0 %v1980
  %2088 = vmatmul.bf16.gmra.mxu0 %v1848
  %v2089 = vpop.f32.mrf.mxu0
  %v2090 = vadd.f32 0.0, %v2089
  %v2091 = vpop.f32.mrf.mxu0
  %2092 = vdwg.mxu0
  %v2093 = vadd.f32 %v1844, %v2051
  %v2094 = vadd.f32 %v1845, %v2064
  %v2095 = vadd.f32 %v1846, %v2077
  %v2096 = vadd.f32 %v1847, %v2090
  %v2097 = vxor.u32 %v2093, 2147483648
  %v2098 = vxor.u32 %v2094, 2147483648
  %v2099 = vxor.u32 %v2095, 2147483648
  %v2100 = vmul.f32 %v2097, 1.442695
  %v2101 = vpow.pop %v2100
  %v2102 = vmul.f32 %v2098, 1.442695
  %v2103 = vpow.pop %v2102
  %v2104 = vmul.f32 %v2099, 1.442695
  %v2105 = vpow.pop %v2104
  %v2106 = vadd.f32 %v2101, 1.0
  %v2107 = vadd.f32 %v2103, 1.0
  %v2108 = vadd.f32 %v2105, 1.0
  %v2109 = vrcp.pop %v2106
  %v2110 = vmul.f32 %v2106, %v2109
  %v2111 = vsub.f32 1.0, %v2110
  %v2112 = vmul.f32 %v2109, %v2111
  %v2113 = vadd.f32 %v2109, %v2112
  %vm2114 = vweird.f32 %v2106
  %vm2115 = vweird.f32 %v2109
  %vm2116 = vmor %vm2114, %vm2115
  %v2117 = vsel %vm2116, %v2109, %v2113
  %v2118 = vand.u32 2147483647, %v2106
  %vm2119 = vcmp.eq.f32.partialorder %v2118, 8.507059e+37
  %v2120 = vand.u32 %v2106, 2147483648
  %v2121 = vor.u32 1.1754944e-38, %v2120
  %v2122 = vsel %vm2119, %v2121, %v2117
  %v2123 = vmul.f32 1.0, %v2122
  %v2124 = vrcp.pop %v2107
  %v2125 = vmul.f32 %v2107, %v2124
  %v2126 = vsub.f32 1.0, %v2125
  %v2127 = vmul.f32 %v2124, %v2126
  %v2128 = vadd.f32 %v2124, %v2127
  %vm2129 = vweird.f32 %v2107
  %vm2130 = vweird.f32 %v2124
  %vm2131 = vmor %vm2129, %vm2130
  %v2132 = vsel %vm2131, %v2124, %v2128
  %v2133 = vand.u32 2147483647, %v2107
  %vm2134 = vcmp.eq.f32.partialorder %v2133, 8.507059e+37
  %v2135 = vand.u32 %v2107, 2147483648
  %v2136 = vor.u32 1.1754944e-38, %v2135
  %v2137 = vsel %vm2134, %v2136, %v2132
  %v2138 = vmul.f32 1.0, %v2137
  %v2139 = vrcp.pop %v2108
  %v2140 = vmul.f32 %v2108, %v2139
  %v2141 = vsub.f32 1.0, %v2140
  %v2142 = vmul.f32 %v2139, %v2141
  %v2143 = vadd.f32 %v2139, %v2142
  %vm2144 = vweird.f32 %v2108
  %vm2145 = vweird.f32 %v2139
  %vm2146 = vmor %vm2144, %vm2145
  %v2147 = vsel %vm2146, %v2139, %v2143
  %v2148 = vand.u32 2147483647, %v2108
  %vm2149 = vcmp.eq.f32.partialorder %v2148, 8.507059e+37
  %v2150 = vand.u32 %v2108, 2147483648
  %v2151 = vor.u32 1.1754944e-38, %v2150
  %v2152 = vsel %vm2149, %v2151, %v2147
  %v2153 = vmul.f32 1.0, %v2152
  %v2154 = vtanh.pop %v2096
  %v2155 = vmul.f32 %v2138, %v1838
  %v2156 = vmul.f32 %v2123, %v2154
  %v2157 = vadd.f32 %v2155, %v2156
  %v2158 = vtanh.pop %v2157
  %v2159 = vmul.f32 %v2153, %v2158
  %s2160 = scalar_lea.vmem [#allocation3], 48
  %2161 = vst [vmem:[%s2160] sm:$0xff] %v2159
  %s2162 = scalar_lea.vmem [#allocation2], 192
  %v2163 = vld [vmem:[%s2162] sm:$0xff]
  %v2164 = vld [vmem:[%s2162 + $0x8] sm:$0xff]
  %v2165 = vld [vmem:[%s2162 + $0x10] sm:$0xff]
  %v2166 = vld [vmem:[%s2162 + $0x18] sm:$0xff]
  %v2167 = vpack.c.bf16 %v2159, %v2159
  %v2168 = vld [vmem:[%s3] sm:$0xff]
  %v2169 = vld [vmem:[%s3 + $0x8] sm:$0xff]
  %v2170 = vld [vmem:[%s3 + $0x10] sm:$0xff]
  %v2171 = vld [vmem:[%s3 + $0x18] sm:$0xff]
  %v2172 = vld [vmem:[%s3 + $0x20] sm:$0xff]
  %v2173 = vld [vmem:[%s3 + $0x28] sm:$0xff]
  %v2174 = vld [vmem:[%s3 + $0x30] sm:$0xff]
  %v2175 = vld [vmem:[%s3 + $0x38] sm:$0xff]
  %v2176 = vld [vmem:[%s3 + $0x40] sm:$0xff]
  %v2177 = vld [vmem:[%s3 + $0x48] sm:$0xff]
  %v2178 = vld [vmem:[%s3 + $0x50] sm:$0xff]
  %v2179 = vld [vmem:[%s3 + $0x58] sm:$0xff]
  %v2180 = vld [vmem:[%s3 + $0x60] sm:$0xff]
  %v2181 = vld [vmem:[%s3 + $0x68] sm:$0xff]
  %v2182 = vld [vmem:[%s3 + $0x70] sm:$0xff]
  %v2183 = vld [vmem:[%s3 + $0x78] sm:$0xff]
  %v2184 = vld [vmem:[%s3 + $0x80] sm:$0xff]
  %v2185 = vld [vmem:[%s3 + $0x88] sm:$0xff]
  %v2186 = vld [vmem:[%s3 + $0x90] sm:$0xff]
  %v2187 = vld [vmem:[%s3 + $0x98] sm:$0xff]
  %v2188 = vld [vmem:[%s3 + $0xa0] sm:$0xff]
  %v2189 = vld [vmem:[%s3 + $0xa8] sm:$0xff]
  %v2190 = vld [vmem:[%s3 + $0xb0] sm:$0xff]
  %v2191 = vld [vmem:[%s3 + $0xb8] sm:$0xff]
  %v2192 = vld [vmem:[%s3 + $0xc0] sm:$0xff]
  %v2193 = vld [vmem:[%s3 + $0xc8] sm:$0xff]
  %v2194 = vld [vmem:[%s3 + $0xd0] sm:$0xff]
  %v2195 = vld [vmem:[%s3 + $0xd8] sm:$0xff]
  %v2196 = vld [vmem:[%s3 + $0xe0] sm:$0xff]
  %v2197 = vld [vmem:[%s3 + $0xe8] sm:$0xff]
  %v2198 = vld [vmem:[%s3 + $0xf0] sm:$0xff]
  %v2199 = vld [vmem:[%s3 + $0xf8] sm:$0xff]
  %v2232 = vunpack.c.l.b16 %v2168
  %v2233 = vunpack.c.h.b16 %v2168
  %v2234 = vunpack.c.l.b16 %v2169
  %v2235 = vunpack.c.h.b16 %v2169
  %v2236 = vunpack.c.l.b16 %v2170
  %v2237 = vunpack.c.h.b16 %v2170
  %v2238 = vunpack.c.l.b16 %v2171
  %v2239 = vunpack.c.h.b16 %v2171
  %v2240 = vunpack.c.l.b16 %v2172
  %v2241 = vunpack.c.h.b16 %v2172
  %v2242 = vunpack.c.l.b16 %v2173
  %v2243 = vunpack.c.h.b16 %v2173
  %v2244 = vunpack.c.l.b16 %v2174
  %v2245 = vunpack.c.h.b16 %v2174
  %v2246 = vunpack.c.l.b16 %v2175
  %v2247 = vunpack.c.h.b16 %v2175
  %v2248 = vunpack.c.l.b16 %v2176
  %v2249 = vunpack.c.h.b16 %v2176
  %v2250 = vunpack.c.l.b16 %v2177
  %v2251 = vunpack.c.h.b16 %v2177
  %v2252 = vunpack.c.l.b16 %v2178
  %v2253 = vunpack.c.h.b16 %v2178
  %v2254 = vunpack.c.l.b16 %v2179
  %v2255 = vunpack.c.h.b16 %v2179
  %v2256 = vunpack.c.l.b16 %v2180
  %v2257 = vunpack.c.h.b16 %v2180
  %v2258 = vunpack.c.l.b16 %v2181
  %v2259 = vunpack.c.h.b16 %v2181
  %v2260 = vunpack.c.l.b16 %v2182
  %v2261 = vunpack.c.h.b16 %v2182
  %v2262 = vunpack.c.l.b16 %v2183
  %v2263 = vunpack.c.h.b16 %v2183
  %v2264 = vunpack.c.l.b16 %v2184
  %v2265 = vunpack.c.h.b16 %v2184
  %v2266 = vunpack.c.l.b16 %v2185
  %v2267 = vunpack.c.h.b16 %v2185
  %v2268 = vunpack.c.l.b16 %v2186
  %v2269 = vunpack.c.h.b16 %v2186
  %v2270 = vunpack.c.l.b16 %v2187
  %v2271 = vunpack.c.h.b16 %v2187
  %v2272 = vunpack.c.l.b16 %v2188
  %v2273 = vunpack.c.h.b16 %v2188
  %v2274 = vunpack.c.l.b16 %v2189
  %v2275 = vunpack.c.h.b16 %v2189
  %v2276 = vunpack.c.l.b16 %v2190
  %v2277 = vunpack.c.h.b16 %v2190
  %v2278 = vunpack.c.l.b16 %v2191
  %v2279 = vunpack.c.h.b16 %v2191
  %v2280 = vunpack.c.l.b16 %v2192
  %v2281 = vunpack.c.h.b16 %v2192
  %v2282 = vunpack.c.l.b16 %v2193
  %v2283 = vunpack.c.h.b16 %v2193
  %v2284 = vunpack.c.l.b16 %v2194
  %v2285 = vunpack.c.h.b16 %v2194
  %v2286 = vunpack.c.l.b16 %v2195
  %v2287 = vunpack.c.h.b16 %v2195
  %v2288 = vunpack.c.l.b16 %v2196
  %v2289 = vunpack.c.h.b16 %v2196
  %v2290 = vunpack.c.l.b16 %v2197
  %v2291 = vunpack.c.h.b16 %v2197
  %v2292 = vunpack.c.l.b16 %v2198
  %v2293 = vunpack.c.h.b16 %v2198
  %v2294 = vunpack.c.l.b16 %v2199
  %v2295 = vunpack.c.h.b16 %v2199
  %v2296 = vpack.c.b16 %v2236, %v2232
  %v2297 = vpack.c.b16 %v2237, %v2233
  %v2298 = vpack.c.b16 %v2238, %v2234
  %v2299 = vpack.c.b16 %v2239, %v2235
  %v2300 = vpack.c.b16 %v2244, %v2240
  %v2301 = vpack.c.b16 %v2245, %v2241
  %v2302 = vpack.c.b16 %v2246, %v2242
  %v2303 = vpack.c.b16 %v2247, %v2243
  %v2304 = vpack.c.b16 %v2252, %v2248
  %v2305 = vpack.c.b16 %v2253, %v2249
  %v2306 = vpack.c.b16 %v2254, %v2250
  %v2307 = vpack.c.b16 %v2255, %v2251
  %v2308 = vpack.c.b16 %v2260, %v2256
  %v2309 = vpack.c.b16 %v2261, %v2257
  %v2310 = vpack.c.b16 %v2262, %v2258
  %v2311 = vpack.c.b16 %v2263, %v2259
  %v2312 = vpack.c.b16 %v2268, %v2264
  %v2313 = vpack.c.b16 %v2269, %v2265
  %v2314 = vpack.c.b16 %v2270, %v2266
  %v2315 = vpack.c.b16 %v2271, %v2267
  %v2316 = vpack.c.b16 %v2276, %v2272
  %v2317 = vpack.c.b16 %v2277, %v2273
  %v2318 = vpack.c.b16 %v2278, %v2274
  %v2319 = vpack.c.b16 %v2279, %v2275
  %v2320 = vpack.c.b16 %v2284, %v2280
  %v2321 = vpack.c.b16 %v2285, %v2281
  %v2322 = vpack.c.b16 %v2286, %v2282
  %v2323 = vpack.c.b16 %v2287, %v2283
  %v2324 = vpack.c.b16 %v2292, %v2288
  %v2325 = vpack.c.b16 %v2293, %v2289
  %v2326 = vpack.c.b16 %v2294, %v2290
  %v2327 = vpack.c.b16 %v2295, %v2291
  %2360 = vmatpush.bf16.msra.mxu0 %v2324
  %2361 = vmatpush.bf16.msra.mxu0 %v2320
  %2362 = vmatpush.bf16.msra.mxu0 %v2316
  %2363 = vmatpush.bf16.msra.mxu0 %v2312
  %2364 = vmatpush.bf16.msra.mxu0 %v2308
  %2365 = vmatpush.bf16.msra.mxu0 %v2304
  %2366 = vmatpush.bf16.msra.mxu0 %v2300
  %2367 = vmatpush.bf16.msra.mxu0 %v2296
  %2368 = vmatmul.bf16.gmra.mxu0 %v2167
  %v2369 = vpop.f32.mrf.mxu0
  %v2370 = vadd.f32 0.0, %v2369
  %v2371 = vpop.f32.mrf.mxu0
  %2372 = vdwg.mxu0
  %2373 = vmatpush.bf16.msra.mxu0 %v2325
  %2374 = vmatpush.bf16.msra.mxu0 %v2321
  %2375 = vmatpush.bf16.msra.mxu0 %v2317
  %2376 = vmatpush.bf16.msra.mxu0 %v2313
  %2377 = vmatpush.bf16.msra.mxu0 %v2309
  %2378 = vmatpush.bf16.msra.mxu0 %v2305
  %2379 = vmatpush.bf16.msra.mxu0 %v2301
  %2380 = vmatpush.bf16.msra.mxu0 %v2297
  %2381 = vmatmul.bf16.gmra.mxu0 %v2167
  %v2382 = vpop.f32.mrf.mxu0
  %v2383 = vadd.f32 0.0, %v2382
  %v2384 = vpop.f32.mrf.mxu0
  %2385 = vdwg.mxu0
  %2386 = vmatpush.bf16.msra.mxu0 %v2326
  %2387 = vmatpush.bf16.msra.mxu0 %v2322
  %2388 = vmatpush.bf16.msra.mxu0 %v2318
  %2389 = vmatpush.bf16.msra.mxu0 %v2314
  %2390 = vmatpush.bf16.msra.mxu0 %v2310
  %2391 = vmatpush.bf16.msra.mxu0 %v2306
  %2392 = vmatpush.bf16.msra.mxu0 %v2302
  %2393 = vmatpush.bf16.msra.mxu0 %v2298
  %2394 = vmatmul.bf16.gmra.mxu0 %v2167
  %v2395 = vpop.f32.mrf.mxu0
  %v2396 = vadd.f32 0.0, %v2395
  %v2397 = vpop.f32.mrf.mxu0
  %2398 = vdwg.mxu0
  %2399 = vmatpush.bf16.msra.mxu0 %v2327
  %2400 = vmatpush.bf16.msra.mxu0 %v2323
  %2401 = vmatpush.bf16.msra.mxu0 %v2319
  %2402 = vmatpush.bf16.msra.mxu0 %v2315
  %2403 = vmatpush.bf16.msra.mxu0 %v2311
  %2404 = vmatpush.bf16.msra.mxu0 %v2307
  %2405 = vmatpush.bf16.msra.mxu0 %v2303
  %2406 = vmatpush.bf16.msra.mxu0 %v2299
  %2407 = vmatmul.bf16.gmra.mxu0 %v2167
  %v2408 = vpop.f32.mrf.mxu0
  %v2409 = vadd.f32 0.0, %v2408
  %v2410 = vpop.f32.mrf.mxu0
  %2411 = vdwg.mxu0
  %v2412 = vadd.f32 %v2163, %v2370
  %v2413 = vadd.f32 %v2164, %v2383
  %v2414 = vadd.f32 %v2165, %v2396
  %v2415 = vadd.f32 %v2166, %v2409
  %v2416 = vxor.u32 %v2412, 2147483648
  %v2417 = vxor.u32 %v2413, 2147483648
  %v2418 = vxor.u32 %v2414, 2147483648
  %v2419 = vmul.f32 %v2416, 1.442695
  %v2420 = vpow.pop %v2419
  %v2421 = vmul.f32 %v2417, 1.442695
  %v2422 = vpow.pop %v2421
  %v2423 = vmul.f32 %v2418, 1.442695
  %v2424 = vpow.pop %v2423
  %v2425 = vadd.f32 %v2420, 1.0
  %v2426 = vadd.f32 %v2422, 1.0
  %v2427 = vadd.f32 %v2424, 1.0
  %v2428 = vrcp.pop %v2425
  %v2429 = vmul.f32 %v2425, %v2428
  %v2430 = vsub.f32 1.0, %v2429
  %v2431 = vmul.f32 %v2428, %v2430
  %v2432 = vadd.f32 %v2428, %v2431
  %vm2433 = vweird.f32 %v2425
  %vm2434 = vweird.f32 %v2428
  %vm2435 = vmor %vm2433, %vm2434
  %v2436 = vsel %vm2435, %v2428, %v2432
  %v2437 = vand.u32 2147483647, %v2425
  %vm2438 = vcmp.eq.f32.partialorder %v2437, 8.507059e+37
  %v2439 = vand.u32 %v2425, 2147483648
  %v2440 = vor.u32 1.1754944e-38, %v2439
  %v2441 = vsel %vm2438, %v2440, %v2436
  %v2442 = vmul.f32 1.0, %v2441
  %v2443 = vrcp.pop %v2426
  %v2444 = vmul.f32 %v2426, %v2443
  %v2445 = vsub.f32 1.0, %v2444
  %v2446 = vmul.f32 %v2443, %v2445
  %v2447 = vadd.f32 %v2443, %v2446
  %vm2448 = vweird.f32 %v2426
  %vm2449 = vweird.f32 %v2443
  %vm2450 = vmor %vm2448, %vm2449
  %v2451 = vsel %vm2450, %v2443, %v2447
  %v2452 = vand.u32 2147483647, %v2426
  %vm2453 = vcmp.eq.f32.partialorder %v2452, 8.507059e+37
  %v2454 = vand.u32 %v2426, 2147483648
  %v2455 = vor.u32 1.1754944e-38, %v2454
  %v2456 = vsel %vm2453, %v2455, %v2451
  %v2457 = vmul.f32 1.0, %v2456
  %v2458 = vrcp.pop %v2427
  %v2459 = vmul.f32 %v2427, %v2458
  %v2460 = vsub.f32 1.0, %v2459
  %v2461 = vmul.f32 %v2458, %v2460
  %v2462 = vadd.f32 %v2458, %v2461
  %vm2463 = vweird.f32 %v2427
  %vm2464 = vweird.f32 %v2458
  %vm2465 = vmor %vm2463, %vm2464
  %v2466 = vsel %vm2465, %v2458, %v2462
  %v2467 = vand.u32 2147483647, %v2427
  %vm2468 = vcmp.eq.f32.partialorder %v2467, 8.507059e+37
  %v2469 = vand.u32 %v2427, 2147483648
  %v2470 = vor.u32 1.1754944e-38, %v2469
  %v2471 = vsel %vm2468, %v2470, %v2466
  %v2472 = vmul.f32 1.0, %v2471
  %v2473 = vtanh.pop %v2415
  %v2474 = vmul.f32 %v2457, %v2157
  %v2475 = vmul.f32 %v2442, %v2473
  %v2476 = vadd.f32 %v2474, %v2475
  %v2477 = vtanh.pop %v2476
  %v2478 = vmul.f32 %v2472, %v2477
  %s2479 = scalar_lea.vmem [#allocation3], 56
  %2480 = vst [vmem:[%s2479] sm:$0xff] %v2478
  %s2481 = scalar_lea.vmem [#allocation2], 224
  %v2482 = vld [vmem:[%s2481] sm:$0xff]
  %v2483 = vld [vmem:[%s2481 + $0x8] sm:$0xff]
  %v2484 = vld [vmem:[%s2481 + $0x10] sm:$0xff]
  %v2485 = vld [vmem:[%s2481 + $0x18] sm:$0xff]
  %v2486 = vpack.c.bf16 %v2478, %v2478
  %v2487 = vld [vmem:[%s3] sm:$0xff]
  %v2488 = vld [vmem:[%s3 + $0x8] sm:$0xff]
  %v2489 = vld [vmem:[%s3 + $0x10] sm:$0xff]
  %v2490 = vld [vmem:[%s3 + $0x18] sm:$0xff]
  %v2491 = vld [vmem:[%s3 + $0x20] sm:$0xff]
  %v2492 = vld [vmem:[%s3 + $0x28] sm:$0xff]
  %v2493 = vld [vmem:[%s3 + $0x30] sm:$0xff]
  %v2494 = vld [vmem:[%s3 + $0x38] sm:$0xff]
  %v2495 = vld [vmem:[%s3 + $0x40] sm:$0xff]
  %v2496 = vld [vmem:[%s3 + $0x48] sm:$0xff]
  %v2497 = vld [vmem:[%s3 + $0x50] sm:$0xff]
  %v2498 = vld [vmem:[%s3 + $0x58] sm:$0xff]
  %v2499 = vld [vmem:[%s3 + $0x60] sm:$0xff]
  %v2500 = vld [vmem:[%s3 + $0x68] sm:$0xff]
  %v2501 = vld [vmem:[%s3 + $0x70] sm:$0xff]
  %v2502 = vld [vmem:[%s3 + $0x78] sm:$0xff]
  %v2503 = vld [vmem:[%s3 + $0x80] sm:$0xff]
  %v2504 = vld [vmem:[%s3 + $0x88] sm:$0xff]
  %v2505 = vld [vmem:[%s3 + $0x90] sm:$0xff]
  %v2506 = vld [vmem:[%s3 + $0x98] sm:$0xff]
  %v2507 = vld [vmem:[%s3 + $0xa0] sm:$0xff]
  %v2508 = vld [vmem:[%s3 + $0xa8] sm:$0xff]
  %v2509 = vld [vmem:[%s3 + $0xb0] sm:$0xff]
  %v2510 = vld [vmem:[%s3 + $0xb8] sm:$0xff]
  %v2511 = vld [vmem:[%s3 + $0xc0] sm:$0xff]
  %v2512 = vld [vmem:[%s3 + $0xc8] sm:$0xff]
  %v2513 = vld [vmem:[%s3 + $0xd0] sm:$0xff]
  %v2514 = vld [vmem:[%s3 + $0xd8] sm:$0xff]
  %v2515 = vld [vmem:[%s3 + $0xe0] sm:$0xff]
  %v2516 = vld [vmem:[%s3 + $0xe8] sm:$0xff]
  %v2517 = vld [vmem:[%s3 + $0xf0] sm:$0xff]
  %v2518 = vld [vmem:[%s3 + $0xf8] sm:$0xff]
  %v2551 = vunpack.c.l.b16 %v2487
  %v2552 = vunpack.c.h.b16 %v2487
  %v2553 = vunpack.c.l.b16 %v2488
  %v2554 = vunpack.c.h.b16 %v2488
  %v2555 = vunpack.c.l.b16 %v2489
  %v2556 = vunpack.c.h.b16 %v2489
  %v2557 = vunpack.c.l.b16 %v2490
  %v2558 = vunpack.c.h.b16 %v2490
  %v2559 = vunpack.c.l.b16 %v2491
  %v2560 = vunpack.c.h.b16 %v2491
  %v2561 = vunpack.c.l.b16 %v2492
  %v2562 = vunpack.c.h.b16 %v2492
  %v2563 = vunpack.c.l.b16 %v2493
  %v2564 = vunpack.c.h.b16 %v2493
  %v2565 = vunpack.c.l.b16 %v2494
  %v2566 = vunpack.c.h.b16 %v2494
  %v2567 = vunpack.c.l.b16 %v2495
  %v2568 = vunpack.c.h.b16 %v2495
  %v2569 = vunpack.c.l.b16 %v2496
  %v2570 = vunpack.c.h.b16 %v2496
  %v2571 = vunpack.c.l.b16 %v2497
  %v2572 = vunpack.c.h.b16 %v2497
  %v2573 = vunpack.c.l.b16 %v2498
  %v2574 = vunpack.c.h.b16 %v2498
  %v2575 = vunpack.c.l.b16 %v2499
  %v2576 = vunpack.c.h.b16 %v2499
  %v2577 = vunpack.c.l.b16 %v2500
  %v2578 = vunpack.c.h.b16 %v2500
  %v2579 = vunpack.c.l.b16 %v2501
  %v2580 = vunpack.c.h.b16 %v2501
  %v2581 = vunpack.c.l.b16 %v2502
  %v2582 = vunpack.c.h.b16 %v2502
  %v2583 = vunpack.c.l.b16 %v2503
  %v2584 = vunpack.c.h.b16 %v2503
  %v2585 = vunpack.c.l.b16 %v2504
  %v2586 = vunpack.c.h.b16 %v2504
  %v2587 = vunpack.c.l.b16 %v2505
  %v2588 = vunpack.c.h.b16 %v2505
  %v2589 = vunpack.c.l.b16 %v2506
  %v2590 = vunpack.c.h.b16 %v2506
  %v2591 = vunpack.c.l.b16 %v2507
  %v2592 = vunpack.c.h.b16 %v2507
  %v2593 = vunpack.c.l.b16 %v2508
  %v2594 = vunpack.c.h.b16 %v2508
  %v2595 = vunpack.c.l.b16 %v2509
  %v2596 = vunpack.c.h.b16 %v2509
  %v2597 = vunpack.c.l.b16 %v2510
  %v2598 = vunpack.c.h.b16 %v2510
  %v2599 = vunpack.c.l.b16 %v2511
  %v2600 = vunpack.c.h.b16 %v2511
  %v2601 = vunpack.c.l.b16 %v2512
  %v2602 = vunpack.c.h.b16 %v2512
  %v2603 = vunpack.c.l.b16 %v2513
  %v2604 = vunpack.c.h.b16 %v2513
  %v2605 = vunpack.c.l.b16 %v2514
  %v2606 = vunpack.c.h.b16 %v2514
  %v2607 = vunpack.c.l.b16 %v2515
  %v2608 = vunpack.c.h.b16 %v2515
  %v2609 = vunpack.c.l.b16 %v2516
  %v2610 = vunpack.c.h.b16 %v2516
  %v2611 = vunpack.c.l.b16 %v2517
  %v2612 = vunpack.c.h.b16 %v2517
  %v2613 = vunpack.c.l.b16 %v2518
  %v2614 = vunpack.c.h.b16 %v2518
  %v2615 = vpack.c.b16 %v2555, %v2551
  %v2616 = vpack.c.b16 %v2556, %v2552
  %v2617 = vpack.c.b16 %v2557, %v2553
  %v2618 = vpack.c.b16 %v2558, %v2554
  %v2619 = vpack.c.b16 %v2563, %v2559
  %v2620 = vpack.c.b16 %v2564, %v2560
  %v2621 = vpack.c.b16 %v2565, %v2561
  %v2622 = vpack.c.b16 %v2566, %v2562
  %v2623 = vpack.c.b16 %v2571, %v2567
  %v2624 = vpack.c.b16 %v2572, %v2568
  %v2625 = vpack.c.b16 %v2573, %v2569
  %v2626 = vpack.c.b16 %v2574, %v2570
  %v2627 = vpack.c.b16 %v2579, %v2575
  %v2628 = vpack.c.b16 %v2580, %v2576
  %v2629 = vpack.c.b16 %v2581, %v2577
  %v2630 = vpack.c.b16 %v2582, %v2578
  %v2631 = vpack.c.b16 %v2587, %v2583
  %v2632 = vpack.c.b16 %v2588, %v2584
  %v2633 = vpack.c.b16 %v2589, %v2585
  %v2634 = vpack.c.b16 %v2590, %v2586
  %v2635 = vpack.c.b16 %v2595, %v2591
  %v2636 = vpack.c.b16 %v2596, %v2592
  %v2637 = vpack.c.b16 %v2597, %v2593
  %v2638 = vpack.c.b16 %v2598, %v2594
  %v2639 = vpack.c.b16 %v2603, %v2599
  %v2640 = vpack.c.b16 %v2604, %v2600
  %v2641 = vpack.c.b16 %v2605, %v2601
  %v2642 = vpack.c.b16 %v2606, %v2602
  %v2643 = vpack.c.b16 %v2611, %v2607
  %v2644 = vpack.c.b16 %v2612, %v2608
  %v2645 = vpack.c.b16 %v2613, %v2609
  %v2646 = vpack.c.b16 %v2614, %v2610
  %2679 = vmatpush.bf16.msra.mxu0 %v2643
  %2680 = vmatpush.bf16.msra.mxu0 %v2639
  %2681 = vmatpush.bf16.msra.mxu0 %v2635
  %2682 = vmatpush.bf16.msra.mxu0 %v2631
  %2683 = vmatpush.bf16.msra.mxu0 %v2627
  %2684 = vmatpush.bf16.msra.mxu0 %v2623
  %2685 = vmatpush.bf16.msra.mxu0 %v2619
  %2686 = vmatpush.bf16.msra.mxu0 %v2615
  %2687 = vmatmul.bf16.gmra.mxu0 %v2486
  %v2688 = vpop.f32.mrf.mxu0
  %v2689 = vadd.f32 0.0, %v2688
  %v2690 = vpop.f32.mrf.mxu0
  %2691 = vdwg.mxu0
  %2692 = vmatpush.bf16.msra.mxu0 %v2644
  %2693 = vmatpush.bf16.msra.mxu0 %v2640
  %2694 = vmatpush.bf16.msra.mxu0 %v2636
  %2695 = vmatpush.bf16.msra.mxu0 %v2632
  %2696 = vmatpush.bf16.msra.mxu0 %v2628
  %2697 = vmatpush.bf16.msra.mxu0 %v2624
  %2698 = vmatpush.bf16.msra.mxu0 %v2620
  %2699 = vmatpush.bf16.msra.mxu0 %v2616
  %2700 = vmatmul.bf16.gmra.mxu0 %v2486
  %v2701 = vpop.f32.mrf.mxu0
  %v2702 = vadd.f32 0.0, %v2701
  %v2703 = vpop.f32.mrf.mxu0
  %2704 = vdwg.mxu0
  %2705 = vmatpush.bf16.msra.mxu0 %v2645
  %2706 = vmatpush.bf16.msra.mxu0 %v2641
  %2707 = vmatpush.bf16.msra.mxu0 %v2637
  %2708 = vmatpush.bf16.msra.mxu0 %v2633
  %2709 = vmatpush.bf16.msra.mxu0 %v2629
  %2710 = vmatpush.bf16.msra.mxu0 %v2625
  %2711 = vmatpush.bf16.msra.mxu0 %v2621
  %2712 = vmatpush.bf16.msra.mxu0 %v2617
  %2713 = vmatmul.bf16.gmra.mxu0 %v2486
  %v2714 = vpop.f32.mrf.mxu0
  %v2715 = vadd.f32 0.0, %v2714
  %v2716 = vpop.f32.mrf.mxu0
  %2717 = vdwg.mxu0
  %2718 = vmatpush.bf16.msra.mxu0 %v2646
  %2719 = vmatpush.bf16.msra.mxu0 %v2642
  %2720 = vmatpush.bf16.msra.mxu0 %v2638
  %2721 = vmatpush.bf16.msra.mxu0 %v2634
  %2722 = vmatpush.bf16.msra.mxu0 %v2630
  %2723 = vmatpush.bf16.msra.mxu0 %v2626
  %2724 = vmatpush.bf16.msra.mxu0 %v2622
  %2725 = vmatpush.bf16.msra.mxu0 %v2618
  %2726 = vmatmul.bf16.gmra.mxu0 %v2486
  %v2727 = vpop.f32.mrf.mxu0
  %v2728 = vadd.f32 0.0, %v2727
  %v2729 = vpop.f32.mrf.mxu0
  %2730 = vdwg.mxu0
  %v2731 = vadd.f32 %v2482, %v2689
  %v2732 = vadd.f32 %v2483, %v2702
  %v2733 = vadd.f32 %v2484, %v2715
  %v2734 = vadd.f32 %v2485, %v2728
  %v2735 = vxor.u32 %v2731, 2147483648
  %v2736 = vxor.u32 %v2732, 2147483648
  %v2737 = vxor.u32 %v2733, 2147483648
  %v2738 = vmul.f32 %v2735, 1.442695
  %v2739 = vpow.pop %v2738
  %v2740 = vmul.f32 %v2736, 1.442695
  %v2741 = vpow.pop %v2740
  %v2742 = vmul.f32 %v2737, 1.442695
  %v2743 = vpow.pop %v2742
  %v2744 = vadd.f32 %v2739, 1.0
  %v2745 = vadd.f32 %v2741, 1.0
  %v2746 = vadd.f32 %v2743, 1.0
  %v2747 = vrcp.pop %v2744
  %v2748 = vmul.f32 %v2744, %v2747
  %v2749 = vsub.f32 1.0, %v2748
  %v2750 = vmul.f32 %v2747, %v2749
  %v2751 = vadd.f32 %v2747, %v2750
  %vm2752 = vweird.f32 %v2744
  %vm2753 = vweird.f32 %v2747
  %vm2754 = vmor %vm2752, %vm2753
  %v2755 = vsel %vm2754, %v2747, %v2751
  %v2756 = vand.u32 2147483647, %v2744
  %vm2757 = vcmp.eq.f32.partialorder %v2756, 8.507059e+37
  %v2758 = vand.u32 %v2744, 2147483648
  %v2759 = vor.u32 1.1754944e-38, %v2758
  %v2760 = vsel %vm2757, %v2759, %v2755
  %v2761 = vmul.f32 1.0, %v2760
  %v2762 = vrcp.pop %v2745
  %v2763 = vmul.f32 %v2745, %v2762
  %v2764 = vsub.f32 1.0, %v2763
  %v2765 = vmul.f32 %v2762, %v2764
  %v2766 = vadd.f32 %v2762, %v2765
  %vm2767 = vweird.f32 %v2745
  %vm2768 = vweird.f32 %v2762
  %vm2769 = vmor %vm2767, %vm2768
  %v2770 = vsel %vm2769, %v2762, %v2766
  %v2771 = vand.u32 2147483647, %v2745
  %vm2772 = vcmp.eq.f32.partialorder %v2771, 8.507059e+37
  %v2773 = vand.u32 %v2745, 2147483648
  %v2774 = vor.u32 1.1754944e-38, %v2773
  %v2775 = vsel %vm2772, %v2774, %v2770
  %v2776 = vmul.f32 1.0, %v2775
  %v2777 = vrcp.pop %v2746
  %v2778 = vmul.f32 %v2746, %v2777
  %v2779 = vsub.f32 1.0, %v2778
  %v2780 = vmul.f32 %v2777, %v2779
  %v2781 = vadd.f32 %v2777, %v2780
  %vm2782 = vweird.f32 %v2746
  %vm2783 = vweird.f32 %v2777
  %vm2784 = vmor %vm2782, %vm2783
  %v2785 = vsel %vm2784, %v2777, %v2781
  %v2786 = vand.u32 2147483647, %v2746
  %vm2787 = vcmp.eq.f32.partialorder %v2786, 8.507059e+37
  %v2788 = vand.u32 %v2746, 2147483648
  %v2789 = vor.u32 1.1754944e-38, %v2788
  %v2790 = vsel %vm2787, %v2789, %v2785
  %v2791 = vmul.f32 1.0, %v2790
  %v2792 = vtanh.pop %v2734
  %v2793 = vmul.f32 %v2776, %v2476
  %v2794 = vmul.f32 %v2761, %v2792
  %v2795 = vadd.f32 %v2793, %v2794
  %v2796 = vtanh.pop %v2795
  %v2797 = vmul.f32 %v2791, %v2796
  %s2798 = scalar_lea.vmem [#allocation3], 64
  %2799 = vst [vmem:[%s2798] sm:$0xff] %v2797
  %v2800 = vld [vmem:[#allocation3] sm:$0xff]
  %v2801 = vld [vmem:[#allocation3 + $0x8] sm:$0xff]
  %v2802 = vld [vmem:[#allocation3 + $0x10] sm:$0xff]
  %v2803 = vld [vmem:[#allocation3 + $0x18] sm:$0xff]
  %v2804 = vld [vmem:[#allocation3 + $0x20] sm:$0xff]
  %v2805 = vld [vmem:[#allocation3 + $0x28] sm:$0xff]
  %v2806 = vld [vmem:[#allocation3 + $0x30] sm:$0xff]
  %v2807 = vld [vmem:[#allocation3 + $0x38] sm:$0xff]
  %v2808 = vld [vmem:[#allocation3 + $0x40] sm:$0xff]
  %v2809 = vpack.c.bf16 %v2801, %v2800
  %v2810 = vpack.c.bf16 %v2803, %v2802
  %v2811 = vpack.c.bf16 %v2805, %v2804
  %v2812 = vpack.c.bf16 %v2807, %v2806
  %v2813 = vpack.c.bf16 %v2808, %v2808
  %v2814 = vld [vmem:[%s4] sm:$0xf]
  %v2815 = vld [vmem:[%s4 + $0x4] sm:$0xf]
  %v2816 = vld [vmem:[%s4 + $0x8] sm:$0xf]
  %v2817 = vld [vmem:[%s4 + $0xc] sm:$0xf]
  %v2818 = vld [vmem:[%s4 + $0x10] sm:$0xf]
  %v2819 = vld [vmem:[%s4 + $0x14] sm:$0xf]
  %v2820 = vld [vmem:[%s4 + $0x18] sm:$0xf]
  %v2821 = vld [vmem:[%s4 + $0x1c] sm:$0xf]
  %v2822 = vld [vmem:[%s4 + $0x20] sm:$0xf]
  %v2823 = vld [vmem:[%s4 + $0x24] sm:$0xf]
  %v2824 = vld [vmem:[%s4 + $0x28] sm:$0xf]
  %v2825 = vld [vmem:[%s4 + $0x2c] sm:$0xf]
  %v2826 = vld [vmem:[%s4 + $0x30] sm:$0xf]
  %v2827 = vld [vmem:[%s4 + $0x34] sm:$0xf]
  %v2828 = vld [vmem:[%s4 + $0x38] sm:$0xf]
  %v2829 = vld [vmem:[%s4 + $0x3c] sm:$0xf]
  %v2830 = vld [vmem:[%s5] sm:$0x1]
  %v2832 = vperm.slane %v2830, 0
  %v2850 = vunpack.c.l.b16 %v2814
  %v2851 = vunpack.c.l.b16 %v2815
  %v2852 = vunpack.c.l.b16 %v2816
  %v2853 = vunpack.c.l.b16 %v2817
  %v2854 = vunpack.c.l.b16 %v2818
  %v2855 = vunpack.c.l.b16 %v2819
  %v2856 = vunpack.c.l.b16 %v2820
  %v2857 = vunpack.c.l.b16 %v2821
  %v2858 = vunpack.c.l.b16 %v2822
  %v2859 = vunpack.c.l.b16 %v2823
  %v2860 = vunpack.c.l.b16 %v2824
  %v2861 = vunpack.c.l.b16 %v2825
  %v2862 = vunpack.c.l.b16 %v2826
  %v2863 = vunpack.c.l.b16 %v2827
  %v2864 = vunpack.c.l.b16 %v2828
  %v2865 = vunpack.c.l.b16 %v2829
  %v2866 = vpack.c.b16 %v2851, %v2850
  %v2867 = vpack.c.b16 %v2853, %v2852
  %v2868 = vpack.c.b16 %v2855, %v2854
  %v2869 = vpack.c.b16 %v2857, %v2856
  %v2870 = vpack.c.b16 %v2859, %v2858
  %v2871 = vpack.c.b16 %v2861, %v2860
  %v2872 = vpack.c.b16 %v2863, %v2862
  %v2873 = vpack.c.b16 %v2865, %v2864
  %2882 = vmatpush.bf16.msra.mxu0 %v2873
  %2883 = vmatpush.bf16.msra.mxu0 %v2872
  %2884 = vmatpush.bf16.msra.mxu0 %v2871
  %2885 = vmatpush.bf16.msra.mxu0 %v2870
  %2886 = vmatpush.bf16.msra.mxu0 %v2869
  %2887 = vmatpush.bf16.msra.mxu0 %v2868
  %2888 = vmatpush.bf16.msra.mxu0 %v2867
  %2889 = vmatpush.bf16.msra.mxu0 %v2866
  %2890 = vmatmul.bf16.gmra.mxu0 %v2809
  %v2891 = vpop.f32.mrf.mxu0
  %v2892 = vadd.f32 %v2832, %v2891
  %v2893 = vpop.f32.mrf.mxu0
  %v2894 = vadd.f32 %v2832, %v2893
  %2895 = vmatmul.bf16.gmra.mxu0 %v2810
  %v2896 = vpop.f32.mrf.mxu0
  %v2897 = vadd.f32 %v2832, %v2896
  %v2898 = vpop.f32.mrf.mxu0
  %v2899 = vadd.f32 %v2832, %v2898
  %2900 = vmatmul.bf16.gmra.mxu0 %v2811
  %v2901 = vpop.f32.mrf.mxu0
  %v2902 = vadd.f32 %v2832, %v2901
  %v2903 = vpop.f32.mrf.mxu0
  %v2904 = vadd.f32 %v2832, %v2903
  %2905 = vmatmul.bf16.gmra.mxu0 %v2812
  %v2906 = vpop.f32.mrf.mxu0
  %v2907 = vadd.f32 %v2832, %v2906
  %v2908 = vpop.f32.mrf.mxu0
  %v2909 = vadd.f32 %v2832, %v2908
  %2910 = vmatmul.bf16.gmra.mxu0 %v2813
  %v2911 = vpop.f32.mrf.mxu0
  %v2912 = vadd.f32 %v2832, %v2911
  %v2913 = vpop.f32.mrf.mxu0
  %2914 = vdwg.mxu0
  %v2915 = vmax.f32 %v2892, 0.0
  %v2916 = vmax.f32 %v2894, 0.0
  %v2917 = vmax.f32 %v2897, 0.0
  %v2918 = vmax.f32 %v2899, 0.0
  %v2919 = vmax.f32 %v2902, 0.0
  %v2920 = vmax.f32 %v2904, 0.0
  %v2921 = vmax.f32 %v2907, 0.0
  %v2922 = vmax.f32 %v2909, 0.0
  %v2923 = vmax.f32 %v2912, 0.0
  %v2924 = vpack.c.bf16 %v2916, %v2915
  %v2925 = vpack.c.bf16 %v2918, %v2917
  %v2926 = vpack.c.bf16 %v2920, %v2919
  %v2927 = vpack.c.bf16 %v2922, %v2921
  %v2928 = vpack.c.bf16 %v2923, %v2923
  %v2929 = vld [vmem:[%s6] sm:$0xf]
  %v2930 = vld [vmem:[%s6 + $0x4] sm:$0xf]
  %v2931 = vld [vmem:[%s6 + $0x8] sm:$0xf]
  %v2932 = vld [vmem:[%s6 + $0xc] sm:$0xf]
  %v2933 = vld [vmem:[%s6 + $0x10] sm:$0xf]
  %v2934 = vld [vmem:[%s6 + $0x14] sm:$0xf]
  %v2935 = vld [vmem:[%s6 + $0x18] sm:$0xf]
  %v2936 = vld [vmem:[%s6 + $0x1c] sm:$0xf]
  %v2937 = vld [vmem:[%s6 + $0x20] sm:$0xf]
  %v2938 = vld [vmem:[%s6 + $0x24] sm:$0xf]
  %v2939 = vld [vmem:[%s6 + $0x28] sm:$0xf]
  %v2940 = vld [vmem:[%s6 + $0x2c] sm:$0xf]
  %v2941 = vld [vmem:[%s6 + $0x30] sm:$0xf]
  %v2942 = vld [vmem:[%s6 + $0x34] sm:$0xf]
  %v2943 = vld [vmem:[%s6 + $0x38] sm:$0xf]
  %v2944 = vld [vmem:[%s6 + $0x3c] sm:$0xf]
  %v2945 = vld [vmem:[%s7] sm:$0x1]
  %v2947 = vperm.slane %v2945, 0
  %v2965 = vunpack.c.l.b16 %v2929
  %v2966 = vunpack.c.l.b16 %v2930
  %v2967 = vunpack.c.l.b16 %v2931
  %v2968 = vunpack.c.l.b16 %v2932
  %v2969 = vunpack.c.l.b16 %v2933
  %v2970 = vunpack.c.l.b16 %v2934
  %v2971 = vunpack.c.l.b16 %v2935
  %v2972 = vunpack.c.l.b16 %v2936
  %v2973 = vunpack.c.l.b16 %v2937
  %v2974 = vunpack.c.l.b16 %v2938
  %v2975 = vunpack.c.l.b16 %v2939
  %v2976 = vunpack.c.l.b16 %v2940
  %v2977 = vunpack.c.l.b16 %v2941
  %v2978 = vunpack.c.l.b16 %v2942
  %v2979 = vunpack.c.l.b16 %v2943
  %v2980 = vunpack.c.l.b16 %v2944
  %v2981 = vpack.c.b16 %v2966, %v2965
  %v2982 = vpack.c.b16 %v2968, %v2967
  %v2983 = vpack.c.b16 %v2970, %v2969
  %v2984 = vpack.c.b16 %v2972, %v2971
  %v2985 = vpack.c.b16 %v2974, %v2973
  %v2986 = vpack.c.b16 %v2976, %v2975
  %v2987 = vpack.c.b16 %v2978, %v2977
  %v2988 = vpack.c.b16 %v2980, %v2979
  %2997 = vmatpush.bf16.msra.mxu0 %v2988
  %2998 = vmatpush.bf16.msra.mxu0 %v2987
  %2999 = vmatpush.bf16.msra.mxu0 %v2986
  %3000 = vmatpush.bf16.msra.mxu0 %v2985
  %3001 = vmatpush.bf16.msra.mxu0 %v2984
  %3002 = vmatpush.bf16.msra.mxu0 %v2983
  %3003 = vmatpush.bf16.msra.mxu0 %v2982
  %3004 = vmatpush.bf16.msra.mxu0 %v2981
  %3005 = vmatmul.bf16.gmra.mxu0 %v2924
  %v3006 = vpop.f32.mrf.mxu0
  %v3007 = vadd.f32 %v2947, %v3006
  %v3008 = vpop.f32.mrf.mxu0
  %v3009 = vadd.f32 %v2947, %v3008
  %3010 = vmatmul.bf16.gmra.mxu0 %v2925
  %v3011 = vpop.f32.mrf.mxu0
  %v3012 = vadd.f32 %v2947, %v3011
  %v3013 = vpop.f32.mrf.mxu0
  %v3014 = vadd.f32 %v2947, %v3013
  %3015 = vmatmul.bf16.gmra.mxu0 %v2926
  %v3016 = vpop.f32.mrf.mxu0
  %v3017 = vadd.f32 %v2947, %v3016
  %v3018 = vpop.f32.mrf.mxu0
  %v3019 = vadd.f32 %v2947, %v3018
  %3020 = vmatmul.bf16.gmra.mxu0 %v2927
  %v3021 = vpop.f32.mrf.mxu0
  %v3022 = vadd.f32 %v2947, %v3021
  %v3023 = vpop.f32.mrf.mxu0
  %v3024 = vadd.f32 %v2947, %v3023
  %3025 = vmatmul.bf16.gmra.mxu0 %v2928
  %v3026 = vpop.f32.mrf.mxu0
  %v3027 = vadd.f32 %v2947, %v3026
  %v3028 = vpop.f32.mrf.mxu0
  %3029 = vdwg.mxu0
  %vm3030 = vcmask 261120
  %3031 = vst.msk [vmem:[%s11] sm:$0xff] %vm3030, %v3007
  %3032 = vst.msk [vmem:[%s11 + $0x8] sm:$0xff] %vm3030, %v3009
  %3033 = vst.msk [vmem:[%s11 + $0x10] sm:$0xff] %vm3030, %v3012
  %3034 = vst.msk [vmem:[%s11 + $0x18] sm:$0xff] %vm3030, %v3014
  %3035 = vst.msk [vmem:[%s11 + $0x20] sm:$0xff] %vm3030, %v3017
  %3036 = vst.msk [vmem:[%s11 + $0x28] sm:$0xff] %vm3030, %v3019
  %3037 = vst.msk [vmem:[%s11 + $0x30] sm:$0xff] %vm3030, %v3022
  %3038 = vst.msk [vmem:[%s11 + $0x38] sm:$0xff] %vm3030, %v3024
  %3039 = vst.msk [vmem:[%s11 + $0x40] sm:$0xff] %vm3030, %v3027
  %v3040 = vld [vmem:[%s8] sm:$0xff]
  %v3041 = vld [vmem:[%s9] sm:$0xff]
  %v3042 = vmul.f32 %v3041, 0.1
  %v3043 = vadd.f32 %v3040, %v3042
  %3045 = vrot.lane.b32.xlu0 %v3027, 32
  %v3046 = vpop.permute.xlu0 %3045
  %v3048 = vsel %vm3030, %v3043, %v3046
  %vm3049 = vcmask 523264
  %v3050 = vsel %vm3049, %v3048, 0.0
  %3051 = vst [vmem:[%s12] sm:$0xff] %v3050
  %v3052 = vsub.f32 %v3007, %v3040
  %v3053 = vsub.f32 %v3009, %v3040
  %v3054 = vsub.f32 %v3012, %v3040
  %v3055 = vsub.f32 %v3014, %v3040
  %v3056 = vsub.f32 %v3017, %v3040
  %v3057 = vsub.f32 %v3019, %v3040
  %v3058 = vsub.f32 %v3022, %v3040
  %v3059 = vsub.f32 %v3024, %v3040
  %v3060 = vsub.f32 %v3027, %v3040
  %v3061 = vmul.f32 %v3052, %v3052
  %v3062 = vmul.f32 %v3053, %v3053
  %v3063 = vmul.f32 %v3054, %v3054
  %v3064 = vmul.f32 %v3055, %v3055
  %v3065 = vmul.f32 %v3056, %v3056
  %v3066 = vmul.f32 %v3057, %v3057
  %v3067 = vmul.f32 %v3058, %v3058
  %v3068 = vmul.f32 %v3059, %v3059
  %v3069 = vmul.f32 %v3060, %v3060
  %v3070 = vsel %vm3030, %v3061, 0.0
  %3071 = vadd.xlane.f32.xlu0 %v3070
  %v3072 = vpop.xlane.xlu0 %3071
  %v3073 = vsel %vm3030, %v3062, 0.0
  %3074 = vadd.xlane.f32.xlu0 %v3073
  %v3075 = vpop.xlane.xlu0 %3074
  %v3076 = vsel %vm3030, %v3063, 0.0
  %3077 = vadd.xlane.f32.xlu0 %v3076
  %v3078 = vpop.xlane.xlu0 %3077
  %v3079 = vsel %vm3030, %v3064, 0.0
  %3080 = vadd.xlane.f32.xlu0 %v3079
  %v3081 = vpop.xlane.xlu0 %3080
  %v3082 = vsel %vm3030, %v3065, 0.0
  %3083 = vadd.xlane.f32.xlu0 %v3082
  %v3084 = vpop.xlane.xlu0 %3083
  %v3085 = vsel %vm3030, %v3066, 0.0
  %3086 = vadd.xlane.f32.xlu0 %v3085
  %v3087 = vpop.xlane.xlu0 %3086
  %v3088 = vsel %vm3030, %v3067, 0.0
  %3089 = vadd.xlane.f32.xlu0 %v3088
  %v3090 = vpop.xlane.xlu0 %3089
  %v3091 = vsel %vm3030, %v3068, 0.0
  %3092 = vadd.xlane.f32.xlu0 %v3091
  %v3093 = vpop.xlane.xlu0 %3092
  %v3094 = vsel %vm3030, %v3069, 0.0
  %3095 = vadd.xlane.f32.xlu0 %v3094
  %v3096 = vpop.xlane.xlu0 %3095
  %v3097 = vld [vmem:[%s10] sm:$0xff]
  %v3098 = vld [vmem:[%s10 + $0x8] sm:$0x1]
  %v3101 = vperm.slane %v3097, 0
  %v3102 = vlaneseq
  %v3103 = vshrl.u32 %v3102, 7
  %3105 = vset.pattern.permute.xlu0 %v3103
  %3106 = vperm.xlu0 %3105, %v3101
  %v3107 = vpop.permute.xlu0 %3106
  %v3108 = vperm.slane %v3097, 1
  %v3109 = vlaneseq
  %v3110 = vshrl.u32 %v3109, 7
  %3112 = vset.pattern.permute.xlu0 %v3110
  %3113 = vperm.xlu0 %3112, %v3108
  %v3114 = vpop.permute.xlu0 %3113
  %v3115 = vperm.slane %v3097, 2
  %v3116 = vlaneseq
  %v3117 = vshrl.u32 %v3116, 7
  %3119 = vset.pattern.permute.xlu0 %v3117
  %3120 = vperm.xlu0 %3119, %v3115
  %v3121 = vpop.permute.xlu0 %3120
  %v3122 = vperm.slane %v3097, 3
  %v3123 = vlaneseq
  %v3124 = vshrl.u32 %v3123, 7
  %3126 = vset.pattern.permute.xlu0 %v3124
  %3127 = vperm.xlu0 %3126, %v3122
  %v3128 = vpop.permute.xlu0 %3127
  %v3129 = vperm.slane %v3097, 4
  %v3130 = vlaneseq
  %v3131 = vshrl.u32 %v3130, 7
  %3133 = vset.pattern.permute.xlu0 %v3131
  %3134 = vperm.xlu0 %3133, %v3129
  %v3135 = vpop.permute.xlu0 %3134
  %v3136 = vperm.slane %v3097, 5
  %v3137 = vlaneseq
  %v3138 = vshrl.u32 %v3137, 7
  %3140 = vset.pattern.permute.xlu0 %v3138
  %3141 = vperm.xlu0 %3140, %v3136
  %v3142 = vpop.permute.xlu0 %3141
  %v3143 = vperm.slane %v3097, 6
  %v3144 = vlaneseq
  %v3145 = vshrl.u32 %v3144, 7
  %3147 = vset.pattern.permute.xlu0 %v3145
  %3148 = vperm.xlu0 %3147, %v3143
  %v3149 = vpop.permute.xlu0 %3148
  %v3150 = vperm.slane %v3097, 7
  %v3151 = vlaneseq
  %v3152 = vshrl.u32 %v3151, 7
  %3154 = vset.pattern.permute.xlu0 %v3152
  %3155 = vperm.xlu0 %3154, %v3150
  %v3156 = vpop.permute.xlu0 %3155
  %v3157 = vperm.slane %v3098, 0
  %v3158 = vlaneseq
  %v3159 = vshrl.u32 %v3158, 7
  %3161 = vset.pattern.permute.xlu0 %v3159
  %3162 = vperm.xlu0 %3161, %v3157
  %v3163 = vpop.permute.xlu0 %3162
  %v3173 = vmul.f32 %v3072, %v3107
  %v3174 = vmul.f32 %v3075, %v3114
  %v3175 = vmul.f32 %v3078, %v3121
  %v3176 = vmul.f32 %v3081, %v3128
  %v3177 = vmul.f32 %v3084, %v3135
  %v3178 = vmul.f32 %v3087, %v3142
  %v3179 = vmul.f32 %v3090, %v3149
  %v3180 = vmul.f32 %v3093, %v3156
  %v3181 = vmul.f32 %v3096, %v3163
  %3191 = vset.pattern.permute.xlu0 0
  %3192 = vperm.xlu0 %3191, %v3173
  %v3193 = vpop.permute.xlu0 %3192
  %3194 = vset.pattern.permute.xlu0 0
  %3195 = vperm.xlu0 %3194, %v3174
  %v3196 = vpop.permute.xlu0 %3195
  %3197 = vset.pattern.permute.xlu0 0
  %3198 = vperm.xlu0 %3197, %v3175
  %v3199 = vpop.permute.xlu0 %3198
  %3200 = vset.pattern.permute.xlu0 0
  %3201 = vperm.xlu0 %3200, %v3176
  %v3202 = vpop.permute.xlu0 %3201
  %3203 = vset.pattern.permute.xlu0 0
  %3204 = vperm.xlu0 %3203, %v3177
  %v3205 = vpop.permute.xlu0 %3204
  %3206 = vset.pattern.permute.xlu0 0
  %3207 = vperm.xlu0 %3206, %v3178
  %v3208 = vpop.permute.xlu0 %3207
  %3209 = vset.pattern.permute.xlu0 0
  %3210 = vperm.xlu0 %3209, %v3179
  %v3211 = vpop.permute.xlu0 %3210
  %3212 = vset.pattern.permute.xlu0 0
  %3213 = vperm.xlu0 %3212, %v3180
  %v3214 = vpop.permute.xlu0 %3213
  %3215 = vset.pattern.permute.xlu0 0
  %3216 = vperm.xlu0 %3215, %v3181
  %v3217 = vpop.permute.xlu0 %3216
  %v3218 = vlaneseq
  %v3219 = vand.u32 %v3218, 127
  %v3220 = vperm.slane %v3193, %v3219
  %v3221 = vperm.slane %v3196, %v3219
  %v3222 = vperm.slane %v3199, %v3219
  %v3223 = vperm.slane %v3202, %v3219
  %v3224 = vperm.slane %v3205, %v3219
  %v3225 = vperm.slane %v3208, %v3219
  %v3226 = vperm.slane %v3211, %v3219
  %v3227 = vperm.slane %v3214, %v3219
  %v3228 = vperm.slane %v3217, %v3219
  %vm3229 = vcmask 1041409
  %v3230 = vsel %vm3229, %v3221, %v3220
  %vm3231 = vcmask 1042434
  %v3232 = vsel %vm3231, %v3222, %v3230
  %vm3233 = vcmask 1043459
  %v3234 = vsel %vm3233, %v3223, %v3232
  %vm3235 = vcmask 1044484
  %v3236 = vsel %vm3235, %v3224, %v3234
  %vm3237 = vcmask 1045509
  %v3238 = vsel %vm3237, %v3225, %v3236
  %vm3239 = vcmask 1046534
  %v3240 = vsel %vm3239, %v3226, %v3238
  %vm3241 = vcmask 1047559
  %v3242 = vsel %vm3241, %v3227, %v3240
  %vm3245 = vcmask 64512
  %v3246 = vsel %vm3245, %v3242, 0.0
  %3247 = vadd.xlane.f32.xlu0 %v3246
  %v3248 = vpop.xlane.xlu0 %3247
  %vm3249 = vcmask 57344
  %v3250 = vsel %vm3249, %v3228, 0.0
  %3251 = vadd.xlane.f32.xlu0 %v3250
  %v3252 = vpop.xlane.xlu0 %3251
  %vm3253 = vcmask 1040384
  %v3254 = vsel %vm3253, %v3252, 0.0
  %v3255 = vadd.f32 %v3248, %v3254
  %v3256 = vrot.slane %v3255, 4
  %v3257 = vadd.f32 %v3255, %v3256
  %v3258 = vrot.slane %v3257, 2
  %v3259 = vadd.f32 %v3257, %v3258
  %v3260 = vrot.slane %v3259, 1
  %v3261 = vadd.f32 %v3259, %v3260
  %v3262 = vsel %vm3245, %v3097, 0.0
  %3263 = vadd.xlane.f32.xlu0 %v3262
  %v3264 = vpop.xlane.xlu0 %3263
  %v3265 = vsel %vm3249, %v3098, 0.0
  %3266 = vadd.xlane.f32.xlu0 %v3265
  %v3267 = vpop.xlane.xlu0 %3266
  %v3268 = vsel %vm3253, %v3267, 0.0
  %v3269 = vadd.f32 %v3264, %v3268
  %v3270 = vrot.slane %v3269, 4
  %v3271 = vadd.f32 %v3269, %v3270
  %v3272 = vrot.slane %v3271, 2
  %v3273 = vadd.f32 %v3271, %v3272
  %v3274 = vrot.slane %v3273, 1
  %v3275 = vadd.f32 %v3273, %v3274
  %v3276 = vrcp.pop %v3275
  %v3277 = vmul.f32 %v3275, %v3276
  %v3278 = vsub.f32 1.0, %v3277
  %v3279 = vmul.f32 %v3276, %v3278
  %v3280 = vadd.f32 %v3276, %v3279
  %vm3281 = vweird.f32 %v3275
  %vm3282 = vweird.f32 %v3276
  %vm3283 = vmor %vm3281, %vm3282
  %v3284 = vsel %vm3283, %v3276, %v3280
  %v3285 = vand.u32 2147483647, %v3275
  %vm3286 = vcmp.eq.f32.partialorder %v3285, 8.507059e+37
  %v3287 = vand.u32 %v3275, 2147483648
  %v3288 = vor.u32 1.1754944e-38, %v3287
  %v3289 = vsel %vm3286, %v3288, %v3284
  %v3290 = vmul.f32 %v3261, %v3289
  %v3291 = vlaneseq
  %v3292 = vshrl.u32 %v3291, 7
  %vm3293 = vcmp.lt.s32.totalorder %v3292, 4
  %v3294 = vsel %vm3293, 1, 0
  %v3295 = vcvt.s32.f32 %v3294
  %v3296 = vmul.f32 %v3040, %v3040
  %v3297 = vsel %vm3030, %v3296, 0.0
  %3298 = vadd.xlane.f32.xlu0 %v3297
  %v3299 = vpop.xlane.xlu0 %3298
  %v3300 = vmax.f32 %v3299, 10.0
  %v3301 = vmul.f32 %v3300, %v3295
  %v3302 = vrot.slane %v3301, 4
  %v3303 = vadd.f32 %v3301, %v3302
  %v3304 = vrot.slane %v3303, 2
  %v3305 = vadd.f32 %v3303, %v3304
  %v3306 = vrot.slane %v3305, 1
  %v3307 = vadd.f32 %v3305, %v3306
  %v3308 = vrcp.pop 4.0
  %v3309 = vmul.f32 4.0, %v3308
  %v3310 = vsub.f32 1.0, %v3309
  %v3311 = vmul.f32 %v3308, %v3310
  %v3312 = vadd.f32 %v3308, %v3311
  %vm3313 = vweird.f32 %v3308
  %v3314 = vsel %vm3313, %v3308, %v3312
  %v3315 = vmul.f32 %v3307, %v3314
  %vm3316 = vcmp.eq.s32.totalorder %v3219, 0
  %vm3317 = vcmp.eq.s32.totalorder %v3219, 1
  %v3318 = vsel %vm3317, %v3315, 0.0
  %v3319 = vsel %vm3316, %v3290, %v3318
  %3320 = vst [vmem:[%s13] sm:$0x1] %v3319
  // Predicated region
  $region46: #{encoder_decoder_forward.1} parent=0 // pred_check
    _
  $region47: #{encoder_decoder_forward.1} parent=0 // pred_check_branch
    %3322 = sbr.rel (0) target = $region49
  $region48: #{encoder_decoder_forward.1} parent=0 // pred_region
    _
  $region49: #{encoder_decoder_forward.1} parent=0 // pred_fallthru
    _
  // Predicated region
  $region50: #{encoder_decoder_forward.1} parent=0 // pred_check
    _
  $region51: #{encoder_decoder_forward.1} parent=0 // pred_check_branch
    %3324 = sbr.rel (0) target = $region53
  $region52: #{encoder_decoder_forward.1} parent=0 // pred_region
    _
  $region53: #{encoder_decoder_forward.1} parent=0 // pred_fallthru
    _
  // Predicated region
  $region54: #{encoder_decoder_forward.1} parent=0 // pred_check
    _
  $region55: #{encoder_decoder_forward.1} parent=0 // pred_check_branch
    %3326 = sbr.rel (0) target = $region57
  $region56: #{encoder_decoder_forward.1} parent=0 // pred_region
    _
  $region57: #{encoder_decoder_forward.1} parent=0 // pred_fallthru
    _
  // Predicated region
  $region58: #{encoder_decoder_forward.1} parent=0 // pred_check
    _
  $region59: #{encoder_decoder_forward.1} parent=0 // pred_check_branch
    %3328 = sbr.rel (0) target = $region61
  $region60: #{encoder_decoder_forward.1} parent=0 // pred_region
    _
  $region61: #{encoder_decoder_forward.1} parent=0 // pred_fallthru
    _
  // Predicated region
  $region62: #{encoder_decoder_forward.1} parent=0 // pred_check
    _
  $region63: #{encoder_decoder_forward.1} parent=0 // pred_check_branch
    %3330 = sbr.rel (0) target = $region65
  $region64: #{encoder_decoder_forward.1} parent=0 // pred_region
    _
  $region65: #{encoder_decoder_forward.1} parent=0 // pred_fallthru
    _
  // Predicated region
  $region66: #{encoder_decoder_forward.1} parent=0 // pred_check
    _
  $region67: #{encoder_decoder_forward.1} parent=0 // pred_check_branch
    %3332 = sbr.rel (0) target = $region69
  $region68: #{encoder_decoder_forward.1} parent=0 // pred_region
    _
  $region69: #{encoder_decoder_forward.1} parent=0 // pred_fallthru
    _

</llo_original>
